<compile_context>
chip_gen: v7x
topology: tpu7x:2x2x1
jax: 0.10.0
libtpu: 0.0.40
codegen_flags: <defaults>
</compile_context>

<pallas_src>
import numpy as np
import jax
import jax.numpy as jnp
from jax.experimental import pallas as pl
from jax.experimental.pallas import tpu as pltpu


# ----------------------------------------------------------------------------
# Fused forward kernel (whole network per batch tile, batch in lanes/sublanes)
# ----------------------------------------------------------------------------
def _fused_net_kernel(x_ref, band1_ref, bias1_ref, band2_ref, bias2_ref,
                      wf1_ref, bf1_ref, wf2_ref, bf2_ref, o_ref):
    """x_ref     : (1, 256, 6*TB)  rows 32*j + h hold x[b, h, 4u + j] (j=0..7,
                                   h<28, rows 28..31 of each slab are zero);
                                   lanes are u*TB + b (batch minor -> lane-dense)
       band1_ref : (240, 160)      conv1 band, rows = hp*120 + oc*12 + i
                                   (oh = 2i + hp), cols = kw*32 + input_row
       bias1_ref : (120, 1)        conv1 bias per pooled row (oc*12 + i)
       band2_ref : (5, 160, 120)   conv2 bands, rows = hp*80 + oc2*4 + i2,
                                   cols = ic*12 + input_row
       bias2_ref : (80, 1)         conv2 bias per pooled row (oc2*4 + ph)
       wf1_ref   : (4, 80, 128)    fc1 weight with the CHW flatten folded in
       bf1_ref   : (1, 128)
       wf2_ref   : (128, 128)
       bf2_ref   : (1, 128)
       o_ref     : (TB, 128)       lane-dense output; columns 0..9 = log-probs
    """
    tb = o_ref.shape[0]

    # ---- conv1 (1->10, k=5), kw folded into K = 160: one dot per W-phase ------
    # RHS for phase s (output col ow = 4u + s) is the contiguous row window
    # [32*s, 32*s + 160) of the pre-laid-out input block: no copies, no reshape.
    def conv1_phase(s):                                   # -> (240, 6*TB)
        rhs = x_ref[0, 32 * s:32 * s + 160, :]            # (160, 6*TB)
        return jnp.dot(band1_ref[...], rhs, preferred_element_type=jnp.float32)

    # ---- 2x2 max-pool + bias + ReLU, one H-parity pair at a time (liveness) ---
    h1 = []
    for jp in range(2):
        e = conv1_phase(2 * jp)                           # W-phases 2jp, 2jp+1
        o = conv1_phase(2 * jp + 1)
        m = jnp.maximum(jnp.maximum(e[:120], e[120:]),
                        jnp.maximum(o[:120], o[120:]))
        h1.append(jnp.maximum(m + bias1_ref[...], 0.0))   # (120, 6*TB)

    # ---- conv2 (10->20, k=5): 5-term accumulation, zero-copy lane-slice RHS ---
    # TODO(synk): nn.Dropout2d is train-time stochastic; eval-mode identity.
    co2 = []
    for wp in range(2):
        acc = None
        for kw in range(5):
            jp, d = (wp + kw) % 2, (wp + kw) // 2
            piece = h1[jp][:, d * tb:(d + 4) * tb]        # (120, 4*TB)
            t = jnp.dot(band2_ref[kw], piece, preferred_element_type=jnp.float32)
            acc = t if acc is None else acc + t
        co2.append(acc)                                   # (160, 4*TB)

    # ---- 2x2 max-pool + bias + ReLU -> h2 (80, 4*TB): rows oc2*4+ph, lanes pw*TB+b
    e, o = co2
    h2 = jnp.maximum(jnp.maximum(e[:80], e[80:]), jnp.maximum(o[:80], o[80:]))
    h2 = jnp.maximum(h2 + bias2_ref[...], 0.0)

    # ---- fc1 + ReLU: batch moves to the sublane (M) dim with ONE transpose ----
    h2t = h2.T                                            # (4*TB, 80)
    f = None
    for pw in range(4):
        t = jnp.dot(h2t[pw * tb:(pw + 1) * tb, :], wf1_ref[pw],
                    preferred_element_type=jnp.float32)   # (TB, 128)
        f = t if f is None else f + t
    f = jnp.maximum(f + bf1_ref[...], 0.0)                # 50 valid lanes
    # TODO(synk): F.dropout is train-time stochastic; eval-mode identity.

    # ---- fc2 + masked log_softmax, batched over the whole tile ----------------
    z = jnp.dot(f, wf2_ref[...], preferred_element_type=jnp.float32) + bf2_ref[...]
    lane = jax.lax.broadcasted_iota(jnp.int32, z.shape, 1)        # once per tile
    z = jnp.where(lane < 10, z, jnp.float32(-1e30))
    zmax = jnp.max(z, axis=-1, keepdims=True)
    lse = jnp.log(jnp.sum(jnp.exp(z - zmax), axis=-1, keepdims=True)) + zmax
    o_ref[...] = z - lse                                  # single lane-dense store


# ----------------------------------------------------------------------------
# One-time parameter repacking (all reshapes/transposes hoisted out of forward)
# ----------------------------------------------------------------------------
def prepare_params(params):
    w1 = np.asarray(params["conv1_w"], np.float32)     # (10, 1, 5, 5)
    b1 = np.asarray(params["conv1_b"], np.float32)
    w2 = np.asarray(params["conv2_w"], np.float32)     # (20, 10, 5, 5)
    b2 = np.asarray(params["conv2_b"], np.float32)
    fw1 = np.asarray(params["fc1_w"], np.float32)      # (50, 320)
    fb1 = np.asarray(params["fc1_b"], np.float32)
    fw2 = np.asarray(params["fc2_w"], np.float32)      # (10, 50)
    fb2 = np.asarray(params["fc2_b"], np.float32)

    # conv1 band with kw folded into K: rows = hp*120 + oc*12 + i (oh = 2i + hp),
    # cols = kw*32 + input_row h (cols 28..31 of each kw slab are zero padding).
    band1 = np.zeros((240, 160), np.float32)
    for hp in range(2):
        for oc in range(10):
            for i in range(12):
                row = hp * 120 + oc * 12 + i
                oh = 2 * i + hp
                for kw in range(5):
                    band1[row, kw * 32 + oh:kw * 32 + oh + 5] = w1[oc, 0, :, kw]
    bias1 = np.zeros((120, 1), np.float32)             # added once after pooling
    for oc in range(10):
        bias1[oc * 12:(oc + 1) * 12, 0] = b1[oc]

    # conv2 bands (one per kw): rows = hp*80 + oc2*4 + i2 (oh2 = 2i2 + hp),
    # cols = ic*12 + input_row.
    band2 = np.zeros((5, 160, 120), np.float32)
    for hp in range(2):
        for oc2 in range(20):
            for i2 in range(4):
                row = hp * 80 + oc2 * 4 + i2
                oh2 = 2 * i2 + hp
                for kw in range(5):
                    for ic in range(10):
                        band2[kw, row, ic * 12 + oh2:ic * 12 + oh2 + 5] = \
                            w2[oc2, ic, :, kw]
    bias2 = np.zeros((80, 1), np.float32)              # added once after pooling
    for oc2 in range(20):
        bias2[oc2 * 4:(oc2 + 1) * 4, 0] = b2[oc2]

    # fc1: fold PyTorch's (C,H,W) flatten of the (20,4,4) map into the weight;
    # one (80, 128) lane-dense slab per pooled-W position pw (batch in sublanes).
    wf1 = np.zeros((4, 80, 128), np.float32)
    for pw in range(4):
        for oc2 in range(20):
            for ph in range(4):
                wf1[pw, oc2 * 4 + ph, :50] = fw1[:, oc2 * 16 + ph * 4 + pw]
    bf1 = np.zeros((1, 128), np.float32)
    bf1[0, :50] = fb1

    wf2 = np.zeros((128, 128), np.float32)
    wf2[:50, :10] = fw2.T
    bf2 = np.zeros((1, 128), np.float32)
    bf2[0, :10] = fb2

    return {
        "band1": jnp.asarray(band1), "bias1": jnp.asarray(bias1),
        "band2": jnp.asarray(band2), "bias2": jnp.asarray(bias2),
        "wf1": jnp.asarray(wf1), "bf1": jnp.asarray(bf1),
        "wf2": jnp.asarray(wf2), "bf2": jnp.asarray(bf2),
    }


# ----------------------------------------------------------------------------
# Forward pass: single fused pallas_call, grid over batch tiles
# ----------------------------------------------------------------------------
def _pick_tb(n):
    # 32 fills a 128-wide MXU pass (conv1 RHS = 192 lanes, conv2 = 128 lanes,
    # fc M = 32); 64 fills a 256-wide pass (v6e/v7x) while still leaving >=2
    # "parallel" grid steps (v7x megacore) once the batch reaches 128.
    return 64 if n >= 128 else 32


@jax.jit
def net_forward(x_nchw, prepped):
    n = x_nchw.shape[0]
    tb = _pick_tb(n)
    n_pad = -(-n // tb) * tb
    nt = n_pad // tb

    x = x_nchw[:, 0, :, :].astype(jnp.float32)          # (N, 28, 28)
    if n_pad != n:
        x = jnp.pad(x, ((0, n_pad - n), (0, 0), (0, 0)))

    # Layout plumbing (wrapper-side, once per batch): width-8 / stride-4 column
    # windows so every conv1 output-W phase reads one contiguous row window of
    # its input block; batch is the minor (lane) dim -> lane-dense VMEM tiles.
    #   xs[t, 32*j + h, u*tb + b] = x[t*tb + b, h, 4*u + j]   (h<28; rows 28..31 = 0)
    xw = jnp.stack([x[:, :, 4 * u:4 * u + 8] for u in range(6)], axis=2)  # (N,28,6,8)
    xw = jnp.pad(xw, ((0, 0), (0, 4), (0, 0), (0, 0)))                    # (N,32,6,8)
    xs = (xw.reshape(nt, tb, 32, 6, 8)
            .transpose(0, 4, 2, 3, 1)
            .reshape(nt, 256, 6 * tb))

    # Weight BlockSpecs use constant index maps; default pipelining is kept
    # (the kernel is compute-bound, deeper buffering buys nothing).
    out = pl.pallas_call(
        _fused_net_kernel,
        out_shape=jax.ShapeDtypeStruct((n_pad, 128), jnp.float32),
        grid_spec=pltpu.PrefetchScalarGridSpec(
            num_scalar_prefetch=0,
            grid=(nt,),
            in_specs=[
                pl.BlockSpec((1, 256, 6 * tb), lambda i: (i, 0, 0)),
                pl.BlockSpec((240, 160), lambda i: (0, 0)),
                pl.BlockSpec((120, 1), lambda i: (0, 0)),
                pl.BlockSpec((5, 160, 120), lambda i: (0, 0, 0)),
                pl.BlockSpec((80, 1), lambda i: (0, 0)),
                pl.BlockSpec((4, 80, 128), lambda i: (0, 0, 0)),
                pl.BlockSpec((1, 128), lambda i: (0, 0)),
                pl.BlockSpec((128, 128), lambda i: (0, 0)),
                pl.BlockSpec((1, 128), lambda i: (0, 0)),
            ],
            out_specs=pl.BlockSpec((tb, 128), lambda i: (i, 0)),
        ),
        compiler_params=pltpu.CompilerParams(
            dimension_semantics=("parallel",)),
    )(xs, prepped["band1"], prepped["bias1"], prepped["band2"], prepped["bias2"],
      prepped["wf1"], prepped["bf1"], prepped["wf2"], prepped["bf2"])
    return out[:n, :10]


# ----------------------------------------------------------------------------
# Parameter init (PyTorch-style uniform) and a pure-JAX reference for checking
# ----------------------------------------------------------------------------
def init_params(key):
    ks = jax.random.split(key, 8)

    def u(k, shape, fan_in):
        bound = 1.0 / float(np.sqrt(fan_in))
        return jax.random.uniform(k, shape, jnp.float32, -bound, bound)

    return {
        "conv1_w": u(ks[0], (10, 1, 5, 5), 1 * 5 * 5),
        "conv1_b": u(ks[1], (10,), 1 * 5 * 5),
        "conv2_w": u(ks[2], (20, 10, 5, 5), 10 * 5 * 5),
        "conv2_b": u(ks[3], (20,), 10 * 5 * 5),
        "fc1_w": u(ks[4], (50, 320), 320),
        "fc1_b": u(ks[5], (50,), 320),
        "fc2_w": u(ks[6], (10, 50), 50),
        "fc2_b": u(ks[7], (10,), 50),
    }


def reference_forward(x_nchw, params):
    hi = jax.lax.Precision.HIGHEST
    n = x_nchw.shape[0]
    c1 = jax.lax.conv_general_dilated(
        x_nchw, params["conv1_w"], (1, 1), "VALID",
        dimension_numbers=("NCHW", "OIHW", "NCHW"), precision=hi)
    c1 = c1 + params["conv1_b"][None, :, None, None]
    h1 = jnp.maximum(c1.reshape(n, 10, 12, 2, 12, 2).max(axis=(3, 5)), 0.0)
    c2 = jax.lax.conv_general_dilated(
        h1, params["conv2_w"], (1, 1), "VALID",
        dimension_numbers=("NCHW", "OIHW", "NCHW"), precision=hi)
    c2 = c2 + params["conv2_b"][None, :, None, None]
    h2 = jnp.maximum(c2.reshape(n, 20, 4, 2, 4, 2).max(axis=(3, 5)), 0.0)
    flat = h2.reshape(n, 320)
    f = jnp.maximum(jnp.dot(flat, params["fc1_w"].T, precision=hi)
                    + params["fc1_b"], 0.0)
    z = jnp.dot(f, params["fc2_w"].T, precision=hi) + params["fc2_b"]
    return jax.nn.log_softmax(z, axis=1)


if __name__ == "__main__":
    key = jax.random.PRNGKey(0)
    k_x, k_p = jax.random.split(key)
    # forward() requires 1 input channel and 28x28 spatial (fc1 expects 320 = 20*4*4)
    x = jax.random.normal(k_x, (2, 1, 28, 28), jnp.float32)
    params = init_params(k_p)
    prepped = prepare_params(params)

    out = net_forward(x, prepped)
    out = jax.block_until_ready(out)

    assert out.shape == (2, 10)
    # log_softmax rows should (approximately) sum to 1 after exp
    assert jnp.allclose(jnp.sum(jnp.exp(out), axis=1), 1.0, atol=1e-4)
    # check against a pure-JAX reference of the same network
    ref = reference_forward(x, params)
    np.testing.assert_allclose(np.asarray(out), np.asarray(ref),
                               rtol=2e-2, atol=2e-2)
    print("KERNEL_OK")
</pallas_src>

<mosaic_0001>
module attributes {stable_mosaic.version = 11 : i64} {
  func.func @_fused_net_kernel(%arg0: i32, %arg1: memref<1x256x192xf32, #tpu.memory_space<vmem>>, %arg2: memref<240x160xf32, #tpu.memory_space<vmem>>, %arg3: memref<120x1xf32, #tpu.memory_space<vmem>>, %arg4: memref<5x160x120xf32, #tpu.memory_space<vmem>>, %arg5: memref<80x1xf32, #tpu.memory_space<vmem>>, %arg6: memref<4x80x128xf32, #tpu.memory_space<vmem>>, %arg7: memref<1x128xf32, #tpu.memory_space<vmem>>, %arg8: memref<128x128xf32, #tpu.memory_space<vmem>>, %arg9: memref<1x128xf32, #tpu.memory_space<vmem>>, %arg10: memref<32x128xf32, #tpu.memory_space<vmem>>) attributes {dimension_semantics = [#tpu.dimension_semantics<parallel>], iteration_bounds = array<i64: 1>, scalar_prefetch = 0 : i64, scratch_operands = 0 : i64, tpu.core_type = #tpu.core_type<tc>, window_params = [{transform_indices = @transform_0, window_bounds = array<i64: 1, 256, 192>}, {pipeline_mode = #tpu.pipeline_mode<synchronous>, transform_indices = @transform_1, window_bounds = array<i64: 240, 160>}, {pipeline_mode = #tpu.pipeline_mode<synchronous>, transform_indices = @transform_2, window_bounds = array<i64: 120, 1>}, {pipeline_mode = #tpu.pipeline_mode<synchronous>, transform_indices = @transform_3, window_bounds = array<i64: 5, 160, 120>}, {pipeline_mode = #tpu.pipeline_mode<synchronous>, transform_indices = @transform_4, window_bounds = array<i64: 80, 1>}, {pipeline_mode = #tpu.pipeline_mode<synchronous>, transform_indices = @transform_5, window_bounds = array<i64: 4, 80, 128>}, {pipeline_mode = #tpu.pipeline_mode<synchronous>, transform_indices = @transform_6, window_bounds = array<i64: 1, 128>}, {pipeline_mode = #tpu.pipeline_mode<synchronous>, transform_indices = @transform_7, window_bounds = array<i64: 128, 128>}, {pipeline_mode = #tpu.pipeline_mode<synchronous>, transform_indices = @transform_8, window_bounds = array<i64: 1, 128>}, {transform_indices = @transform_9, window_bounds = array<i64: 32, 128>}]} {
    %c0 = arith.constant 0 : index
    %c0_0 = arith.constant 0 : index
    %c0_1 = arith.constant 0 : index
    %0 = vector.load %arg1[%c0, %c0_0, %c0_1] : memref<1x256x192xf32, #tpu.memory_space<vmem>>, vector<1x160x192xf32>
    %1 = vector.shape_cast %0 : vector<1x160x192xf32> to vector<160x192xf32>
    %c0_2 = arith.constant 0 : index
    %c0_3 = arith.constant 0 : index
    %2 = vector.load %arg2[%c0_2, %c0_3] : memref<240x160xf32, #tpu.memory_space<vmem>>, vector<240x160xf32>
    %cst = arith.constant dense<0.000000e+00> : vector<240x192xf32>
    %3 = tpu.matmul %2, %1, %cst {dimension_numbers = #tpu.dot_dimension_numbers<[1], [0], [0], [1], [0, 0, 1, 1], [], []>} : vector<240x160xf32>, vector<160x192xf32>, vector<240x192xf32> -> vector<240x192xf32>
    %c0_4 = arith.constant 0 : index
    %c32 = arith.constant 32 : index
    %c0_5 = arith.constant 0 : index
    %4 = vector.load %arg1[%c0_4, %c32, %c0_5] : memref<1x256x192xf32, #tpu.memory_space<vmem>>, vector<1x160x192xf32>
    %5 = vector.shape_cast %4 : vector<1x160x192xf32> to vector<160x192xf32>
    %c0_6 = arith.constant 0 : index
    %c0_7 = arith.constant 0 : index
    %6 = vector.load %arg2[%c0_6, %c0_7] : memref<240x160xf32, #tpu.memory_space<vmem>>, vector<240x160xf32>
    %cst_8 = arith.constant dense<0.000000e+00> : vector<240x192xf32>
    %7 = tpu.matmul %6, %5, %cst_8 {dimension_numbers = #tpu.dot_dimension_numbers<[1], [0], [0], [1], [0, 0, 1, 1], [], []>} : vector<240x160xf32>, vector<160x192xf32>, vector<240x192xf32> -> vector<240x192xf32>
    %8 = vector.extract_strided_slice %3 {offsets = [0, 0], sizes = [120, 192], strides = [1, 1]} : vector<240x192xf32> to vector<120x192xf32>
    %9 = vector.extract_strided_slice %3 {offsets = [120, 0], sizes = [120, 192], strides = [1, 1]} : vector<240x192xf32> to vector<120x192xf32>
    %10 = arith.maximumf %8, %9 : vector<120x192xf32>
    %11 = vector.extract_strided_slice %7 {offsets = [0, 0], sizes = [120, 192], strides = [1, 1]} : vector<240x192xf32> to vector<120x192xf32>
    %12 = vector.extract_strided_slice %7 {offsets = [120, 0], sizes = [120, 192], strides = [1, 1]} : vector<240x192xf32> to vector<120x192xf32>
    %13 = arith.maximumf %11, %12 : vector<120x192xf32>
    %14 = arith.maximumf %10, %13 : vector<120x192xf32>
    %c0_9 = arith.constant 0 : index
    %c0_10 = arith.constant 0 : index
    %15 = vector.load %arg3[%c0_9, %c0_10] : memref<120x1xf32, #tpu.memory_space<vmem>>, vector<120x1xf32>
    %16 = vector.broadcast %15 : vector<120x1xf32> to vector<120x192xf32>
    %17 = arith.addf %14, %16 : vector<120x192xf32>
    %cst_11 = arith.constant 0.000000e+00 : f32
    %18 = vector.broadcast %cst_11 : f32 to vector<120x192xf32>
    %19 = arith.maximumf %17, %18 : vector<120x192xf32>
    %c0_12 = arith.constant 0 : index
    %c64 = arith.constant 64 : index
    %c0_13 = arith.constant 0 : index
    %20 = vector.load %arg1[%c0_12, %c64, %c0_13] : memref<1x256x192xf32, #tpu.memory_space<vmem>>, vector<1x160x192xf32>
    %21 = vector.shape_cast %20 : vector<1x160x192xf32> to vector<160x192xf32>
    %c0_14 = arith.constant 0 : index
    %c0_15 = arith.constant 0 : index
    %22 = vector.load %arg2[%c0_14, %c0_15] : memref<240x160xf32, #tpu.memory_space<vmem>>, vector<240x160xf32>
    %cst_16 = arith.constant dense<0.000000e+00> : vector<240x192xf32>
    %23 = tpu.matmul %22, %21, %cst_16 {dimension_numbers = #tpu.dot_dimension_numbers<[1], [0], [0], [1], [0, 0, 1, 1], [], []>} : vector<240x160xf32>, vector<160x192xf32>, vector<240x192xf32> -> vector<240x192xf32>
    %c0_17 = arith.constant 0 : index
    %c96 = arith.constant 96 : index
    %c0_18 = arith.constant 0 : index
    %24 = vector.load %arg1[%c0_17, %c96, %c0_18] : memref<1x256x192xf32, #tpu.memory_space<vmem>>, vector<1x160x192xf32>
    %25 = vector.shape_cast %24 : vector<1x160x192xf32> to vector<160x192xf32>
    %c0_19 = arith.constant 0 : index
    %c0_20 = arith.constant 0 : index
    %26 = vector.load %arg2[%c0_19, %c0_20] : memref<240x160xf32, #tpu.memory_space<vmem>>, vector<240x160xf32>
    %cst_21 = arith.constant dense<0.000000e+00> : vector<240x192xf32>
    %27 = tpu.matmul %26, %25, %cst_21 {dimension_numbers = #tpu.dot_dimension_numbers<[1], [0], [0], [1], [0, 0, 1, 1], [], []>} : vector<240x160xf32>, vector<160x192xf32>, vector<240x192xf32> -> vector<240x192xf32>
    %28 = vector.extract_strided_slice %23 {offsets = [0, 0], sizes = [120, 192], strides = [1, 1]} : vector<240x192xf32> to vector<120x192xf32>
    %29 = vector.extract_strided_slice %23 {offsets = [120, 0], sizes = [120, 192], strides = [1, 1]} : vector<240x192xf32> to vector<120x192xf32>
    %30 = arith.maximumf %28, %29 : vector<120x192xf32>
    %31 = vector.extract_strided_slice %27 {offsets = [0, 0], sizes = [120, 192], strides = [1, 1]} : vector<240x192xf32> to vector<120x192xf32>
    %32 = vector.extract_strided_slice %27 {offsets = [120, 0], sizes = [120, 192], strides = [1, 1]} : vector<240x192xf32> to vector<120x192xf32>
    %33 = arith.maximumf %31, %32 : vector<120x192xf32>
    %34 = arith.maximumf %30, %33 : vector<120x192xf32>
    %c0_22 = arith.constant 0 : index
    %c0_23 = arith.constant 0 : index
    %35 = vector.load %arg3[%c0_22, %c0_23] : memref<120x1xf32, #tpu.memory_space<vmem>>, vector<120x1xf32>
    %36 = vector.broadcast %35 : vector<120x1xf32> to vector<120x192xf32>
    %37 = arith.addf %34, %36 : vector<120x192xf32>
    %cst_24 = arith.constant 0.000000e+00 : f32
    %38 = vector.broadcast %cst_24 : f32 to vector<120x192xf32>
    %39 = arith.maximumf %37, %38 : vector<120x192xf32>
    %40 = vector.extract_strided_slice %19 {offsets = [0, 0], sizes = [120, 128], strides = [1, 1]} : vector<120x192xf32> to vector<120x128xf32>
    %c0_25 = arith.constant 0 : index
    %c0_26 = arith.constant 0 : index
    %c0_27 = arith.constant 0 : index
    %41 = vector.load %arg4[%c0_25, %c0_26, %c0_27] : memref<5x160x120xf32, #tpu.memory_space<vmem>>, vector<1x160x120xf32>
    %42 = vector.shape_cast %41 : vector<1x160x120xf32> to vector<160x120xf32>
    %cst_28 = arith.constant dense<0.000000e+00> : vector<160x128xf32>
    %43 = tpu.matmul %42, %40, %cst_28 {dimension_numbers = #tpu.dot_dimension_numbers<[1], [0], [0], [1], [0, 0, 1, 1], [], []>} : vector<160x120xf32>, vector<120x128xf32>, vector<160x128xf32> -> vector<160x128xf32>
    %44 = vector.extract_strided_slice %39 {offsets = [0, 0], sizes = [120, 128], strides = [1, 1]} : vector<120x192xf32> to vector<120x128xf32>
    %c1 = arith.constant 1 : index
    %c0_29 = arith.constant 0 : index
    %c0_30 = arith.constant 0 : index
    %45 = vector.load %arg4[%c1, %c0_29, %c0_30] : memref<5x160x120xf32, #tpu.memory_space<vmem>>, vector<1x160x120xf32>
    %46 = vector.shape_cast %45 : vector<1x160x120xf32> to vector<160x120xf32>
    %cst_31 = arith.constant dense<0.000000e+00> : vector<160x128xf32>
    %47 = tpu.matmul %46, %44, %cst_31 {dimension_numbers = #tpu.dot_dimension_numbers<[1], [0], [0], [1], [0, 0, 1, 1], [], []>} : vector<160x120xf32>, vector<120x128xf32>, vector<160x128xf32> -> vector<160x128xf32>
    %48 = arith.addf %43, %47 : vector<160x128xf32>
    %49 = vector.extract_strided_slice %19 {offsets = [0, 32], sizes = [120, 128], strides = [1, 1]} : vector<120x192xf32> to vector<120x128xf32>
    %c2 = arith.constant 2 : index
    %c0_32 = arith.constant 0 : index
    %c0_33 = arith.constant 0 : index
    %50 = vector.load %arg4[%c2, %c0_32, %c0_33] : memref<5x160x120xf32, #tpu.memory_space<vmem>>, vector<1x160x120xf32>
    %51 = vector.shape_cast %50 : vector<1x160x120xf32> to vector<160x120xf32>
    %cst_34 = arith.constant dense<0.000000e+00> : vector<160x128xf32>
    %52 = tpu.matmul %51, %49, %cst_34 {dimension_numbers = #tpu.dot_dimension_numbers<[1], [0], [0], [1], [0, 0, 1, 1], [], []>} : vector<160x120xf32>, vector<120x128xf32>, vector<160x128xf32> -> vector<160x128xf32>
    %53 = arith.addf %48, %52 : vector<160x128xf32>
    %54 = vector.extract_strided_slice %39 {offsets = [0, 32], sizes = [120, 128], strides = [1, 1]} : vector<120x192xf32> to vector<120x128xf32>
    %c3 = arith.constant 3 : index
    %c0_35 = arith.constant 0 : index
    %c0_36 = arith.constant 0 : index
    %55 = vector.load %arg4[%c3, %c0_35, %c0_36] : memref<5x160x120xf32, #tpu.memory_space<vmem>>, vector<1x160x120xf32>
    %56 = vector.shape_cast %55 : vector<1x160x120xf32> to vector<160x120xf32>
    %cst_37 = arith.constant dense<0.000000e+00> : vector<160x128xf32>
    %57 = tpu.matmul %56, %54, %cst_37 {dimension_numbers = #tpu.dot_dimension_numbers<[1], [0], [0], [1], [0, 0, 1, 1], [], []>} : vector<160x120xf32>, vector<120x128xf32>, vector<160x128xf32> -> vector<160x128xf32>
    %58 = arith.addf %53, %57 : vector<160x128xf32>
    %59 = vector.extract_strided_slice %19 {offsets = [0, 64], sizes = [120, 128], strides = [1, 1]} : vector<120x192xf32> to vector<120x128xf32>
    %c4 = arith.constant 4 : index
    %c0_38 = arith.constant 0 : index
    %c0_39 = arith.constant 0 : index
    %60 = vector.load %arg4[%c4, %c0_38, %c0_39] : memref<5x160x120xf32, #tpu.memory_space<vmem>>, vector<1x160x120xf32>
    %61 = vector.shape_cast %60 : vector<1x160x120xf32> to vector<160x120xf32>
    %cst_40 = arith.constant dense<0.000000e+00> : vector<160x128xf32>
    %62 = tpu.matmul %61, %59, %cst_40 {dimension_numbers = #tpu.dot_dimension_numbers<[1], [0], [0], [1], [0, 0, 1, 1], [], []>} : vector<160x120xf32>, vector<120x128xf32>, vector<160x128xf32> -> vector<160x128xf32>
    %63 = arith.addf %58, %62 : vector<160x128xf32>
    %64 = vector.extract_strided_slice %39 {offsets = [0, 0], sizes = [120, 128], strides = [1, 1]} : vector<120x192xf32> to vector<120x128xf32>
    %c0_41 = arith.constant 0 : index
    %c0_42 = arith.constant 0 : index
    %c0_43 = arith.constant 0 : index
    %65 = vector.load %arg4[%c0_41, %c0_42, %c0_43] : memref<5x160x120xf32, #tpu.memory_space<vmem>>, vector<1x160x120xf32>
    %66 = vector.shape_cast %65 : vector<1x160x120xf32> to vector<160x120xf32>
    %cst_44 = arith.constant dense<0.000000e+00> : vector<160x128xf32>
    %67 = tpu.matmul %66, %64, %cst_44 {dimension_numbers = #tpu.dot_dimension_numbers<[1], [0], [0], [1], [0, 0, 1, 1], [], []>} : vector<160x120xf32>, vector<120x128xf32>, vector<160x128xf32> -> vector<160x128xf32>
    %68 = vector.extract_strided_slice %19 {offsets = [0, 32], sizes = [120, 128], strides = [1, 1]} : vector<120x192xf32> to vector<120x128xf32>
    %c1_45 = arith.constant 1 : index
    %c0_46 = arith.constant 0 : index
    %c0_47 = arith.constant 0 : index
    %69 = vector.load %arg4[%c1_45, %c0_46, %c0_47] : memref<5x160x120xf32, #tpu.memory_space<vmem>>, vector<1x160x120xf32>
    %70 = vector.shape_cast %69 : vector<1x160x120xf32> to vector<160x120xf32>
    %cst_48 = arith.constant dense<0.000000e+00> : vector<160x128xf32>
    %71 = tpu.matmul %70, %68, %cst_48 {dimension_numbers = #tpu.dot_dimension_numbers<[1], [0], [0], [1], [0, 0, 1, 1], [], []>} : vector<160x120xf32>, vector<120x128xf32>, vector<160x128xf32> -> vector<160x128xf32>
    %72 = arith.addf %67, %71 : vector<160x128xf32>
    %73 = vector.extract_strided_slice %39 {offsets = [0, 32], sizes = [120, 128], strides = [1, 1]} : vector<120x192xf32> to vector<120x128xf32>
    %c2_49 = arith.constant 2 : index
    %c0_50 = arith.constant 0 : index
    %c0_51 = arith.constant 0 : index
    %74 = vector.load %arg4[%c2_49, %c0_50, %c0_51] : memref<5x160x120xf32, #tpu.memory_space<vmem>>, vector<1x160x120xf32>
    %75 = vector.shape_cast %74 : vector<1x160x120xf32> to vector<160x120xf32>
    %cst_52 = arith.constant dense<0.000000e+00> : vector<160x128xf32>
    %76 = tpu.matmul %75, %73, %cst_52 {dimension_numbers = #tpu.dot_dimension_numbers<[1], [0], [0], [1], [0, 0, 1, 1], [], []>} : vector<160x120xf32>, vector<120x128xf32>, vector<160x128xf32> -> vector<160x128xf32>
    %77 = arith.addf %72, %76 : vector<160x128xf32>
    %78 = vector.extract_strided_slice %19 {offsets = [0, 64], sizes = [120, 128], strides = [1, 1]} : vector<120x192xf32> to vector<120x128xf32>
    %c3_53 = arith.constant 3 : index
    %c0_54 = arith.constant 0 : index
    %c0_55 = arith.constant 0 : index
    %79 = vector.load %arg4[%c3_53, %c0_54, %c0_55] : memref<5x160x120xf32, #tpu.memory_space<vmem>>, vector<1x160x120xf32>
    %80 = vector.shape_cast %79 : vector<1x160x120xf32> to vector<160x120xf32>
    %cst_56 = arith.constant dense<0.000000e+00> : vector<160x128xf32>
    %81 = tpu.matmul %80, %78, %cst_56 {dimension_numbers = #tpu.dot_dimension_numbers<[1], [0], [0], [1], [0, 0, 1, 1], [], []>} : vector<160x120xf32>, vector<120x128xf32>, vector<160x128xf32> -> vector<160x128xf32>
    %82 = arith.addf %77, %81 : vector<160x128xf32>
    %83 = vector.extract_strided_slice %39 {offsets = [0, 64], sizes = [120, 128], strides = [1, 1]} : vector<120x192xf32> to vector<120x128xf32>
    %c4_57 = arith.constant 4 : index
    %c0_58 = arith.constant 0 : index
    %c0_59 = arith.constant 0 : index
    %84 = vector.load %arg4[%c4_57, %c0_58, %c0_59] : memref<5x160x120xf32, #tpu.memory_space<vmem>>, vector<1x160x120xf32>
    %85 = vector.shape_cast %84 : vector<1x160x120xf32> to vector<160x120xf32>
    %cst_60 = arith.constant dense<0.000000e+00> : vector<160x128xf32>
    %86 = tpu.matmul %85, %83, %cst_60 {dimension_numbers = #tpu.dot_dimension_numbers<[1], [0], [0], [1], [0, 0, 1, 1], [], []>} : vector<160x120xf32>, vector<120x128xf32>, vector<160x128xf32> -> vector<160x128xf32>
    %87 = arith.addf %82, %86 : vector<160x128xf32>
    %88 = vector.extract_strided_slice %63 {offsets = [0, 0], sizes = [80, 128], strides = [1, 1]} : vector<160x128xf32> to vector<80x128xf32>
    %89 = vector.extract_strided_slice %63 {offsets = [80, 0], sizes = [80, 128], strides = [1, 1]} : vector<160x128xf32> to vector<80x128xf32>
    %90 = arith.maximumf %88, %89 : vector<80x128xf32>
    %91 = vector.extract_strided_slice %87 {offsets = [0, 0], sizes = [80, 128], strides = [1, 1]} : vector<160x128xf32> to vector<80x128xf32>
    %92 = vector.extract_strided_slice %87 {offsets = [80, 0], sizes = [80, 128], strides = [1, 1]} : vector<160x128xf32> to vector<80x128xf32>
    %93 = arith.maximumf %91, %92 : vector<80x128xf32>
    %94 = arith.maximumf %90, %93 : vector<80x128xf32>
    %c0_61 = arith.constant 0 : index
    %c0_62 = arith.constant 0 : index
    %95 = vector.load %arg5[%c0_61, %c0_62] : memref<80x1xf32, #tpu.memory_space<vmem>>, vector<80x1xf32>
    %96 = vector.broadcast %95 : vector<80x1xf32> to vector<80x128xf32>
    %97 = arith.addf %94, %96 : vector<80x128xf32>
    %cst_63 = arith.constant 0.000000e+00 : f32
    %98 = vector.broadcast %cst_63 : f32 to vector<80x128xf32>
    %99 = arith.maximumf %97, %98 : vector<80x128xf32>
    %100 = tpu.transpose %99, [1, 0] : vector<80x128xf32> -> vector<128x80xf32>
    %101 = vector.extract_strided_slice %100 {offsets = [0, 0], sizes = [32, 80], strides = [1, 1]} : vector<128x80xf32> to vector<32x80xf32>
    %c0_64 = arith.constant 0 : index
    %c0_65 = arith.constant 0 : index
    %c0_66 = arith.constant 0 : index
    %102 = vector.load %arg6[%c0_64, %c0_65, %c0_66] : memref<4x80x128xf32, #tpu.memory_space<vmem>>, vector<1x80x128xf32>
    %103 = vector.shape_cast %102 : vector<1x80x128xf32> to vector<80x128xf32>
    %cst_67 = arith.constant dense<0.000000e+00> : vector<32x128xf32>
    %104 = tpu.matmul %101, %103, %cst_67 {dimension_numbers = #tpu.dot_dimension_numbers<[1], [0], [0], [1], [0, 0, 1, 1], [], []>} : vector<32x80xf32>, vector<80x128xf32>, vector<32x128xf32> -> vector<32x128xf32>
    %105 = vector.extract_strided_slice %100 {offsets = [32, 0], sizes = [32, 80], strides = [1, 1]} : vector<128x80xf32> to vector<32x80xf32>
    %c1_68 = arith.constant 1 : index
    %c0_69 = arith.constant 0 : index
    %c0_70 = arith.constant 0 : index
    %106 = vector.load %arg6[%c1_68, %c0_69, %c0_70] : memref<4x80x128xf32, #tpu.memory_space<vmem>>, vector<1x80x128xf32>
    %107 = vector.shape_cast %106 : vector<1x80x128xf32> to vector<80x128xf32>
    %cst_71 = arith.constant dense<0.000000e+00> : vector<32x128xf32>
    %108 = tpu.matmul %105, %107, %cst_71 {dimension_numbers = #tpu.dot_dimension_numbers<[1], [0], [0], [1], [0, 0, 1, 1], [], []>} : vector<32x80xf32>, vector<80x128xf32>, vector<32x128xf32> -> vector<32x128xf32>
    %109 = arith.addf %104, %108 : vector<32x128xf32>
    %110 = vector.extract_strided_slice %100 {offsets = [64, 0], sizes = [32, 80], strides = [1, 1]} : vector<128x80xf32> to vector<32x80xf32>
    %c2_72 = arith.constant 2 : index
    %c0_73 = arith.constant 0 : index
    %c0_74 = arith.constant 0 : index
    %111 = vector.load %arg6[%c2_72, %c0_73, %c0_74] : memref<4x80x128xf32, #tpu.memory_space<vmem>>, vector<1x80x128xf32>
    %112 = vector.shape_cast %111 : vector<1x80x128xf32> to vector<80x128xf32>
    %cst_75 = arith.constant dense<0.000000e+00> : vector<32x128xf32>
    %113 = tpu.matmul %110, %112, %cst_75 {dimension_numbers = #tpu.dot_dimension_numbers<[1], [0], [0], [1], [0, 0, 1, 1], [], []>} : vector<32x80xf32>, vector<80x128xf32>, vector<32x128xf32> -> vector<32x128xf32>
    %114 = arith.addf %109, %113 : vector<32x128xf32>
    %115 = vector.extract_strided_slice %100 {offsets = [96, 0], sizes = [32, 80], strides = [1, 1]} : vector<128x80xf32> to vector<32x80xf32>
    %c3_76 = arith.constant 3 : index
    %c0_77 = arith.constant 0 : index
    %c0_78 = arith.constant 0 : index
    %116 = vector.load %arg6[%c3_76, %c0_77, %c0_78] : memref<4x80x128xf32, #tpu.memory_space<vmem>>, vector<1x80x128xf32>
    %117 = vector.shape_cast %116 : vector<1x80x128xf32> to vector<80x128xf32>
    %cst_79 = arith.constant dense<0.000000e+00> : vector<32x128xf32>
    %118 = tpu.matmul %115, %117, %cst_79 {dimension_numbers = #tpu.dot_dimension_numbers<[1], [0], [0], [1], [0, 0, 1, 1], [], []>} : vector<32x80xf32>, vector<80x128xf32>, vector<32x128xf32> -> vector<32x128xf32>
    %119 = arith.addf %114, %118 : vector<32x128xf32>
    %c0_80 = arith.constant 0 : index
    %c0_81 = arith.constant 0 : index
    %120 = vector.load %arg7[%c0_80, %c0_81] : memref<1x128xf32, #tpu.memory_space<vmem>>, vector<1x128xf32>
    %121 = vector.broadcast %120 : vector<1x128xf32> to vector<32x128xf32>
    %122 = arith.addf %119, %121 : vector<32x128xf32>
    %cst_82 = arith.constant 0.000000e+00 : f32
    %123 = vector.broadcast %cst_82 : f32 to vector<32x128xf32>
    %124 = arith.maximumf %122, %123 : vector<32x128xf32>
    %c0_83 = arith.constant 0 : index
    %c0_84 = arith.constant 0 : index
    %125 = vector.load %arg8[%c0_83, %c0_84] : memref<128x128xf32, #tpu.memory_space<vmem>>, vector<128x128xf32>
    %cst_85 = arith.constant dense<0.000000e+00> : vector<32x128xf32>
    %126 = tpu.matmul %124, %125, %cst_85 {dimension_numbers = #tpu.dot_dimension_numbers<[1], [0], [0], [1], [0, 0, 1, 1], [], []>} : vector<32x128xf32>, vector<128x128xf32>, vector<32x128xf32> -> vector<32x128xf32>
    %c0_86 = arith.constant 0 : index
    %c0_87 = arith.constant 0 : index
    %127 = vector.load %arg9[%c0_86, %c0_87] : memref<1x128xf32, #tpu.memory_space<vmem>>, vector<1x128xf32>
    %128 = vector.broadcast %127 : vector<1x128xf32> to vector<32x128xf32>
    %129 = arith.addf %126, %128 : vector<32x128xf32>
    %130 = tpu.iota {dimensions = array<i32: 1>} : vector<32x128xi32>
    %c10_i32 = arith.constant 10 : i32
    %131 = vector.broadcast %c10_i32 : i32 to vector<32x128xi32>
    %132 = arith.cmpi slt, %130, %131 : vector<32x128xi32>
    %cst_88 = arith.constant -1.000000e+30 : f32
    %133 = vector.broadcast %cst_88 : f32 to vector<32x128xf32>
    %134 = arith.select %132, %129, %133 : vector<32x128xi1>, vector<32x128xf32>
    %cst_89 = arith.constant dense<0xFF800000> : vector<32xf32>
    %135 = vector.multi_reduction <maximumf>, %134, %cst_89 [1] : vector<32x128xf32> to vector<32xf32>
    %136 = vector.shape_cast %135 : vector<32xf32> to vector<32x1xf32>
    %137 = vector.broadcast %136 : vector<32x1xf32> to vector<32x128xf32>
    %138 = arith.subf %134, %137 : vector<32x128xf32>
    %139 = math.exp %138 : vector<32x128xf32>
    %cst_90 = arith.constant dense<0.000000e+00> : vector<32xf32>
    %140 = vector.multi_reduction <add>, %139, %cst_90 [1] : vector<32x128xf32> to vector<32xf32>
    %141 = vector.shape_cast %140 : vector<32xf32> to vector<32x1xf32>
    %142 = math.log %141 : vector<32x1xf32>
    %143 = arith.addf %142, %136 : vector<32x1xf32>
    %144 = vector.broadcast %143 : vector<32x1xf32> to vector<32x128xf32>
    %145 = arith.subf %134, %144 : vector<32x128xf32>
    %c0_91 = arith.constant 0 : index
    %c0_92 = arith.constant 0 : index
    %146 = vector.load %arg10[%c0_91, %c0_92] : memref<32x128xf32, #tpu.memory_space<vmem>>, vector<32x128xf32>
    tpu.vector_store %arg10[%c0_91, %c0_92], %145 {strides = array<i32>} : memref<32x128xf32, #tpu.memory_space<vmem>>, vector<32x128xf32>,
    return
  }
  func.func @transform_0(%arg0: i32) -> (i32, i32, i32) {
    %c0_i32 = arith.constant 0 : i32
    %c0_i32_0 = arith.constant 0 : i32
    %c0_i32_1 = arith.constant 0 : i32
    return %arg0, %c0_i32, %c0_i32_0 : i32, i32, i32
  }
  func.func @transform_1(%arg0: i32) -> (i32, i32) {
    %c0_i32 = arith.constant 0 : i32
    %c0_i32_0 = arith.constant 0 : i32
    %c0_i32_1 = arith.constant 0 : i32
    return %c0_i32, %c0_i32_0 : i32, i32
  }
  func.func @transform_2(%arg0: i32) -> (i32, i32) {
    %c0_i32 = arith.constant 0 : i32
    %c0_i32_0 = arith.constant 0 : i32
    %c0_i32_1 = arith.constant 0 : i32
    return %c0_i32, %c0_i32_0 : i32, i32
  }
  func.func @transform_3(%arg0: i32) -> (i32, i32, i32) {
    %c0_i32 = arith.constant 0 : i32
    %c0_i32_0 = arith.constant 0 : i32
    %c0_i32_1 = arith.constant 0 : i32
    %c0_i32_2 = arith.constant 0 : i32
    return %c0_i32, %c0_i32_0, %c0_i32_1 : i32, i32, i32
  }
  func.func @transform_4(%arg0: i32) -> (i32, i32) {
    %c0_i32 = arith.constant 0 : i32
    %c0_i32_0 = arith.constant 0 : i32
    %c0_i32_1 = arith.constant 0 : i32
    return %c0_i32, %c0_i32_0 : i32, i32
  }
  func.func @transform_5(%arg0: i32) -> (i32, i32, i32) {
    %c0_i32 = arith.constant 0 : i32
    %c0_i32_0 = arith.constant 0 : i32
    %c0_i32_1 = arith.constant 0 : i32
    %c0_i32_2 = arith.constant 0 : i32
    return %c0_i32, %c0_i32_0, %c0_i32_1 : i32, i32, i32
  }
  func.func @transform_6(%arg0: i32) -> (i32, i32) {
    %c0_i32 = arith.constant 0 : i32
    %c0_i32_0 = arith.constant 0 : i32
    %c0_i32_1 = arith.constant 0 : i32
    return %c0_i32, %c0_i32_0 : i32, i32
  }
  func.func @transform_7(%arg0: i32) -> (i32, i32) {
    %c0_i32 = arith.constant 0 : i32
    %c0_i32_0 = arith.constant 0 : i32
    %c0_i32_1 = arith.constant 0 : i32
    return %c0_i32, %c0_i32_0 : i32, i32
  }
  func.func @transform_8(%arg0: i32) -> (i32, i32) {
    %c0_i32 = arith.constant 0 : i32
    %c0_i32_0 = arith.constant 0 : i32
    %c0_i32_1 = arith.constant 0 : i32
    return %c0_i32, %c0_i32_0 : i32, i32
  }
  func.func @transform_9(%arg0: i32) -> (i32, i32) {
    %c0_i32 = arith.constant 0 : i32
    %c0_i32_0 = arith.constant 0 : i32
    return %arg0, %c0_i32 : i32, i32
  }
}

</mosaic_0001>

<llo_original>
// kernel: net_forward.1
$region0: #{net_forward.1}
  #allocation0 [shape = 'u32[]', space=smem, size = 0x4, offset = 0x4, fixed_abs, tag = 'smem constant byte address 0x4 - core index']
  #allocation1 [shape = 'u32[144,128]{1,0:T(1,128)}', space=vmem, size = 0x12000, scoped, tag = 'internal scratch']
  %s0 = inlined_call_operand.vmem [shape: f32[1,256,192], index: 0, kind: input, shape index: {}]
  %s1 = inlined_call_operand.vmem [shape: f32[240,160], index: 1, kind: input, shape index: {}]
  %s2 = inlined_call_operand.vmem [shape: f32[120,1], index: 2, kind: input, shape index: {}]
  %s3 = inlined_call_operand.vmem [shape: f32[5,160,120], index: 3, kind: input, shape index: {}]
  %s4 = inlined_call_operand.vmem [shape: f32[80,1], index: 4, kind: input, shape index: {}]
  %s5 = inlined_call_operand.vmem [shape: f32[4,80,128], index: 5, kind: input, shape index: {}]
  %s6 = inlined_call_operand.vmem [shape: f32[1,128], index: 6, kind: input, shape index: {}]
  %s7 = inlined_call_operand.vmem [shape: f32[128,128], index: 7, kind: input, shape index: {}]
  %s8 = inlined_call_operand.vmem [shape: f32[1,128], index: 8, kind: input, shape index: {}]
  %s9 = inlined_call_operand.vmem [shape: f32[32,128], index: 9, kind: output, shape index: {}]
  %s10 = sld [smem:[#allocation0]]
  $region46: #{net_forward.1} parent=0
    _
  %s12 = ssub.s32 1, %s10
  %s13 = scalar_select 0, %s12, %s10
  // Predicated region
  $region2: #{net_forward.1} parent=0 // pred_check
    _
  $region3: #{net_forward.1} parent=0 // pred_check_branch
    %15 = sbr.rel (0) target = $region5
  $region4: #{net_forward.1} parent=0 // pred_region
    _
  $region5: #{net_forward.1} parent=0 // pred_fallthru
    _
  // Predicated region
  $region6: #{net_forward.1} parent=0 // pred_check
    _
  $region7: #{net_forward.1} parent=0 // pred_check_branch
    %17 = sbr.rel (0) target = $region9
  $region8: #{net_forward.1} parent=0 // pred_region
    _
  $region9: #{net_forward.1} parent=0 // pred_fallthru
    _
  // Predicated region
  $region10: #{net_forward.1} parent=0 // pred_check
    _
  $region11: #{net_forward.1} parent=0 // pred_check_branch
    %19 = sbr.rel (0) target = $region13
  $region12: #{net_forward.1} parent=0 // pred_region
    _
  $region13: #{net_forward.1} parent=0 // pred_fallthru
    _
  // Predicated region
  $region14: #{net_forward.1} parent=0 // pred_check
    _
  $region15: #{net_forward.1} parent=0 // pred_check_branch
    %21 = sbr.rel (0) target = $region17
  $region16: #{net_forward.1} parent=0 // pred_region
    _
  $region17: #{net_forward.1} parent=0 // pred_fallthru
    _
  // Predicated region
  $region18: #{net_forward.1} parent=0 // pred_check
    _
  $region19: #{net_forward.1} parent=0 // pred_check_branch
    %23 = sbr.rel (0) target = $region21
  $region20: #{net_forward.1} parent=0 // pred_region
    _
  $region21: #{net_forward.1} parent=0 // pred_fallthru
    _
  // Predicated region
  $region22: #{net_forward.1} parent=0 // pred_check
    _
  $region23: #{net_forward.1} parent=0 // pred_check_branch
    %25 = sbr.rel (0) target = $region25
  $region24: #{net_forward.1} parent=0 // pred_region
    _
  $region25: #{net_forward.1} parent=0 // pred_fallthru
    _
  // Predicated region
  $region26: #{net_forward.1} parent=0 // pred_check
    _
  $region27: #{net_forward.1} parent=0 // pred_check_branch
    %27 = sbr.rel (0) target = $region29
  $region28: #{net_forward.1} parent=0 // pred_region
    _
  $region29: #{net_forward.1} parent=0 // pred_fallthru
    _
  // Predicated region
  $region30: #{net_forward.1} parent=0 // pred_check
    _
  $region31: #{net_forward.1} parent=0 // pred_check_branch
    %29 = sbr.rel (0) target = $region33
  $region32: #{net_forward.1} parent=0 // pred_region
    _
  $region33: #{net_forward.1} parent=0 // pred_fallthru
    _
  // Predicated region
  $region34: #{net_forward.1} parent=0 // pred_check
    _
  $region35: #{net_forward.1} parent=0 // pred_check_branch
    %31 = sbr.rel (0) target = $region37
  $region36: #{net_forward.1} parent=0 // pred_region
    _
  $region37: #{net_forward.1} parent=0 // pred_fallthru
    _
  %v32 = vld [vmem:[%s0] sm:$0xff]
  %v33 = vld [vmem:[%s0 + $0x8] sm:$0xff]
  %v34 = vld [vmem:[%s0 + $0x10] sm:$0xff]
  %v35 = vld [vmem:[%s0 + $0x18] sm:$0xff]
  %v36 = vld [vmem:[%s0 + $0x20] sm:$0xff]
  %v37 = vld [vmem:[%s0 + $0x28] sm:$0xff]
  %v38 = vld [vmem:[%s0 + $0x30] sm:$0xff]
  %v39 = vld [vmem:[%s0 + $0x38] sm:$0xff]
  %v40 = vld [vmem:[%s0 + $0x40] sm:$0xff]
  %v41 = vld [vmem:[%s0 + $0x48] sm:$0xff]
  %v42 = vld [vmem:[%s0 + $0x50] sm:$0xff]
  %v43 = vld [vmem:[%s0 + $0x58] sm:$0xff]
  %v44 = vld [vmem:[%s0 + $0x60] sm:$0xff]
  %v45 = vld [vmem:[%s0 + $0x68] sm:$0xff]
  %v46 = vld [vmem:[%s0 + $0x70] sm:$0xff]
  %v47 = vld [vmem:[%s0 + $0x78] sm:$0xff]
  %v48 = vld [vmem:[%s0 + $0x80] sm:$0xff]
  %v49 = vld [vmem:[%s0 + $0x88] sm:$0xff]
  %v50 = vld [vmem:[%s0 + $0x90] sm:$0xff]
  %v51 = vld [vmem:[%s0 + $0x98] sm:$0xff]
  %v52 = vld [vmem:[%s0 + $0xa0] sm:$0xff]
  %v53 = vld [vmem:[%s0 + $0xa8] sm:$0xff]
  %v54 = vld [vmem:[%s0 + $0xb0] sm:$0xff]
  %v55 = vld [vmem:[%s0 + $0xb8] sm:$0xff]
  %v56 = vld [vmem:[%s0 + $0xc0] sm:$0xff]
  %v57 = vld [vmem:[%s0 + $0xc8] sm:$0xff]
  %v58 = vld [vmem:[%s0 + $0xd0] sm:$0xff]
  %v59 = vld [vmem:[%s0 + $0xd8] sm:$0xff]
  %v60 = vld [vmem:[%s0 + $0xe0] sm:$0xff]
  %v61 = vld [vmem:[%s0 + $0xe8] sm:$0xff]
  %v62 = vld [vmem:[%s0 + $0xf0] sm:$0xff]
  %v63 = vld [vmem:[%s0 + $0xf8] sm:$0xff]
  %v64 = vld [vmem:[%s0 + $0x100] sm:$0xff]
  %v65 = vld [vmem:[%s0 + $0x108] sm:$0xff]
  %v66 = vld [vmem:[%s0 + $0x110] sm:$0xff]
  %v67 = vld [vmem:[%s0 + $0x118] sm:$0xff]
  %v68 = vld [vmem:[%s0 + $0x120] sm:$0xff]
  %v69 = vld [vmem:[%s0 + $0x128] sm:$0xff]
  %v70 = vld [vmem:[%s0 + $0x130] sm:$0xff]
  %v71 = vld [vmem:[%s0 + $0x138] sm:$0xff]
  %v72 = vld [vmem:[%s1] sm:$0xff]
  %v73 = vld [vmem:[%s1 + $0x8] sm:$0xff]
  %v74 = vld [vmem:[%s1 + $0x10] sm:$0xff]
  %v75 = vld [vmem:[%s1 + $0x18] sm:$0xff]
  %v76 = vld [vmem:[%s1 + $0x20] sm:$0xff]
  %v77 = vld [vmem:[%s1 + $0x28] sm:$0xff]
  %v78 = vld [vmem:[%s1 + $0x30] sm:$0xff]
  %v79 = vld [vmem:[%s1 + $0x38] sm:$0xff]
  %v80 = vld [vmem:[%s1 + $0x40] sm:$0xff]
  %v81 = vld [vmem:[%s1 + $0x48] sm:$0xff]
  %v82 = vld [vmem:[%s1 + $0x50] sm:$0xff]
  %v83 = vld [vmem:[%s1 + $0x58] sm:$0xff]
  %v84 = vld [vmem:[%s1 + $0x60] sm:$0xff]
  %v85 = vld [vmem:[%s1 + $0x68] sm:$0xff]
  %v86 = vld [vmem:[%s1 + $0x70] sm:$0xff]
  %v87 = vld [vmem:[%s1 + $0x78] sm:$0xff]
  %v88 = vld [vmem:[%s1 + $0x80] sm:$0xff]
  %v89 = vld [vmem:[%s1 + $0x88] sm:$0xff]
  %v90 = vld [vmem:[%s1 + $0x90] sm:$0xff]
  %v91 = vld [vmem:[%s1 + $0x98] sm:$0xff]
  %v92 = vld [vmem:[%s1 + $0xa0] sm:$0xff]
  %v93 = vld [vmem:[%s1 + $0xa8] sm:$0xff]
  %v94 = vld [vmem:[%s1 + $0xb0] sm:$0xff]
  %v95 = vld [vmem:[%s1 + $0xb8] sm:$0xff]
  %v96 = vld [vmem:[%s1 + $0xc0] sm:$0xff]
  %v97 = vld [vmem:[%s1 + $0xc8] sm:$0xff]
  %v98 = vld [vmem:[%s1 + $0xd0] sm:$0xff]
  %v99 = vld [vmem:[%s1 + $0xd8] sm:$0xff]
  %v100 = vld [vmem:[%s1 + $0xe0] sm:$0xff]
  %v101 = vld [vmem:[%s1 + $0xe8] sm:$0xff]
  %v102 = vld [vmem:[%s1 + $0xf0] sm:$0xff]
  %v103 = vld [vmem:[%s1 + $0xf8] sm:$0xff]
  %v104 = vld [vmem:[%s1 + $0x100] sm:$0xff]
  %v105 = vld [vmem:[%s1 + $0x108] sm:$0xff]
  %v106 = vld [vmem:[%s1 + $0x110] sm:$0xff]
  %v107 = vld [vmem:[%s1 + $0x118] sm:$0xff]
  %v108 = vld [vmem:[%s1 + $0x120] sm:$0xff]
  %v109 = vld [vmem:[%s1 + $0x128] sm:$0xff]
  %v110 = vld [vmem:[%s1 + $0x130] sm:$0xff]
  %v111 = vld [vmem:[%s1 + $0x138] sm:$0xff]
  %v112 = vld [vmem:[%s1 + $0x140] sm:$0xff]
  %v113 = vld [vmem:[%s1 + $0x148] sm:$0xff]
  %v114 = vld [vmem:[%s1 + $0x150] sm:$0xff]
  %v115 = vld [vmem:[%s1 + $0x158] sm:$0xff]
  %v116 = vld [vmem:[%s1 + $0x160] sm:$0xff]
  %v117 = vld [vmem:[%s1 + $0x168] sm:$0xff]
  %v118 = vld [vmem:[%s1 + $0x170] sm:$0xff]
  %v119 = vld [vmem:[%s1 + $0x178] sm:$0xff]
  %v120 = vld [vmem:[%s1 + $0x180] sm:$0xff]
  %v121 = vld [vmem:[%s1 + $0x188] sm:$0xff]
  %v122 = vld [vmem:[%s1 + $0x190] sm:$0xff]
  %v123 = vld [vmem:[%s1 + $0x198] sm:$0xff]
  %v124 = vld [vmem:[%s1 + $0x1a0] sm:$0xff]
  %v125 = vld [vmem:[%s1 + $0x1a8] sm:$0xff]
  %v126 = vld [vmem:[%s1 + $0x1b0] sm:$0xff]
  %v127 = vld [vmem:[%s1 + $0x1b8] sm:$0xff]
  %v128 = vld [vmem:[%s1 + $0x1c0] sm:$0xff]
  %v129 = vld [vmem:[%s1 + $0x1c8] sm:$0xff]
  %v130 = vld [vmem:[%s1 + $0x1d0] sm:$0xff]
  %v131 = vld [vmem:[%s1 + $0x1d8] sm:$0xff]
  %vm132 = vcmask 261120
  %v134 = vsel %vm132, %v73, 0
  %v137 = vsel %vm132, %v75, 0
  %v140 = vsel %vm132, %v77, 0
  %v143 = vsel %vm132, %v79, 0
  %v146 = vsel %vm132, %v81, 0
  %v149 = vsel %vm132, %v83, 0
  %v152 = vsel %vm132, %v85, 0
  %v155 = vsel %vm132, %v87, 0
  %v158 = vsel %vm132, %v89, 0
  %v161 = vsel %vm132, %v91, 0
  %v164 = vsel %vm132, %v93, 0
  %v167 = vsel %vm132, %v95, 0
  %v170 = vsel %vm132, %v97, 0
  %v173 = vsel %vm132, %v99, 0
  %v176 = vsel %vm132, %v101, 0
  %v179 = vsel %vm132, %v103, 0
  %v182 = vsel %vm132, %v105, 0
  %v185 = vsel %vm132, %v107, 0
  %v188 = vsel %vm132, %v109, 0
  %v191 = vsel %vm132, %v111, 0
  %v194 = vsel %vm132, %v113, 0
  %v197 = vsel %vm132, %v115, 0
  %v200 = vsel %vm132, %v117, 0
  %v203 = vsel %vm132, %v119, 0
  %v206 = vsel %vm132, %v121, 0
  %v209 = vsel %vm132, %v123, 0
  %v212 = vsel %vm132, %v125, 0
  %v215 = vsel %vm132, %v127, 0
  %v218 = vsel %vm132, %v129, 0
  %v221 = vsel %vm132, %v131, 0
  %223 = vmatprep.subr.mxu0 %v33
  %224 = vmatpush1.msra.mxu0 %v32
  %225 = vmatprep.subr.mxu0 %v35
  %226 = vmatpush1.msra.mxu0 %v34
  %227 = vmatprep.subr.mxu0 %v37
  %228 = vmatpush1.msra.mxu0 %v36
  %229 = vmatprep.subr.mxu0 %v39
  %230 = vmatpush1.msra.mxu0 %v38
  %231 = vmatprep.subr.mxu0 %v41
  %232 = vmatpush1.msra.mxu0 %v40
  %233 = vmatprep.subr.mxu0 %v43
  %234 = vmatpush1.msra.mxu0 %v42
  %235 = vmatprep.subr.mxu0 %v45
  %236 = vmatpush1.msra.mxu0 %v44
  %237 = vmatprep.subr.mxu0 %v47
  %238 = vmatpush1.msra.mxu0 %v46
  %239 = vmatprep.subr.mxu0 %v49
  %240 = vmatpush1.msra.mxu0 %v48
  %241 = vmatprep.subr.mxu0 %v51
  %242 = vmatpush1.msra.mxu0 %v50
  %243 = vmatprep.subr.mxu0 %v53
  %244 = vmatpush1.msra.mxu0 %v52
  %245 = vmatprep.subr.mxu0 %v55
  %246 = vmatpush1.msra.mxu0 %v54
  %247 = vmatprep.subr.mxu0 %v57
  %248 = vmatpush1.msra.mxu0 %v56
  %249 = vmatprep.subr.mxu0 %v59
  %250 = vmatpush1.msra.mxu0 %v58
  %251 = vmatprep.subr.mxu0 %v61
  %252 = vmatpush1.msra.mxu0 %v60
  %253 = vmatprep.subr.mxu0 %v63
  %254 = vmatpush1.msra.mxu0 %v62
  %255 = vmatprep.subr.mxu0 %v65
  %256 = vmatpush1.msra.mxu0 %v64
  %257 = vmatprep.subr.mxu0 %v67
  %258 = vmatpush1.msra.mxu0 %v66
  %259 = vmatprep.subr.mxu0 %v69
  %260 = vmatpush1.msra.mxu0 %v68
  %261 = vmatprep.subr.mxu0 %v71
  %262 = vmatpush1.msra.mxu0 %v70
  %263 = vmatprep.subr.mxu0 0.0
  %264 = vmatpush1.msra.mxu0 0.0
  %265 = vmatprep.subr.mxu0 0.0
  %266 = vmatpush1.msra.mxu0 0.0
  %267 = vmatprep.subr.mxu0 0.0
  %268 = vmatpush1.msra.mxu0 0.0
  %269 = vmatprep.subr.mxu0 0.0
  %270 = vmatpush1.msra.mxu0 0.0
  %271 = vmatprep.subr.mxu0 0.0
  %272 = vmatpush1.msra.mxu0 0.0
  %273 = vmatprep.subr.mxu0 0.0
  %274 = vmatpush1.msra.mxu0 0.0
  %275 = vmatprep.subr.mxu0 0.0
  %276 = vmatpush1.msra.mxu0 0.0
  %277 = vmatprep.subr.mxu0 0.0
  %278 = vmatpush1.msra.mxu0 0.0
  %279 = vmatprep.subr.mxu0 0.0
  %280 = vmatpush1.msra.mxu0 0.0
  %281 = vmatprep.subr.mxu0 0.0
  %282 = vmatpush1.msra.mxu0 0.0
  %283 = vmatprep.subr.mxu0 0.0
  %284 = vmatpush1.msra.mxu0 0.0
  %285 = vmatprep.subr.mxu0 0.0
  %286 = vmatpush1.msra.mxu0 0.0
  %287 = vmatprep.mubr.f32.mxu0 %v134
  %288 = vmatmul.mubr.f32.gmra.mrb[0].mxu0 %v72
  %v289 = vpop.f32.mrb[0].mxu0
  %v290 = vadd.f32 0.0, %v289
  %v291 = vpop.f32.mrb[0].mxu0
  %v292 = vadd.f32 0.0, %v291
  %293 = vmatprep.mubr.f32.mxu0 %v137
  %294 = vmatmul.mubr.f32.gmra.mrb[0].mxu0 %v74
  %v295 = vpop.f32.mrb[0].mxu0
  %v296 = vadd.f32 0.0, %v295
  %v297 = vpop.f32.mrb[0].mxu0
  %v298 = vadd.f32 0.0, %v297
  %299 = vmatprep.mubr.f32.mxu0 %v140
  %300 = vmatmul.mubr.f32.gmra.mrb[0].mxu0 %v76
  %v301 = vpop.f32.mrb[0].mxu0
  %v302 = vadd.f32 0.0, %v301
  %v303 = vpop.f32.mrb[0].mxu0
  %v304 = vadd.f32 0.0, %v303
  %305 = vmatprep.mubr.f32.mxu0 %v143
  %306 = vmatmul.mubr.f32.gmra.mrb[0].mxu0 %v78
  %v307 = vpop.f32.mrb[0].mxu0
  %v308 = vadd.f32 0.0, %v307
  %v309 = vpop.f32.mrb[0].mxu0
  %v310 = vadd.f32 0.0, %v309
  %311 = vmatprep.mubr.f32.mxu0 %v146
  %312 = vmatmul.mubr.f32.gmra.mrb[0].mxu0 %v80
  %v313 = vpop.f32.mrb[0].mxu0
  %v314 = vadd.f32 0.0, %v313
  %v315 = vpop.f32.mrb[0].mxu0
  %v316 = vadd.f32 0.0, %v315
  %317 = vmatprep.mubr.f32.mxu0 %v149
  %318 = vmatmul.mubr.f32.gmra.mrb[0].mxu0 %v82
  %v319 = vpop.f32.mrb[0].mxu0
  %v320 = vadd.f32 0.0, %v319
  %v321 = vpop.f32.mrb[0].mxu0
  %v322 = vadd.f32 0.0, %v321
  %323 = vmatprep.mubr.f32.mxu0 %v152
  %324 = vmatmul.mubr.f32.gmra.mrb[0].mxu0 %v84
  %v325 = vpop.f32.mrb[0].mxu0
  %v326 = vadd.f32 0.0, %v325
  %v327 = vpop.f32.mrb[0].mxu0
  %v328 = vadd.f32 0.0, %v327
  %329 = vmatprep.mubr.f32.mxu0 %v155
  %330 = vmatmul.mubr.f32.gmra.mrb[0].mxu0 %v86
  %v331 = vpop.f32.mrb[0].mxu0
  %v332 = vadd.f32 0.0, %v331
  %v333 = vpop.f32.mrb[0].mxu0
  %v334 = vadd.f32 0.0, %v333
  %335 = vmatprep.mubr.f32.mxu0 %v158
  %336 = vmatmul.mubr.f32.gmra.mrb[0].mxu0 %v88
  %v337 = vpop.f32.mrb[0].mxu0
  %v338 = vadd.f32 0.0, %v337
  %v339 = vpop.f32.mrb[0].mxu0
  %v340 = vadd.f32 0.0, %v339
  %341 = vmatprep.mubr.f32.mxu0 %v161
  %342 = vmatmul.mubr.f32.gmra.mrb[0].mxu0 %v90
  %v343 = vpop.f32.mrb[0].mxu0
  %v344 = vadd.f32 0.0, %v343
  %v345 = vpop.f32.mrb[0].mxu0
  %v346 = vadd.f32 0.0, %v345
  %347 = vmatprep.mubr.f32.mxu0 %v164
  %348 = vmatmul.mubr.f32.gmra.mrb[0].mxu0 %v92
  %v349 = vpop.f32.mrb[0].mxu0
  %v350 = vadd.f32 0.0, %v349
  %v351 = vpop.f32.mrb[0].mxu0
  %v352 = vadd.f32 0.0, %v351
  %353 = vmatprep.mubr.f32.mxu0 %v167
  %354 = vmatmul.mubr.f32.gmra.mrb[0].mxu0 %v94
  %v355 = vpop.f32.mrb[0].mxu0
  %v356 = vadd.f32 0.0, %v355
  %v357 = vpop.f32.mrb[0].mxu0
  %v358 = vadd.f32 0.0, %v357
  %359 = vmatprep.mubr.f32.mxu0 %v170
  %360 = vmatmul.mubr.f32.gmra.mrb[0].mxu0 %v96
  %v361 = vpop.f32.mrb[0].mxu0
  %v362 = vadd.f32 0.0, %v361
  %v363 = vpop.f32.mrb[0].mxu0
  %v364 = vadd.f32 0.0, %v363
  %365 = vmatprep.mubr.f32.mxu0 %v173
  %366 = vmatmul.mubr.f32.gmra.mrb[0].mxu0 %v98
  %v367 = vpop.f32.mrb[0].mxu0
  %v368 = vadd.f32 0.0, %v367
  %v369 = vpop.f32.mrb[0].mxu0
  %v370 = vadd.f32 0.0, %v369
  %371 = vmatprep.mubr.f32.mxu0 %v176
  %372 = vmatmul.mubr.f32.gmra.mrb[0].mxu0 %v100
  %v373 = vpop.f32.mrb[0].mxu0
  %v374 = vadd.f32 0.0, %v373
  %v375 = vpop.f32.mrb[0].mxu0
  %v376 = vadd.f32 0.0, %v375
  %377 = vmatprep.mubr.f32.mxu0 %v179
  %378 = vmatmul.mubr.f32.gmra.mrb[0].mxu0 %v102
  %v379 = vpop.f32.mrb[0].mxu0
  %v380 = vadd.f32 0.0, %v379
  %v381 = vpop.f32.mrb[0].mxu0
  %v382 = vadd.f32 0.0, %v381
  %383 = vmatprep.mubr.f32.mxu0 %v182
  %384 = vmatmul.mubr.f32.gmra.mrb[0].mxu0 %v104
  %v385 = vpop.f32.mrb[0].mxu0
  %v386 = vadd.f32 0.0, %v385
  %v387 = vpop.f32.mrb[0].mxu0
  %v388 = vadd.f32 0.0, %v387
  %389 = vmatprep.mubr.f32.mxu0 %v185
  %390 = vmatmul.mubr.f32.gmra.mrb[0].mxu0 %v106
  %v391 = vpop.f32.mrb[0].mxu0
  %v392 = vadd.f32 0.0, %v391
  %v393 = vpop.f32.mrb[0].mxu0
  %v394 = vadd.f32 0.0, %v393
  %395 = vmatprep.mubr.f32.mxu0 %v188
  %396 = vmatmul.mubr.f32.gmra.mrb[0].mxu0 %v108
  %v397 = vpop.f32.mrb[0].mxu0
  %v398 = vadd.f32 0.0, %v397
  %v399 = vpop.f32.mrb[0].mxu0
  %v400 = vadd.f32 0.0, %v399
  %401 = vmatprep.mubr.f32.mxu0 %v191
  %402 = vmatmul.mubr.f32.gmra.mrb[0].mxu0 %v110
  %v403 = vpop.f32.mrb[0].mxu0
  %v404 = vadd.f32 0.0, %v403
  %v405 = vpop.f32.mrb[0].mxu0
  %v406 = vadd.f32 0.0, %v405
  %407 = vmatprep.mubr.f32.mxu0 %v194
  %408 = vmatmul.mubr.f32.gmra.mrb[0].mxu0 %v112
  %v409 = vpop.f32.mrb[0].mxu0
  %v410 = vadd.f32 0.0, %v409
  %v411 = vpop.f32.mrb[0].mxu0
  %v412 = vadd.f32 0.0, %v411
  %413 = vmatprep.mubr.f32.mxu0 %v197
  %414 = vmatmul.mubr.f32.gmra.mrb[0].mxu0 %v114
  %v415 = vpop.f32.mrb[0].mxu0
  %v416 = vadd.f32 0.0, %v415
  %v417 = vpop.f32.mrb[0].mxu0
  %v418 = vadd.f32 0.0, %v417
  %419 = vmatprep.mubr.f32.mxu0 %v200
  %420 = vmatmul.mubr.f32.gmra.mrb[0].mxu0 %v116
  %v421 = vpop.f32.mrb[0].mxu0
  %v422 = vadd.f32 0.0, %v421
  %v423 = vpop.f32.mrb[0].mxu0
  %v424 = vadd.f32 0.0, %v423
  %425 = vmatprep.mubr.f32.mxu0 %v203
  %426 = vmatmul.mubr.f32.gmra.mrb[0].mxu0 %v118
  %v427 = vpop.f32.mrb[0].mxu0
  %v428 = vadd.f32 0.0, %v427
  %v429 = vpop.f32.mrb[0].mxu0
  %v430 = vadd.f32 0.0, %v429
  %431 = vmatprep.mubr.f32.mxu0 %v206
  %432 = vmatmul.mubr.f32.gmra.mrb[0].mxu0 %v120
  %v433 = vpop.f32.mrb[0].mxu0
  %v434 = vadd.f32 0.0, %v433
  %v435 = vpop.f32.mrb[0].mxu0
  %v436 = vadd.f32 0.0, %v435
  %437 = vmatprep.mubr.f32.mxu0 %v209
  %438 = vmatmul.mubr.f32.gmra.mrb[0].mxu0 %v122
  %v439 = vpop.f32.mrb[0].mxu0
  %v440 = vadd.f32 0.0, %v439
  %v441 = vpop.f32.mrb[0].mxu0
  %v442 = vadd.f32 0.0, %v441
  %443 = vmatprep.mubr.f32.mxu0 %v212
  %444 = vmatmul.mubr.f32.gmra.mrb[0].mxu0 %v124
  %v445 = vpop.f32.mrb[0].mxu0
  %v446 = vadd.f32 0.0, %v445
  %v447 = vpop.f32.mrb[0].mxu0
  %v448 = vadd.f32 0.0, %v447
  %449 = vmatprep.mubr.f32.mxu0 %v215
  %450 = vmatmul.mubr.f32.gmra.mrb[0].mxu0 %v126
  %v451 = vpop.f32.mrb[0].mxu0
  %v452 = vadd.f32 0.0, %v451
  %v453 = vpop.f32.mrb[0].mxu0
  %v454 = vadd.f32 0.0, %v453
  %455 = vmatprep.mubr.f32.mxu0 %v218
  %456 = vmatmul.mubr.f32.gmra.mrb[0].mxu0 %v128
  %v457 = vpop.f32.mrb[0].mxu0
  %v458 = vadd.f32 0.0, %v457
  %v459 = vpop.f32.mrb[0].mxu0
  %v460 = vadd.f32 0.0, %v459
  %461 = vmatprep.mubr.f32.mxu0 %v221
  %462 = vmatmul.mubr.f32.gmra.mrb[0].mxu0 %v130
  %v463 = vpop.f32.mrb[0].mxu0
  %v464 = vadd.f32 0.0, %v463
  %v465 = vpop.f32.mrb[0].mxu0
  %v466 = vadd.f32 0.0, %v465
  %467 = vdwg.mxu0
  %v468 = vld [vmem:[%s0 + $0x40] sm:$0xff]
  %v469 = vld [vmem:[%s0 + $0x48] sm:$0xff]
  %v470 = vld [vmem:[%s0 + $0x50] sm:$0xff]
  %v471 = vld [vmem:[%s0 + $0x58] sm:$0xff]
  %v472 = vld [vmem:[%s0 + $0x60] sm:$0xff]
  %v473 = vld [vmem:[%s0 + $0x68] sm:$0xff]
  %v474 = vld [vmem:[%s0 + $0x70] sm:$0xff]
  %v475 = vld [vmem:[%s0 + $0x78] sm:$0xff]
  %v476 = vld [vmem:[%s0 + $0x80] sm:$0xff]
  %v477 = vld [vmem:[%s0 + $0x88] sm:$0xff]
  %v478 = vld [vmem:[%s0 + $0x90] sm:$0xff]
  %v479 = vld [vmem:[%s0 + $0x98] sm:$0xff]
  %v480 = vld [vmem:[%s0 + $0xa0] sm:$0xff]
  %v481 = vld [vmem:[%s0 + $0xa8] sm:$0xff]
  %v482 = vld [vmem:[%s0 + $0xb0] sm:$0xff]
  %v483 = vld [vmem:[%s0 + $0xb8] sm:$0xff]
  %v484 = vld [vmem:[%s0 + $0xc0] sm:$0xff]
  %v485 = vld [vmem:[%s0 + $0xc8] sm:$0xff]
  %v486 = vld [vmem:[%s0 + $0xd0] sm:$0xff]
  %v487 = vld [vmem:[%s0 + $0xd8] sm:$0xff]
  %v488 = vld [vmem:[%s0 + $0xe0] sm:$0xff]
  %v489 = vld [vmem:[%s0 + $0xe8] sm:$0xff]
  %v490 = vld [vmem:[%s0 + $0xf0] sm:$0xff]
  %v491 = vld [vmem:[%s0 + $0xf8] sm:$0xff]
  %v492 = vld [vmem:[%s0 + $0x100] sm:$0xff]
  %v493 = vld [vmem:[%s0 + $0x108] sm:$0xff]
  %v494 = vld [vmem:[%s0 + $0x110] sm:$0xff]
  %v495 = vld [vmem:[%s0 + $0x118] sm:$0xff]
  %v496 = vld [vmem:[%s0 + $0x120] sm:$0xff]
  %v497 = vld [vmem:[%s0 + $0x128] sm:$0xff]
  %v498 = vld [vmem:[%s0 + $0x130] sm:$0xff]
  %v499 = vld [vmem:[%s0 + $0x138] sm:$0xff]
  %v500 = vld [vmem:[%s0 + $0x140] sm:$0xff]
  %v501 = vld [vmem:[%s0 + $0x148] sm:$0xff]
  %v502 = vld [vmem:[%s0 + $0x150] sm:$0xff]
  %v503 = vld [vmem:[%s0 + $0x158] sm:$0xff]
  %v504 = vld [vmem:[%s0 + $0x160] sm:$0xff]
  %v505 = vld [vmem:[%s0 + $0x168] sm:$0xff]
  %v506 = vld [vmem:[%s0 + $0x170] sm:$0xff]
  %v507 = vld [vmem:[%s0 + $0x178] sm:$0xff]
  %508 = vmatprep.subr.mxu0 %v469
  %509 = vmatpush1.msra.mxu0 %v468
  %510 = vmatprep.subr.mxu0 %v471
  %511 = vmatpush1.msra.mxu0 %v470
  %512 = vmatprep.subr.mxu0 %v473
  %513 = vmatpush1.msra.mxu0 %v472
  %514 = vmatprep.subr.mxu0 %v475
  %515 = vmatpush1.msra.mxu0 %v474
  %516 = vmatprep.subr.mxu0 %v477
  %517 = vmatpush1.msra.mxu0 %v476
  %518 = vmatprep.subr.mxu0 %v479
  %519 = vmatpush1.msra.mxu0 %v478
  %520 = vmatprep.subr.mxu0 %v481
  %521 = vmatpush1.msra.mxu0 %v480
  %522 = vmatprep.subr.mxu0 %v483
  %523 = vmatpush1.msra.mxu0 %v482
  %524 = vmatprep.subr.mxu0 %v485
  %525 = vmatpush1.msra.mxu0 %v484
  %526 = vmatprep.subr.mxu0 %v487
  %527 = vmatpush1.msra.mxu0 %v486
  %528 = vmatprep.subr.mxu0 %v489
  %529 = vmatpush1.msra.mxu0 %v488
  %530 = vmatprep.subr.mxu0 %v491
  %531 = vmatpush1.msra.mxu0 %v490
  %532 = vmatprep.subr.mxu0 %v493
  %533 = vmatpush1.msra.mxu0 %v492
  %534 = vmatprep.subr.mxu0 %v495
  %535 = vmatpush1.msra.mxu0 %v494
  %536 = vmatprep.subr.mxu0 %v497
  %537 = vmatpush1.msra.mxu0 %v496
  %538 = vmatprep.subr.mxu0 %v499
  %539 = vmatpush1.msra.mxu0 %v498
  %540 = vmatprep.subr.mxu0 %v501
  %541 = vmatpush1.msra.mxu0 %v500
  %542 = vmatprep.subr.mxu0 %v503
  %543 = vmatpush1.msra.mxu0 %v502
  %544 = vmatprep.subr.mxu0 %v505
  %545 = vmatpush1.msra.mxu0 %v504
  %546 = vmatprep.subr.mxu0 %v507
  %547 = vmatpush1.msra.mxu0 %v506
  %548 = vmatprep.subr.mxu0 0.0
  %549 = vmatpush1.msra.mxu0 0.0
  %550 = vmatprep.subr.mxu0 0.0
  %551 = vmatpush1.msra.mxu0 0.0
  %552 = vmatprep.subr.mxu0 0.0
  %553 = vmatpush1.msra.mxu0 0.0
  %554 = vmatprep.subr.mxu0 0.0
  %555 = vmatpush1.msra.mxu0 0.0
  %556 = vmatprep.subr.mxu0 0.0
  %557 = vmatpush1.msra.mxu0 0.0
  %558 = vmatprep.subr.mxu0 0.0
  %559 = vmatpush1.msra.mxu0 0.0
  %560 = vmatprep.subr.mxu0 0.0
  %561 = vmatpush1.msra.mxu0 0.0
  %562 = vmatprep.subr.mxu0 0.0
  %563 = vmatpush1.msra.mxu0 0.0
  %564 = vmatprep.subr.mxu0 0.0
  %565 = vmatpush1.msra.mxu0 0.0
  %566 = vmatprep.subr.mxu0 0.0
  %567 = vmatpush1.msra.mxu0 0.0
  %568 = vmatprep.subr.mxu0 0.0
  %569 = vmatpush1.msra.mxu0 0.0
  %570 = vmatprep.subr.mxu0 0.0
  %571 = vmatpush1.msra.mxu0 0.0
  %572 = vmatprep.mubr.f32.mxu0 %v134
  %573 = vmatmul.mubr.f32.gmra.mrb[0].mxu0 %v72
  %v574 = vpop.f32.mrb[0].mxu0
  %v575 = vadd.f32 0.0, %v574
  %v576 = vpop.f32.mrb[0].mxu0
  %v577 = vadd.f32 0.0, %v576
  %578 = vmatprep.mubr.f32.mxu0 %v137
  %579 = vmatmul.mubr.f32.gmra.mrb[0].mxu0 %v74
  %v580 = vpop.f32.mrb[0].mxu0
  %v581 = vadd.f32 0.0, %v580
  %v582 = vpop.f32.mrb[0].mxu0
  %v583 = vadd.f32 0.0, %v582
  %584 = vmatprep.mubr.f32.mxu0 %v140
  %585 = vmatmul.mubr.f32.gmra.mrb[0].mxu0 %v76
  %v586 = vpop.f32.mrb[0].mxu0
  %v587 = vadd.f32 0.0, %v586
  %v588 = vpop.f32.mrb[0].mxu0
  %v589 = vadd.f32 0.0, %v588
  %590 = vmatprep.mubr.f32.mxu0 %v143
  %591 = vmatmul.mubr.f32.gmra.mrb[0].mxu0 %v78
  %v592 = vpop.f32.mrb[0].mxu0
  %v593 = vadd.f32 0.0, %v592
  %v594 = vpop.f32.mrb[0].mxu0
  %v595 = vadd.f32 0.0, %v594
  %596 = vmatprep.mubr.f32.mxu0 %v146
  %597 = vmatmul.mubr.f32.gmra.mrb[0].mxu0 %v80
  %v598 = vpop.f32.mrb[0].mxu0
  %v599 = vadd.f32 0.0, %v598
  %v600 = vpop.f32.mrb[0].mxu0
  %v601 = vadd.f32 0.0, %v600
  %602 = vmatprep.mubr.f32.mxu0 %v149
  %603 = vmatmul.mubr.f32.gmra.mrb[0].mxu0 %v82
  %v604 = vpop.f32.mrb[0].mxu0
  %v605 = vadd.f32 0.0, %v604
  %v606 = vpop.f32.mrb[0].mxu0
  %v607 = vadd.f32 0.0, %v606
  %608 = vmatprep.mubr.f32.mxu0 %v152
  %609 = vmatmul.mubr.f32.gmra.mrb[0].mxu0 %v84
  %v610 = vpop.f32.mrb[0].mxu0
  %v611 = vadd.f32 0.0, %v610
  %v612 = vpop.f32.mrb[0].mxu0
  %v613 = vadd.f32 0.0, %v612
  %614 = vmatprep.mubr.f32.mxu0 %v155
  %615 = vmatmul.mubr.f32.gmra.mrb[0].mxu0 %v86
  %v616 = vpop.f32.mrb[0].mxu0
  %v617 = vadd.f32 0.0, %v616
  %v618 = vpop.f32.mrb[0].mxu0
  %v619 = vadd.f32 0.0, %v618
  %620 = vmatprep.mubr.f32.mxu0 %v158
  %621 = vmatmul.mubr.f32.gmra.mrb[0].mxu0 %v88
  %v622 = vpop.f32.mrb[0].mxu0
  %v623 = vadd.f32 0.0, %v622
  %v624 = vpop.f32.mrb[0].mxu0
  %v625 = vadd.f32 0.0, %v624
  %626 = vmatprep.mubr.f32.mxu0 %v161
  %627 = vmatmul.mubr.f32.gmra.mrb[0].mxu0 %v90
  %v628 = vpop.f32.mrb[0].mxu0
  %v629 = vadd.f32 0.0, %v628
  %v630 = vpop.f32.mrb[0].mxu0
  %v631 = vadd.f32 0.0, %v630
  %632 = vmatprep.mubr.f32.mxu0 %v164
  %633 = vmatmul.mubr.f32.gmra.mrb[0].mxu0 %v92
  %v634 = vpop.f32.mrb[0].mxu0
  %v635 = vadd.f32 0.0, %v634
  %v636 = vpop.f32.mrb[0].mxu0
  %v637 = vadd.f32 0.0, %v636
  %638 = vmatprep.mubr.f32.mxu0 %v167
  %639 = vmatmul.mubr.f32.gmra.mrb[0].mxu0 %v94
  %v640 = vpop.f32.mrb[0].mxu0
  %v641 = vadd.f32 0.0, %v640
  %v642 = vpop.f32.mrb[0].mxu0
  %v643 = vadd.f32 0.0, %v642
  %644 = vmatprep.mubr.f32.mxu0 %v170
  %645 = vmatmul.mubr.f32.gmra.mrb[0].mxu0 %v96
  %v646 = vpop.f32.mrb[0].mxu0
  %v647 = vadd.f32 0.0, %v646
  %v648 = vpop.f32.mrb[0].mxu0
  %v649 = vadd.f32 0.0, %v648
  %650 = vmatprep.mubr.f32.mxu0 %v173
  %651 = vmatmul.mubr.f32.gmra.mrb[0].mxu0 %v98
  %v652 = vpop.f32.mrb[0].mxu0
  %v653 = vadd.f32 0.0, %v652
  %v654 = vpop.f32.mrb[0].mxu0
  %v655 = vadd.f32 0.0, %v654
  %656 = vmatprep.mubr.f32.mxu0 %v176
  %657 = vmatmul.mubr.f32.gmra.mrb[0].mxu0 %v100
  %v658 = vpop.f32.mrb[0].mxu0
  %v659 = vadd.f32 0.0, %v658
  %v660 = vpop.f32.mrb[0].mxu0
  %v661 = vadd.f32 0.0, %v660
  %662 = vmatprep.mubr.f32.mxu0 %v179
  %663 = vmatmul.mubr.f32.gmra.mrb[0].mxu0 %v102
  %v664 = vpop.f32.mrb[0].mxu0
  %v665 = vadd.f32 0.0, %v664
  %v666 = vpop.f32.mrb[0].mxu0
  %v667 = vadd.f32 0.0, %v666
  %668 = vmatprep.mubr.f32.mxu0 %v182
  %669 = vmatmul.mubr.f32.gmra.mrb[0].mxu0 %v104
  %v670 = vpop.f32.mrb[0].mxu0
  %v671 = vadd.f32 0.0, %v670
  %v672 = vpop.f32.mrb[0].mxu0
  %v673 = vadd.f32 0.0, %v672
  %674 = vmatprep.mubr.f32.mxu0 %v185
  %675 = vmatmul.mubr.f32.gmra.mrb[0].mxu0 %v106
  %v676 = vpop.f32.mrb[0].mxu0
  %v677 = vadd.f32 0.0, %v676
  %v678 = vpop.f32.mrb[0].mxu0
  %v679 = vadd.f32 0.0, %v678
  %680 = vmatprep.mubr.f32.mxu0 %v188
  %681 = vmatmul.mubr.f32.gmra.mrb[0].mxu0 %v108
  %v682 = vpop.f32.mrb[0].mxu0
  %v683 = vadd.f32 0.0, %v682
  %v684 = vpop.f32.mrb[0].mxu0
  %v685 = vadd.f32 0.0, %v684
  %686 = vmatprep.mubr.f32.mxu0 %v191
  %687 = vmatmul.mubr.f32.gmra.mrb[0].mxu0 %v110
  %v688 = vpop.f32.mrb[0].mxu0
  %v689 = vadd.f32 0.0, %v688
  %v690 = vpop.f32.mrb[0].mxu0
  %v691 = vadd.f32 0.0, %v690
  %692 = vmatprep.mubr.f32.mxu0 %v194
  %693 = vmatmul.mubr.f32.gmra.mrb[0].mxu0 %v112
  %v694 = vpop.f32.mrb[0].mxu0
  %v695 = vadd.f32 0.0, %v694
  %v696 = vpop.f32.mrb[0].mxu0
  %v697 = vadd.f32 0.0, %v696
  %698 = vmatprep.mubr.f32.mxu0 %v197
  %699 = vmatmul.mubr.f32.gmra.mrb[0].mxu0 %v114
  %v700 = vpop.f32.mrb[0].mxu0
  %v701 = vadd.f32 0.0, %v700
  %v702 = vpop.f32.mrb[0].mxu0
  %v703 = vadd.f32 0.0, %v702
  %704 = vmatprep.mubr.f32.mxu0 %v200
  %705 = vmatmul.mubr.f32.gmra.mrb[0].mxu0 %v116
  %v706 = vpop.f32.mrb[0].mxu0
  %v707 = vadd.f32 0.0, %v706
  %v708 = vpop.f32.mrb[0].mxu0
  %v709 = vadd.f32 0.0, %v708
  %710 = vmatprep.mubr.f32.mxu0 %v203
  %711 = vmatmul.mubr.f32.gmra.mrb[0].mxu0 %v118
  %v712 = vpop.f32.mrb[0].mxu0
  %v713 = vadd.f32 0.0, %v712
  %v714 = vpop.f32.mrb[0].mxu0
  %v715 = vadd.f32 0.0, %v714
  %716 = vmatprep.mubr.f32.mxu0 %v206
  %717 = vmatmul.mubr.f32.gmra.mrb[0].mxu0 %v120
  %v718 = vpop.f32.mrb[0].mxu0
  %v719 = vadd.f32 0.0, %v718
  %v720 = vpop.f32.mrb[0].mxu0
  %v721 = vadd.f32 0.0, %v720
  %722 = vmatprep.mubr.f32.mxu0 %v209
  %723 = vmatmul.mubr.f32.gmra.mrb[0].mxu0 %v122
  %v724 = vpop.f32.mrb[0].mxu0
  %v725 = vadd.f32 0.0, %v724
  %v726 = vpop.f32.mrb[0].mxu0
  %v727 = vadd.f32 0.0, %v726
  %728 = vmatprep.mubr.f32.mxu0 %v212
  %729 = vmatmul.mubr.f32.gmra.mrb[0].mxu0 %v124
  %v730 = vpop.f32.mrb[0].mxu0
  %v731 = vadd.f32 0.0, %v730
  %v732 = vpop.f32.mrb[0].mxu0
  %v733 = vadd.f32 0.0, %v732
  %734 = vmatprep.mubr.f32.mxu0 %v215
  %735 = vmatmul.mubr.f32.gmra.mrb[0].mxu0 %v126
  %v736 = vpop.f32.mrb[0].mxu0
  %v737 = vadd.f32 0.0, %v736
  %v738 = vpop.f32.mrb[0].mxu0
  %v739 = vadd.f32 0.0, %v738
  %740 = vmatprep.mubr.f32.mxu0 %v218
  %741 = vmatmul.mubr.f32.gmra.mrb[0].mxu0 %v128
  %v742 = vpop.f32.mrb[0].mxu0
  %v743 = vadd.f32 0.0, %v742
  %v744 = vpop.f32.mrb[0].mxu0
  %v745 = vadd.f32 0.0, %v744
  %746 = vmatprep.mubr.f32.mxu0 %v221
  %747 = vmatmul.mubr.f32.gmra.mrb[0].mxu0 %v130
  %v748 = vpop.f32.mrb[0].mxu0
  %v749 = vadd.f32 0.0, %v748
  %v750 = vpop.f32.mrb[0].mxu0
  %v751 = vadd.f32 0.0, %v750
  %752 = vdwg.mxu0
  %v753 = vmax.f32 %v290, %v380
  %v754 = vmax.f32 %v292, %v382
  %v755 = vmax.f32 %v296, %v386
  %v756 = vmax.f32 %v298, %v388
  %v757 = vmax.f32 %v302, %v392
  %v758 = vmax.f32 %v304, %v394
  %v759 = vmax.f32 %v308, %v398
  %v760 = vmax.f32 %v310, %v400
  %v761 = vmax.f32 %v314, %v404
  %v762 = vmax.f32 %v316, %v406
  %v763 = vmax.f32 %v320, %v410
  %v764 = vmax.f32 %v322, %v412
  %v765 = vmax.f32 %v326, %v416
  %v766 = vmax.f32 %v328, %v418
  %v767 = vmax.f32 %v332, %v422
  %v768 = vmax.f32 %v334, %v424
  %v769 = vmax.f32 %v338, %v428
  %v770 = vmax.f32 %v340, %v430
  %v771 = vmax.f32 %v344, %v434
  %v772 = vmax.f32 %v346, %v436
  %v773 = vmax.f32 %v350, %v440
  %v774 = vmax.f32 %v352, %v442
  %v775 = vmax.f32 %v356, %v446
  %v776 = vmax.f32 %v358, %v448
  %v777 = vmax.f32 %v362, %v452
  %v778 = vmax.f32 %v364, %v454
  %v779 = vmax.f32 %v368, %v458
  %v780 = vmax.f32 %v370, %v460
  %v781 = vmax.f32 %v374, %v464
  %v782 = vmax.f32 %v376, %v466
  %v783 = vmax.f32 %v575, %v665
  %v784 = vmax.f32 %v577, %v667
  %v785 = vmax.f32 %v581, %v671
  %v786 = vmax.f32 %v583, %v673
  %v787 = vmax.f32 %v587, %v677
  %v788 = vmax.f32 %v589, %v679
  %v789 = vmax.f32 %v593, %v683
  %v790 = vmax.f32 %v595, %v685
  %v791 = vmax.f32 %v599, %v689
  %v792 = vmax.f32 %v601, %v691
  %v793 = vmax.f32 %v605, %v695
  %v794 = vmax.f32 %v607, %v697
  %v795 = vmax.f32 %v611, %v701
  %v796 = vmax.f32 %v613, %v703
  %v797 = vmax.f32 %v617, %v707
  %v798 = vmax.f32 %v619, %v709
  %v799 = vmax.f32 %v623, %v713
  %v800 = vmax.f32 %v625, %v715
  %v801 = vmax.f32 %v629, %v719
  %v802 = vmax.f32 %v631, %v721
  %v803 = vmax.f32 %v635, %v725
  %v804 = vmax.f32 %v637, %v727
  %v805 = vmax.f32 %v641, %v731
  %v806 = vmax.f32 %v643, %v733
  %v807 = vmax.f32 %v647, %v737
  %v808 = vmax.f32 %v649, %v739
  %v809 = vmax.f32 %v653, %v743
  %v810 = vmax.f32 %v655, %v745
  %v811 = vmax.f32 %v659, %v749
  %v812 = vmax.f32 %v661, %v751
  %v813 = vmax.f32 %v753, %v783
  %v814 = vmax.f32 %v754, %v784
  %v815 = vmax.f32 %v755, %v785
  %v816 = vmax.f32 %v756, %v786
  %v817 = vmax.f32 %v757, %v787
  %v818 = vmax.f32 %v758, %v788
  %v819 = vmax.f32 %v759, %v789
  %v820 = vmax.f32 %v760, %v790
  %v821 = vmax.f32 %v761, %v791
  %v822 = vmax.f32 %v762, %v792
  %v823 = vmax.f32 %v763, %v793
  %v824 = vmax.f32 %v764, %v794
  %v825 = vmax.f32 %v765, %v795
  %v826 = vmax.f32 %v766, %v796
  %v827 = vmax.f32 %v767, %v797
  %v828 = vmax.f32 %v768, %v798
  %v829 = vmax.f32 %v769, %v799
  %v830 = vmax.f32 %v770, %v800
  %v831 = vmax.f32 %v771, %v801
  %v832 = vmax.f32 %v772, %v802
  %v833 = vmax.f32 %v773, %v803
  %v834 = vmax.f32 %v774, %v804
  %v835 = vmax.f32 %v775, %v805
  %v836 = vmax.f32 %v776, %v806
  %v837 = vmax.f32 %v777, %v807
  %v838 = vmax.f32 %v778, %v808
  %v839 = vmax.f32 %v779, %v809
  %v840 = vmax.f32 %v780, %v810
  %v841 = vmax.f32 %v781, %v811
  %v842 = vmax.f32 %v782, %v812
  %v843 = vld [vmem:[%s2] sm:$0xff]
  %v844 = vld [vmem:[%s2 + $0x8] sm:$0xff]
  %v845 = vld [vmem:[%s2 + $0x10] sm:$0xff]
  %v846 = vld [vmem:[%s2 + $0x18] sm:$0xff]
  %v847 = vld [vmem:[%s2 + $0x20] sm:$0xff]
  %v848 = vld [vmem:[%s2 + $0x28] sm:$0xff]
  %v849 = vld [vmem:[%s2 + $0x30] sm:$0xff]
  %v850 = vld [vmem:[%s2 + $0x38] sm:$0xff]
  %v851 = vld [vmem:[%s2 + $0x40] sm:$0xff]
  %v852 = vld [vmem:[%s2 + $0x48] sm:$0xff]
  %v853 = vld [vmem:[%s2 + $0x50] sm:$0xff]
  %v854 = vld [vmem:[%s2 + $0x58] sm:$0xff]
  %v855 = vld [vmem:[%s2 + $0x60] sm:$0xff]
  %v856 = vld [vmem:[%s2 + $0x68] sm:$0xff]
  %v857 = vld [vmem:[%s2 + $0x70] sm:$0xff]
  %859 = vset.pattern.permute.xlu0 0
  %860 = vperm.xlu0 %859, %v843
  %v861 = vpop.permute.xlu0 %860
  %864 = vset.pattern.permute.xlu0 0
  %865 = vperm.xlu0 %864, %v844
  %v866 = vpop.permute.xlu0 %865
  %869 = vset.pattern.permute.xlu0 0
  %870 = vperm.xlu0 %869, %v845
  %v871 = vpop.permute.xlu0 %870
  %874 = vset.pattern.permute.xlu0 0
  %875 = vperm.xlu0 %874, %v846
  %v876 = vpop.permute.xlu0 %875
  %879 = vset.pattern.permute.xlu0 0
  %880 = vperm.xlu0 %879, %v847
  %v881 = vpop.permute.xlu0 %880
  %884 = vset.pattern.permute.xlu0 0
  %885 = vperm.xlu0 %884, %v848
  %v886 = vpop.permute.xlu0 %885
  %889 = vset.pattern.permute.xlu0 0
  %890 = vperm.xlu0 %889, %v849
  %v891 = vpop.permute.xlu0 %890
  %894 = vset.pattern.permute.xlu0 0
  %895 = vperm.xlu0 %894, %v850
  %v896 = vpop.permute.xlu0 %895
  %899 = vset.pattern.permute.xlu0 0
  %900 = vperm.xlu0 %899, %v851
  %v901 = vpop.permute.xlu0 %900
  %904 = vset.pattern.permute.xlu0 0
  %905 = vperm.xlu0 %904, %v852
  %v906 = vpop.permute.xlu0 %905
  %909 = vset.pattern.permute.xlu0 0
  %910 = vperm.xlu0 %909, %v853
  %v911 = vpop.permute.xlu0 %910
  %914 = vset.pattern.permute.xlu0 0
  %915 = vperm.xlu0 %914, %v854
  %v916 = vpop.permute.xlu0 %915
  %919 = vset.pattern.permute.xlu0 0
  %920 = vperm.xlu0 %919, %v855
  %v921 = vpop.permute.xlu0 %920
  %924 = vset.pattern.permute.xlu0 0
  %925 = vperm.xlu0 %924, %v856
  %v926 = vpop.permute.xlu0 %925
  %929 = vset.pattern.permute.xlu0 0
  %930 = vperm.xlu0 %929, %v857
  %v931 = vpop.permute.xlu0 %930
  %v933 = vadd.f32 %v813, %v861
  %v934 = vadd.f32 %v814, %v861
  %v935 = vadd.f32 %v815, %v866
  %v936 = vadd.f32 %v816, %v866
  %v937 = vadd.f32 %v817, %v871
  %v938 = vadd.f32 %v818, %v871
  %v939 = vadd.f32 %v819, %v876
  %v940 = vadd.f32 %v820, %v876
  %v941 = vadd.f32 %v821, %v881
  %v942 = vadd.f32 %v822, %v881
  %v943 = vadd.f32 %v823, %v886
  %v944 = vadd.f32 %v824, %v886
  %v945 = vadd.f32 %v825, %v891
  %v946 = vadd.f32 %v826, %v891
  %v947 = vadd.f32 %v827, %v896
  %v948 = vadd.f32 %v828, %v896
  %v949 = vadd.f32 %v829, %v901
  %v950 = vadd.f32 %v830, %v901
  %v951 = vadd.f32 %v831, %v906
  %v952 = vadd.f32 %v832, %v906
  %v953 = vadd.f32 %v833, %v911
  %v954 = vadd.f32 %v834, %v911
  %v955 = vadd.f32 %v835, %v916
  %v956 = vadd.f32 %v836, %v916
  %v957 = vadd.f32 %v837, %v921
  %v958 = vadd.f32 %v838, %v921
  %v959 = vadd.f32 %v839, %v926
  %v960 = vadd.f32 %v840, %v926
  %v961 = vadd.f32 %v841, %v931
  %v962 = vadd.f32 %v842, %v931
  %v963 = vmax.f32 %v933, 0.0
  %v964 = vmax.f32 %v934, 0.0
  %v965 = vmax.f32 %v935, 0.0
  %v966 = vmax.f32 %v936, 0.0
  %v967 = vmax.f32 %v937, 0.0
  %v968 = vmax.f32 %v938, 0.0
  %v969 = vmax.f32 %v939, 0.0
  %v970 = vmax.f32 %v940, 0.0
  %v971 = vmax.f32 %v941, 0.0
  %v972 = vmax.f32 %v942, 0.0
  %v973 = vmax.f32 %v943, 0.0
  %v974 = vmax.f32 %v944, 0.0
  %v975 = vmax.f32 %v945, 0.0
  %v976 = vmax.f32 %v946, 0.0
  %v977 = vmax.f32 %v947, 0.0
  %v978 = vmax.f32 %v948, 0.0
  %v979 = vmax.f32 %v949, 0.0
  %v980 = vmax.f32 %v950, 0.0
  %v981 = vmax.f32 %v951, 0.0
  %v982 = vmax.f32 %v952, 0.0
  %v983 = vmax.f32 %v953, 0.0
  %v984 = vmax.f32 %v954, 0.0
  %v985 = vmax.f32 %v955, 0.0
  %v986 = vmax.f32 %v956, 0.0
  %v987 = vmax.f32 %v957, 0.0
  %v988 = vmax.f32 %v958, 0.0
  %v989 = vmax.f32 %v959, 0.0
  %v990 = vmax.f32 %v960, 0.0
  %v991 = vmax.f32 %v961, 0.0
  %v992 = vmax.f32 %v962, 0.0
  %v993 = vld [vmem:[%s0 + $0x80] sm:$0xff]
  %v994 = vld [vmem:[%s0 + $0x88] sm:$0xff]
  %v995 = vld [vmem:[%s0 + $0x90] sm:$0xff]
  %v996 = vld [vmem:[%s0 + $0x98] sm:$0xff]
  %v997 = vld [vmem:[%s0 + $0xa0] sm:$0xff]
  %v998 = vld [vmem:[%s0 + $0xa8] sm:$0xff]
  %v999 = vld [vmem:[%s0 + $0xb0] sm:$0xff]
  %v1000 = vld [vmem:[%s0 + $0xb8] sm:$0xff]
  %v1001 = vld [vmem:[%s0 + $0xc0] sm:$0xff]
  %v1002 = vld [vmem:[%s0 + $0xc8] sm:$0xff]
  %v1003 = vld [vmem:[%s0 + $0xd0] sm:$0xff]
  %v1004 = vld [vmem:[%s0 + $0xd8] sm:$0xff]
  %v1005 = vld [vmem:[%s0 + $0xe0] sm:$0xff]
  %v1006 = vld [vmem:[%s0 + $0xe8] sm:$0xff]
  %v1007 = vld [vmem:[%s0 + $0xf0] sm:$0xff]
  %v1008 = vld [vmem:[%s0 + $0xf8] sm:$0xff]
  %v1009 = vld [vmem:[%s0 + $0x100] sm:$0xff]
  %v1010 = vld [vmem:[%s0 + $0x108] sm:$0xff]
  %v1011 = vld [vmem:[%s0 + $0x110] sm:$0xff]
  %v1012 = vld [vmem:[%s0 + $0x118] sm:$0xff]
  %v1013 = vld [vmem:[%s0 + $0x120] sm:$0xff]
  %v1014 = vld [vmem:[%s0 + $0x128] sm:$0xff]
  %v1015 = vld [vmem:[%s0 + $0x130] sm:$0xff]
  %v1016 = vld [vmem:[%s0 + $0x138] sm:$0xff]
  %v1017 = vld [vmem:[%s0 + $0x140] sm:$0xff]
  %v1018 = vld [vmem:[%s0 + $0x148] sm:$0xff]
  %v1019 = vld [vmem:[%s0 + $0x150] sm:$0xff]
  %v1020 = vld [vmem:[%s0 + $0x158] sm:$0xff]
  %v1021 = vld [vmem:[%s0 + $0x160] sm:$0xff]
  %v1022 = vld [vmem:[%s0 + $0x168] sm:$0xff]
  %v1023 = vld [vmem:[%s0 + $0x170] sm:$0xff]
  %v1024 = vld [vmem:[%s0 + $0x178] sm:$0xff]
  %v1025 = vld [vmem:[%s0 + $0x180] sm:$0xff]
  %v1026 = vld [vmem:[%s0 + $0x188] sm:$0xff]
  %v1027 = vld [vmem:[%s0 + $0x190] sm:$0xff]
  %v1028 = vld [vmem:[%s0 + $0x198] sm:$0xff]
  %v1029 = vld [vmem:[%s0 + $0x1a0] sm:$0xff]
  %v1030 = vld [vmem:[%s0 + $0x1a8] sm:$0xff]
  %v1031 = vld [vmem:[%s0 + $0x1b0] sm:$0xff]
  %v1032 = vld [vmem:[%s0 + $0x1b8] sm:$0xff]
  %1033 = vmatprep.subr.mxu0 %v994
  %1034 = vmatpush1.msra.mxu0 %v993
  %1035 = vmatprep.subr.mxu0 %v996
  %1036 = vmatpush1.msra.mxu0 %v995
  %1037 = vmatprep.subr.mxu0 %v998
  %1038 = vmatpush1.msra.mxu0 %v997
  %1039 = vmatprep.subr.mxu0 %v1000
  %1040 = vmatpush1.msra.mxu0 %v999
  %1041 = vmatprep.subr.mxu0 %v1002
  %1042 = vmatpush1.msra.mxu0 %v1001
  %1043 = vmatprep.subr.mxu0 %v1004
  %1044 = vmatpush1.msra.mxu0 %v1003
  %1045 = vmatprep.subr.mxu0 %v1006
  %1046 = vmatpush1.msra.mxu0 %v1005
  %1047 = vmatprep.subr.mxu0 %v1008
  %1048 = vmatpush1.msra.mxu0 %v1007
  %1049 = vmatprep.subr.mxu0 %v1010
  %1050 = vmatpush1.msra.mxu0 %v1009
  %1051 = vmatprep.subr.mxu0 %v1012
  %1052 = vmatpush1.msra.mxu0 %v1011
  %1053 = vmatprep.subr.mxu0 %v1014
  %1054 = vmatpush1.msra.mxu0 %v1013
  %1055 = vmatprep.subr.mxu0 %v1016
  %1056 = vmatpush1.msra.mxu0 %v1015
  %1057 = vmatprep.subr.mxu0 %v1018
  %1058 = vmatpush1.msra.mxu0 %v1017
  %1059 = vmatprep.subr.mxu0 %v1020
  %1060 = vmatpush1.msra.mxu0 %v1019
  %1061 = vmatprep.subr.mxu0 %v1022
  %1062 = vmatpush1.msra.mxu0 %v1021
  %1063 = vmatprep.subr.mxu0 %v1024
  %1064 = vmatpush1.msra.mxu0 %v1023
  %1065 = vmatprep.subr.mxu0 %v1026
  %1066 = vmatpush1.msra.mxu0 %v1025
  %1067 = vmatprep.subr.mxu0 %v1028
  %1068 = vmatpush1.msra.mxu0 %v1027
  %1069 = vmatprep.subr.mxu0 %v1030
  %1070 = vmatpush1.msra.mxu0 %v1029
  %1071 = vmatprep.subr.mxu0 %v1032
  %1072 = vmatpush1.msra.mxu0 %v1031
  %1073 = vmatprep.subr.mxu0 0.0
  %1074 = vmatpush1.msra.mxu0 0.0
  %1075 = vmatprep.subr.mxu0 0.0
  %1076 = vmatpush1.msra.mxu0 0.0
  %1077 = vmatprep.subr.mxu0 0.0
  %1078 = vmatpush1.msra.mxu0 0.0
  %1079 = vmatprep.subr.mxu0 0.0
  %1080 = vmatpush1.msra.mxu0 0.0
  %1081 = vmatprep.subr.mxu0 0.0
  %1082 = vmatpush1.msra.mxu0 0.0
  %1083 = vmatprep.subr.mxu0 0.0
  %1084 = vmatpush1.msra.mxu0 0.0
  %1085 = vmatprep.subr.mxu0 0.0
  %1086 = vmatpush1.msra.mxu0 0.0
  %1087 = vmatprep.subr.mxu0 0.0
  %1088 = vmatpush1.msra.mxu0 0.0
  %1089 = vmatprep.subr.mxu0 0.0
  %1090 = vmatpush1.msra.mxu0 0.0
  %1091 = vmatprep.subr.mxu0 0.0
  %1092 = vmatpush1.msra.mxu0 0.0
  %1093 = vmatprep.subr.mxu0 0.0
  %1094 = vmatpush1.msra.mxu0 0.0
  %1095 = vmatprep.subr.mxu0 0.0
  %1096 = vmatpush1.msra.mxu0 0.0
  %1097 = vmatprep.mubr.f32.mxu0 %v134
  %1098 = vmatmul.mubr.f32.gmra.mrb[0].mxu0 %v72
  %v1099 = vpop.f32.mrb[0].mxu0
  %v1100 = vadd.f32 0.0, %v1099
  %v1101 = vpop.f32.mrb[0].mxu0
  %v1102 = vadd.f32 0.0, %v1101
  %1103 = vmatprep.mubr.f32.mxu0 %v137
  %1104 = vmatmul.mubr.f32.gmra.mrb[0].mxu0 %v74
  %v1105 = vpop.f32.mrb[0].mxu0
  %v1106 = vadd.f32 0.0, %v1105
  %v1107 = vpop.f32.mrb[0].mxu0
  %v1108 = vadd.f32 0.0, %v1107
  %1109 = vmatprep.mubr.f32.mxu0 %v140
  %1110 = vmatmul.mubr.f32.gmra.mrb[0].mxu0 %v76
  %v1111 = vpop.f32.mrb[0].mxu0
  %v1112 = vadd.f32 0.0, %v1111
  %v1113 = vpop.f32.mrb[0].mxu0
  %v1114 = vadd.f32 0.0, %v1113
  %1115 = vmatprep.mubr.f32.mxu0 %v143
  %1116 = vmatmul.mubr.f32.gmra.mrb[0].mxu0 %v78
  %v1117 = vpop.f32.mrb[0].mxu0
  %v1118 = vadd.f32 0.0, %v1117
  %v1119 = vpop.f32.mrb[0].mxu0
  %v1120 = vadd.f32 0.0, %v1119
  %1121 = vmatprep.mubr.f32.mxu0 %v146
  %1122 = vmatmul.mubr.f32.gmra.mrb[0].mxu0 %v80
  %v1123 = vpop.f32.mrb[0].mxu0
  %v1124 = vadd.f32 0.0, %v1123
  %v1125 = vpop.f32.mrb[0].mxu0
  %v1126 = vadd.f32 0.0, %v1125
  %1127 = vmatprep.mubr.f32.mxu0 %v149
  %1128 = vmatmul.mubr.f32.gmra.mrb[0].mxu0 %v82
  %v1129 = vpop.f32.mrb[0].mxu0
  %v1130 = vadd.f32 0.0, %v1129
  %v1131 = vpop.f32.mrb[0].mxu0
  %v1132 = vadd.f32 0.0, %v1131
  %1133 = vmatprep.mubr.f32.mxu0 %v152
  %1134 = vmatmul.mubr.f32.gmra.mrb[0].mxu0 %v84
  %v1135 = vpop.f32.mrb[0].mxu0
  %v1136 = vadd.f32 0.0, %v1135
  %v1137 = vpop.f32.mrb[0].mxu0
  %v1138 = vadd.f32 0.0, %v1137
  %1139 = vmatprep.mubr.f32.mxu0 %v155
  %1140 = vmatmul.mubr.f32.gmra.mrb[0].mxu0 %v86
  %v1141 = vpop.f32.mrb[0].mxu0
  %v1142 = vadd.f32 0.0, %v1141
  %v1143 = vpop.f32.mrb[0].mxu0
  %v1144 = vadd.f32 0.0, %v1143
  %1145 = vmatprep.mubr.f32.mxu0 %v158
  %1146 = vmatmul.mubr.f32.gmra.mrb[0].mxu0 %v88
  %v1147 = vpop.f32.mrb[0].mxu0
  %v1148 = vadd.f32 0.0, %v1147
  %v1149 = vpop.f32.mrb[0].mxu0
  %v1150 = vadd.f32 0.0, %v1149
  %1151 = vmatprep.mubr.f32.mxu0 %v161
  %1152 = vmatmul.mubr.f32.gmra.mrb[0].mxu0 %v90
  %v1153 = vpop.f32.mrb[0].mxu0
  %v1154 = vadd.f32 0.0, %v1153
  %v1155 = vpop.f32.mrb[0].mxu0
  %v1156 = vadd.f32 0.0, %v1155
  %1157 = vmatprep.mubr.f32.mxu0 %v164
  %1158 = vmatmul.mubr.f32.gmra.mrb[0].mxu0 %v92
  %v1159 = vpop.f32.mrb[0].mxu0
  %v1160 = vadd.f32 0.0, %v1159
  %v1161 = vpop.f32.mrb[0].mxu0
  %v1162 = vadd.f32 0.0, %v1161
  %1163 = vmatprep.mubr.f32.mxu0 %v167
  %1164 = vmatmul.mubr.f32.gmra.mrb[0].mxu0 %v94
  %v1165 = vpop.f32.mrb[0].mxu0
  %v1166 = vadd.f32 0.0, %v1165
  %v1167 = vpop.f32.mrb[0].mxu0
  %v1168 = vadd.f32 0.0, %v1167
  %1169 = vmatprep.mubr.f32.mxu0 %v170
  %1170 = vmatmul.mubr.f32.gmra.mrb[0].mxu0 %v96
  %v1171 = vpop.f32.mrb[0].mxu0
  %v1172 = vadd.f32 0.0, %v1171
  %v1173 = vpop.f32.mrb[0].mxu0
  %v1174 = vadd.f32 0.0, %v1173
  %1175 = vmatprep.mubr.f32.mxu0 %v173
  %1176 = vmatmul.mubr.f32.gmra.mrb[0].mxu0 %v98
  %v1177 = vpop.f32.mrb[0].mxu0
  %v1178 = vadd.f32 0.0, %v1177
  %v1179 = vpop.f32.mrb[0].mxu0
  %v1180 = vadd.f32 0.0, %v1179
  %1181 = vmatprep.mubr.f32.mxu0 %v176
  %1182 = vmatmul.mubr.f32.gmra.mrb[0].mxu0 %v100
  %v1183 = vpop.f32.mrb[0].mxu0
  %v1184 = vadd.f32 0.0, %v1183
  %v1185 = vpop.f32.mrb[0].mxu0
  %v1186 = vadd.f32 0.0, %v1185
  %1187 = vmatprep.mubr.f32.mxu0 %v179
  %1188 = vmatmul.mubr.f32.gmra.mrb[0].mxu0 %v102
  %v1189 = vpop.f32.mrb[0].mxu0
  %v1190 = vadd.f32 0.0, %v1189
  %v1191 = vpop.f32.mrb[0].mxu0
  %v1192 = vadd.f32 0.0, %v1191
  %1193 = vmatprep.mubr.f32.mxu0 %v182
  %1194 = vmatmul.mubr.f32.gmra.mrb[0].mxu0 %v104
  %v1195 = vpop.f32.mrb[0].mxu0
  %v1196 = vadd.f32 0.0, %v1195
  %v1197 = vpop.f32.mrb[0].mxu0
  %v1198 = vadd.f32 0.0, %v1197
  %1199 = vmatprep.mubr.f32.mxu0 %v185
  %1200 = vmatmul.mubr.f32.gmra.mrb[0].mxu0 %v106
  %v1201 = vpop.f32.mrb[0].mxu0
  %v1202 = vadd.f32 0.0, %v1201
  %v1203 = vpop.f32.mrb[0].mxu0
  %v1204 = vadd.f32 0.0, %v1203
  %1205 = vmatprep.mubr.f32.mxu0 %v188
  %1206 = vmatmul.mubr.f32.gmra.mrb[0].mxu0 %v108
  %v1207 = vpop.f32.mrb[0].mxu0
  %v1208 = vadd.f32 0.0, %v1207
  %v1209 = vpop.f32.mrb[0].mxu0
  %v1210 = vadd.f32 0.0, %v1209
  %1211 = vmatprep.mubr.f32.mxu0 %v191
  %1212 = vmatmul.mubr.f32.gmra.mrb[0].mxu0 %v110
  %v1213 = vpop.f32.mrb[0].mxu0
  %v1214 = vadd.f32 0.0, %v1213
  %v1215 = vpop.f32.mrb[0].mxu0
  %v1216 = vadd.f32 0.0, %v1215
  %1217 = vmatprep.mubr.f32.mxu0 %v194
  %1218 = vmatmul.mubr.f32.gmra.mrb[0].mxu0 %v112
  %v1219 = vpop.f32.mrb[0].mxu0
  %v1220 = vadd.f32 0.0, %v1219
  %v1221 = vpop.f32.mrb[0].mxu0
  %v1222 = vadd.f32 0.0, %v1221
  %1223 = vmatprep.mubr.f32.mxu0 %v197
  %1224 = vmatmul.mubr.f32.gmra.mrb[0].mxu0 %v114
  %v1225 = vpop.f32.mrb[0].mxu0
  %v1226 = vadd.f32 0.0, %v1225
  %v1227 = vpop.f32.mrb[0].mxu0
  %v1228 = vadd.f32 0.0, %v1227
  %1229 = vmatprep.mubr.f32.mxu0 %v200
  %1230 = vmatmul.mubr.f32.gmra.mrb[0].mxu0 %v116
  %v1231 = vpop.f32.mrb[0].mxu0
  %v1232 = vadd.f32 0.0, %v1231
  %v1233 = vpop.f32.mrb[0].mxu0
  %v1234 = vadd.f32 0.0, %v1233
  %1235 = vmatprep.mubr.f32.mxu0 %v203
  %1236 = vmatmul.mubr.f32.gmra.mrb[0].mxu0 %v118
  %v1237 = vpop.f32.mrb[0].mxu0
  %v1238 = vadd.f32 0.0, %v1237
  %v1239 = vpop.f32.mrb[0].mxu0
  %v1240 = vadd.f32 0.0, %v1239
  %1241 = vmatprep.mubr.f32.mxu0 %v206
  %1242 = vmatmul.mubr.f32.gmra.mrb[0].mxu0 %v120
  %v1243 = vpop.f32.mrb[0].mxu0
  %v1244 = vadd.f32 0.0, %v1243
  %v1245 = vpop.f32.mrb[0].mxu0
  %v1246 = vadd.f32 0.0, %v1245
  %1247 = vmatprep.mubr.f32.mxu0 %v209
  %1248 = vmatmul.mubr.f32.gmra.mrb[0].mxu0 %v122
  %v1249 = vpop.f32.mrb[0].mxu0
  %v1250 = vadd.f32 0.0, %v1249
  %v1251 = vpop.f32.mrb[0].mxu0
  %v1252 = vadd.f32 0.0, %v1251
  %1253 = vmatprep.mubr.f32.mxu0 %v212
  %1254 = vmatmul.mubr.f32.gmra.mrb[0].mxu0 %v124
  %v1255 = vpop.f32.mrb[0].mxu0
  %v1256 = vadd.f32 0.0, %v1255
  %v1257 = vpop.f32.mrb[0].mxu0
  %v1258 = vadd.f32 0.0, %v1257
  %1259 = vmatprep.mubr.f32.mxu0 %v215
  %1260 = vmatmul.mubr.f32.gmra.mrb[0].mxu0 %v126
  %v1261 = vpop.f32.mrb[0].mxu0
  %v1262 = vadd.f32 0.0, %v1261
  %v1263 = vpop.f32.mrb[0].mxu0
  %v1264 = vadd.f32 0.0, %v1263
  %1265 = vmatprep.mubr.f32.mxu0 %v218
  %1266 = vmatmul.mubr.f32.gmra.mrb[0].mxu0 %v128
  %v1267 = vpop.f32.mrb[0].mxu0
  %v1268 = vadd.f32 0.0, %v1267
  %v1269 = vpop.f32.mrb[0].mxu0
  %v1270 = vadd.f32 0.0, %v1269
  %1271 = vmatprep.mubr.f32.mxu0 %v221
  %1272 = vmatmul.mubr.f32.gmra.mrb[0].mxu0 %v130
  %v1273 = vpop.f32.mrb[0].mxu0
  %v1274 = vadd.f32 0.0, %v1273
  %v1275 = vpop.f32.mrb[0].mxu0
  %v1276 = vadd.f32 0.0, %v1275
  %1277 = vdwg.mxu0
  %v1278 = vld [vmem:[%s0 + $0xc0] sm:$0xff]
  %v1279 = vld [vmem:[%s0 + $0xc8] sm:$0xff]
  %v1280 = vld [vmem:[%s0 + $0xd0] sm:$0xff]
  %v1281 = vld [vmem:[%s0 + $0xd8] sm:$0xff]
  %v1282 = vld [vmem:[%s0 + $0xe0] sm:$0xff]
  %v1283 = vld [vmem:[%s0 + $0xe8] sm:$0xff]
  %v1284 = vld [vmem:[%s0 + $0xf0] sm:$0xff]
  %v1285 = vld [vmem:[%s0 + $0xf8] sm:$0xff]
  %v1286 = vld [vmem:[%s0 + $0x100] sm:$0xff]
  %v1287 = vld [vmem:[%s0 + $0x108] sm:$0xff]
  %v1288 = vld [vmem:[%s0 + $0x110] sm:$0xff]
  %v1289 = vld [vmem:[%s0 + $0x118] sm:$0xff]
  %v1290 = vld [vmem:[%s0 + $0x120] sm:$0xff]
  %v1291 = vld [vmem:[%s0 + $0x128] sm:$0xff]
  %v1292 = vld [vmem:[%s0 + $0x130] sm:$0xff]
  %v1293 = vld [vmem:[%s0 + $0x138] sm:$0xff]
  %v1294 = vld [vmem:[%s0 + $0x140] sm:$0xff]
  %v1295 = vld [vmem:[%s0 + $0x148] sm:$0xff]
  %v1296 = vld [vmem:[%s0 + $0x150] sm:$0xff]
  %v1297 = vld [vmem:[%s0 + $0x158] sm:$0xff]
  %v1298 = vld [vmem:[%s0 + $0x160] sm:$0xff]
  %v1299 = vld [vmem:[%s0 + $0x168] sm:$0xff]
  %v1300 = vld [vmem:[%s0 + $0x170] sm:$0xff]
  %v1301 = vld [vmem:[%s0 + $0x178] sm:$0xff]
  %v1302 = vld [vmem:[%s0 + $0x180] sm:$0xff]
  %v1303 = vld [vmem:[%s0 + $0x188] sm:$0xff]
  %v1304 = vld [vmem:[%s0 + $0x190] sm:$0xff]
  %v1305 = vld [vmem:[%s0 + $0x198] sm:$0xff]
  %v1306 = vld [vmem:[%s0 + $0x1a0] sm:$0xff]
  %v1307 = vld [vmem:[%s0 + $0x1a8] sm:$0xff]
  %v1308 = vld [vmem:[%s0 + $0x1b0] sm:$0xff]
  %v1309 = vld [vmem:[%s0 + $0x1b8] sm:$0xff]
  %v1310 = vld [vmem:[%s0 + $0x1c0] sm:$0xff]
  %v1311 = vld [vmem:[%s0 + $0x1c8] sm:$0xff]
  %v1312 = vld [vmem:[%s0 + $0x1d0] sm:$0xff]
  %v1313 = vld [vmem:[%s0 + $0x1d8] sm:$0xff]
  %v1314 = vld [vmem:[%s0 + $0x1e0] sm:$0xff]
  %v1315 = vld [vmem:[%s0 + $0x1e8] sm:$0xff]
  %v1316 = vld [vmem:[%s0 + $0x1f0] sm:$0xff]
  %v1317 = vld [vmem:[%s0 + $0x1f8] sm:$0xff]
  %1318 = vmatprep.subr.mxu0 %v1279
  %1319 = vmatpush1.msra.mxu0 %v1278
  %1320 = vmatprep.subr.mxu0 %v1281
  %1321 = vmatpush1.msra.mxu0 %v1280
  %1322 = vmatprep.subr.mxu0 %v1283
  %1323 = vmatpush1.msra.mxu0 %v1282
  %1324 = vmatprep.subr.mxu0 %v1285
  %1325 = vmatpush1.msra.mxu0 %v1284
  %1326 = vmatprep.subr.mxu0 %v1287
  %1327 = vmatpush1.msra.mxu0 %v1286
  %1328 = vmatprep.subr.mxu0 %v1289
  %1329 = vmatpush1.msra.mxu0 %v1288
  %1330 = vmatprep.subr.mxu0 %v1291
  %1331 = vmatpush1.msra.mxu0 %v1290
  %1332 = vmatprep.subr.mxu0 %v1293
  %1333 = vmatpush1.msra.mxu0 %v1292
  %1334 = vmatprep.subr.mxu0 %v1295
  %1335 = vmatpush1.msra.mxu0 %v1294
  %1336 = vmatprep.subr.mxu0 %v1297
  %1337 = vmatpush1.msra.mxu0 %v1296
  %1338 = vmatprep.subr.mxu0 %v1299
  %1339 = vmatpush1.msra.mxu0 %v1298
  %1340 = vmatprep.subr.mxu0 %v1301
  %1341 = vmatpush1.msra.mxu0 %v1300
  %1342 = vmatprep.subr.mxu0 %v1303
  %1343 = vmatpush1.msra.mxu0 %v1302
  %1344 = vmatprep.subr.mxu0 %v1305
  %1345 = vmatpush1.msra.mxu0 %v1304
  %1346 = vmatprep.subr.mxu0 %v1307
  %1347 = vmatpush1.msra.mxu0 %v1306
  %1348 = vmatprep.subr.mxu0 %v1309
  %1349 = vmatpush1.msra.mxu0 %v1308
  %1350 = vmatprep.subr.mxu0 %v1311
  %1351 = vmatpush1.msra.mxu0 %v1310
  %1352 = vmatprep.subr.mxu0 %v1313
  %1353 = vmatpush1.msra.mxu0 %v1312
  %1354 = vmatprep.subr.mxu0 %v1315
  %1355 = vmatpush1.msra.mxu0 %v1314
  %1356 = vmatprep.subr.mxu0 %v1317
  %1357 = vmatpush1.msra.mxu0 %v1316
  %1358 = vmatprep.subr.mxu0 0.0
  %1359 = vmatpush1.msra.mxu0 0.0
  %1360 = vmatprep.subr.mxu0 0.0
  %1361 = vmatpush1.msra.mxu0 0.0
  %1362 = vmatprep.subr.mxu0 0.0
  %1363 = vmatpush1.msra.mxu0 0.0
  %1364 = vmatprep.subr.mxu0 0.0
  %1365 = vmatpush1.msra.mxu0 0.0
  %1366 = vmatprep.subr.mxu0 0.0
  %1367 = vmatpush1.msra.mxu0 0.0
  %1368 = vmatprep.subr.mxu0 0.0
  %1369 = vmatpush1.msra.mxu0 0.0
  %1370 = vmatprep.subr.mxu0 0.0
  %1371 = vmatpush1.msra.mxu0 0.0
  %1372 = vmatprep.subr.mxu0 0.0
  %1373 = vmatpush1.msra.mxu0 0.0
  %1374 = vmatprep.subr.mxu0 0.0
  %1375 = vmatpush1.msra.mxu0 0.0
  %1376 = vmatprep.subr.mxu0 0.0
  %1377 = vmatpush1.msra.mxu0 0.0
  %1378 = vmatprep.subr.mxu0 0.0
  %1379 = vmatpush1.msra.mxu0 0.0
  %1380 = vmatprep.subr.mxu0 0.0
  %1381 = vmatpush1.msra.mxu0 0.0
  %1382 = vmatprep.mubr.f32.mxu0 %v134
  %1383 = vmatmul.mubr.f32.gmra.mrb[0].mxu0 %v72
  %v1384 = vpop.f32.mrb[0].mxu0
  %v1385 = vadd.f32 0.0, %v1384
  %v1386 = vpop.f32.mrb[0].mxu0
  %v1387 = vadd.f32 0.0, %v1386
  %1388 = vmatprep.mubr.f32.mxu0 %v137
  %1389 = vmatmul.mubr.f32.gmra.mrb[0].mxu0 %v74
  %v1390 = vpop.f32.mrb[0].mxu0
  %v1391 = vadd.f32 0.0, %v1390
  %v1392 = vpop.f32.mrb[0].mxu0
  %v1393 = vadd.f32 0.0, %v1392
  %1394 = vmatprep.mubr.f32.mxu0 %v140
  %1395 = vmatmul.mubr.f32.gmra.mrb[0].mxu0 %v76
  %v1396 = vpop.f32.mrb[0].mxu0
  %v1397 = vadd.f32 0.0, %v1396
  %v1398 = vpop.f32.mrb[0].mxu0
  %v1399 = vadd.f32 0.0, %v1398
  %1400 = vmatprep.mubr.f32.mxu0 %v143
  %1401 = vmatmul.mubr.f32.gmra.mrb[0].mxu0 %v78
  %v1402 = vpop.f32.mrb[0].mxu0
  %v1403 = vadd.f32 0.0, %v1402
  %v1404 = vpop.f32.mrb[0].mxu0
  %v1405 = vadd.f32 0.0, %v1404
  %1406 = vmatprep.mubr.f32.mxu0 %v146
  %1407 = vmatmul.mubr.f32.gmra.mrb[0].mxu0 %v80
  %v1408 = vpop.f32.mrb[0].mxu0
  %v1409 = vadd.f32 0.0, %v1408
  %v1410 = vpop.f32.mrb[0].mxu0
  %v1411 = vadd.f32 0.0, %v1410
  %1412 = vmatprep.mubr.f32.mxu0 %v149
  %1413 = vmatmul.mubr.f32.gmra.mrb[0].mxu0 %v82
  %v1414 = vpop.f32.mrb[0].mxu0
  %v1415 = vadd.f32 0.0, %v1414
  %v1416 = vpop.f32.mrb[0].mxu0
  %v1417 = vadd.f32 0.0, %v1416
  %1418 = vmatprep.mubr.f32.mxu0 %v152
  %1419 = vmatmul.mubr.f32.gmra.mrb[0].mxu0 %v84
  %v1420 = vpop.f32.mrb[0].mxu0
  %v1421 = vadd.f32 0.0, %v1420
  %v1422 = vpop.f32.mrb[0].mxu0
  %v1423 = vadd.f32 0.0, %v1422
  %1424 = vmatprep.mubr.f32.mxu0 %v155
  %1425 = vmatmul.mubr.f32.gmra.mrb[0].mxu0 %v86
  %v1426 = vpop.f32.mrb[0].mxu0
  %v1427 = vadd.f32 0.0, %v1426
  %v1428 = vpop.f32.mrb[0].mxu0
  %v1429 = vadd.f32 0.0, %v1428
  %1430 = vmatprep.mubr.f32.mxu0 %v158
  %1431 = vmatmul.mubr.f32.gmra.mrb[0].mxu0 %v88
  %v1432 = vpop.f32.mrb[0].mxu0
  %v1433 = vadd.f32 0.0, %v1432
  %v1434 = vpop.f32.mrb[0].mxu0
  %v1435 = vadd.f32 0.0, %v1434
  %1436 = vmatprep.mubr.f32.mxu0 %v161
  %1437 = vmatmul.mubr.f32.gmra.mrb[0].mxu0 %v90
  %v1438 = vpop.f32.mrb[0].mxu0
  %v1439 = vadd.f32 0.0, %v1438
  %v1440 = vpop.f32.mrb[0].mxu0
  %v1441 = vadd.f32 0.0, %v1440
  %1442 = vmatprep.mubr.f32.mxu0 %v164
  %1443 = vmatmul.mubr.f32.gmra.mrb[0].mxu0 %v92
  %v1444 = vpop.f32.mrb[0].mxu0
  %v1445 = vadd.f32 0.0, %v1444
  %v1446 = vpop.f32.mrb[0].mxu0
  %v1447 = vadd.f32 0.0, %v1446
  %1448 = vmatprep.mubr.f32.mxu0 %v167
  %1449 = vmatmul.mubr.f32.gmra.mrb[0].mxu0 %v94
  %v1450 = vpop.f32.mrb[0].mxu0
  %v1451 = vadd.f32 0.0, %v1450
  %v1452 = vpop.f32.mrb[0].mxu0
  %v1453 = vadd.f32 0.0, %v1452
  %1454 = vmatprep.mubr.f32.mxu0 %v170
  %1455 = vmatmul.mubr.f32.gmra.mrb[0].mxu0 %v96
  %v1456 = vpop.f32.mrb[0].mxu0
  %v1457 = vadd.f32 0.0, %v1456
  %v1458 = vpop.f32.mrb[0].mxu0
  %v1459 = vadd.f32 0.0, %v1458
  %1460 = vmatprep.mubr.f32.mxu0 %v173
  %1461 = vmatmul.mubr.f32.gmra.mrb[0].mxu0 %v98
  %v1462 = vpop.f32.mrb[0].mxu0
  %v1463 = vadd.f32 0.0, %v1462
  %v1464 = vpop.f32.mrb[0].mxu0
  %v1465 = vadd.f32 0.0, %v1464
  %1466 = vmatprep.mubr.f32.mxu0 %v176
  %1467 = vmatmul.mubr.f32.gmra.mrb[0].mxu0 %v100
  %v1468 = vpop.f32.mrb[0].mxu0
  %v1469 = vadd.f32 0.0, %v1468
  %v1470 = vpop.f32.mrb[0].mxu0
  %v1471 = vadd.f32 0.0, %v1470
  %1472 = vmatprep.mubr.f32.mxu0 %v179
  %1473 = vmatmul.mubr.f32.gmra.mrb[0].mxu0 %v102
  %v1474 = vpop.f32.mrb[0].mxu0
  %v1475 = vadd.f32 0.0, %v1474
  %v1476 = vpop.f32.mrb[0].mxu0
  %v1477 = vadd.f32 0.0, %v1476
  %1478 = vmatprep.mubr.f32.mxu0 %v182
  %1479 = vmatmul.mubr.f32.gmra.mrb[0].mxu0 %v104
  %v1480 = vpop.f32.mrb[0].mxu0
  %v1481 = vadd.f32 0.0, %v1480
  %v1482 = vpop.f32.mrb[0].mxu0
  %v1483 = vadd.f32 0.0, %v1482
  %1484 = vmatprep.mubr.f32.mxu0 %v185
  %1485 = vmatmul.mubr.f32.gmra.mrb[0].mxu0 %v106
  %v1486 = vpop.f32.mrb[0].mxu0
  %v1487 = vadd.f32 0.0, %v1486
  %v1488 = vpop.f32.mrb[0].mxu0
  %v1489 = vadd.f32 0.0, %v1488
  %1490 = vmatprep.mubr.f32.mxu0 %v188
  %1491 = vmatmul.mubr.f32.gmra.mrb[0].mxu0 %v108
  %v1492 = vpop.f32.mrb[0].mxu0
  %v1493 = vadd.f32 0.0, %v1492
  %v1494 = vpop.f32.mrb[0].mxu0
  %v1495 = vadd.f32 0.0, %v1494
  %1496 = vmatprep.mubr.f32.mxu0 %v191
  %1497 = vmatmul.mubr.f32.gmra.mrb[0].mxu0 %v110
  %v1498 = vpop.f32.mrb[0].mxu0
  %v1499 = vadd.f32 0.0, %v1498
  %v1500 = vpop.f32.mrb[0].mxu0
  %v1501 = vadd.f32 0.0, %v1500
  %1502 = vmatprep.mubr.f32.mxu0 %v194
  %1503 = vmatmul.mubr.f32.gmra.mrb[0].mxu0 %v112
  %v1504 = vpop.f32.mrb[0].mxu0
  %v1505 = vadd.f32 0.0, %v1504
  %v1506 = vpop.f32.mrb[0].mxu0
  %v1507 = vadd.f32 0.0, %v1506
  %1508 = vmatprep.mubr.f32.mxu0 %v197
  %1509 = vmatmul.mubr.f32.gmra.mrb[0].mxu0 %v114
  %v1510 = vpop.f32.mrb[0].mxu0
  %v1511 = vadd.f32 0.0, %v1510
  %v1512 = vpop.f32.mrb[0].mxu0
  %v1513 = vadd.f32 0.0, %v1512
  %1514 = vmatprep.mubr.f32.mxu0 %v200
  %1515 = vmatmul.mubr.f32.gmra.mrb[0].mxu0 %v116
  %v1516 = vpop.f32.mrb[0].mxu0
  %v1517 = vadd.f32 0.0, %v1516
  %v1518 = vpop.f32.mrb[0].mxu0
  %v1519 = vadd.f32 0.0, %v1518
  %1520 = vmatprep.mubr.f32.mxu0 %v203
  %1521 = vmatmul.mubr.f32.gmra.mrb[0].mxu0 %v118
  %v1522 = vpop.f32.mrb[0].mxu0
  %v1523 = vadd.f32 0.0, %v1522
  %v1524 = vpop.f32.mrb[0].mxu0
  %v1525 = vadd.f32 0.0, %v1524
  %1526 = vmatprep.mubr.f32.mxu0 %v206
  %1527 = vmatmul.mubr.f32.gmra.mrb[0].mxu0 %v120
  %v1528 = vpop.f32.mrb[0].mxu0
  %v1529 = vadd.f32 0.0, %v1528
  %v1530 = vpop.f32.mrb[0].mxu0
  %v1531 = vadd.f32 0.0, %v1530
  %1532 = vmatprep.mubr.f32.mxu0 %v209
  %1533 = vmatmul.mubr.f32.gmra.mrb[0].mxu0 %v122
  %v1534 = vpop.f32.mrb[0].mxu0
  %v1535 = vadd.f32 0.0, %v1534
  %v1536 = vpop.f32.mrb[0].mxu0
  %v1537 = vadd.f32 0.0, %v1536
  %1538 = vmatprep.mubr.f32.mxu0 %v212
  %1539 = vmatmul.mubr.f32.gmra.mrb[0].mxu0 %v124
  %v1540 = vpop.f32.mrb[0].mxu0
  %v1541 = vadd.f32 0.0, %v1540
  %v1542 = vpop.f32.mrb[0].mxu0
  %v1543 = vadd.f32 0.0, %v1542
  %1544 = vmatprep.mubr.f32.mxu0 %v215
  %1545 = vmatmul.mubr.f32.gmra.mrb[0].mxu0 %v126
  %v1546 = vpop.f32.mrb[0].mxu0
  %v1547 = vadd.f32 0.0, %v1546
  %v1548 = vpop.f32.mrb[0].mxu0
  %v1549 = vadd.f32 0.0, %v1548
  %1550 = vmatprep.mubr.f32.mxu0 %v218
  %1551 = vmatmul.mubr.f32.gmra.mrb[0].mxu0 %v128
  %v1552 = vpop.f32.mrb[0].mxu0
  %v1553 = vadd.f32 0.0, %v1552
  %v1554 = vpop.f32.mrb[0].mxu0
  %v1555 = vadd.f32 0.0, %v1554
  %1556 = vmatprep.mubr.f32.mxu0 %v221
  %1557 = vmatmul.mubr.f32.gmra.mrb[0].mxu0 %v130
  %v1558 = vpop.f32.mrb[0].mxu0
  %v1559 = vadd.f32 0.0, %v1558
  %v1560 = vpop.f32.mrb[0].mxu0
  %v1561 = vadd.f32 0.0, %v1560
  %1562 = vdwg.mxu0
  %v1563 = vmax.f32 %v1100, %v1190
  %v1564 = vmax.f32 %v1102, %v1192
  %v1565 = vmax.f32 %v1106, %v1196
  %v1566 = vmax.f32 %v1108, %v1198
  %v1567 = vmax.f32 %v1112, %v1202
  %v1568 = vmax.f32 %v1114, %v1204
  %v1569 = vmax.f32 %v1118, %v1208
  %v1570 = vmax.f32 %v1120, %v1210
  %v1571 = vmax.f32 %v1124, %v1214
  %v1572 = vmax.f32 %v1126, %v1216
  %v1573 = vmax.f32 %v1130, %v1220
  %v1574 = vmax.f32 %v1132, %v1222
  %v1575 = vmax.f32 %v1136, %v1226
  %v1576 = vmax.f32 %v1138, %v1228
  %v1577 = vmax.f32 %v1142, %v1232
  %v1578 = vmax.f32 %v1144, %v1234
  %v1579 = vmax.f32 %v1148, %v1238
  %v1580 = vmax.f32 %v1150, %v1240
  %v1581 = vmax.f32 %v1154, %v1244
  %v1582 = vmax.f32 %v1156, %v1246
  %v1583 = vmax.f32 %v1160, %v1250
  %v1584 = vmax.f32 %v1162, %v1252
  %v1585 = vmax.f32 %v1166, %v1256
  %v1586 = vmax.f32 %v1168, %v1258
  %v1587 = vmax.f32 %v1172, %v1262
  %v1588 = vmax.f32 %v1174, %v1264
  %v1589 = vmax.f32 %v1178, %v1268
  %v1590 = vmax.f32 %v1180, %v1270
  %v1591 = vmax.f32 %v1184, %v1274
  %v1592 = vmax.f32 %v1186, %v1276
  %v1593 = vmax.f32 %v1385, %v1475
  %v1594 = vmax.f32 %v1387, %v1477
  %v1595 = vmax.f32 %v1391, %v1481
  %v1596 = vmax.f32 %v1393, %v1483
  %v1597 = vmax.f32 %v1397, %v1487
  %v1598 = vmax.f32 %v1399, %v1489
  %v1599 = vmax.f32 %v1403, %v1493
  %v1600 = vmax.f32 %v1405, %v1495
  %v1601 = vmax.f32 %v1409, %v1499
  %v1602 = vmax.f32 %v1411, %v1501
  %v1603 = vmax.f32 %v1415, %v1505
  %v1604 = vmax.f32 %v1417, %v1507
  %v1605 = vmax.f32 %v1421, %v1511
  %v1606 = vmax.f32 %v1423, %v1513
  %v1607 = vmax.f32 %v1427, %v1517
  %v1608 = vmax.f32 %v1429, %v1519
  %v1609 = vmax.f32 %v1433, %v1523
  %v1610 = vmax.f32 %v1435, %v1525
  %v1611 = vmax.f32 %v1439, %v1529
  %v1612 = vmax.f32 %v1441, %v1531
  %v1613 = vmax.f32 %v1445, %v1535
  %v1614 = vmax.f32 %v1447, %v1537
  %v1615 = vmax.f32 %v1451, %v1541
  %v1616 = vmax.f32 %v1453, %v1543
  %v1617 = vmax.f32 %v1457, %v1547
  %v1618 = vmax.f32 %v1459, %v1549
  %v1619 = vmax.f32 %v1463, %v1553
  %v1620 = vmax.f32 %v1465, %v1555
  %v1621 = vmax.f32 %v1469, %v1559
  %v1622 = vmax.f32 %v1471, %v1561
  %v1623 = vmax.f32 %v1563, %v1593
  %v1624 = vmax.f32 %v1564, %v1594
  %v1625 = vmax.f32 %v1565, %v1595
  %v1626 = vmax.f32 %v1566, %v1596
  %v1627 = vmax.f32 %v1567, %v1597
  %v1628 = vmax.f32 %v1568, %v1598
  %v1629 = vmax.f32 %v1569, %v1599
  %v1630 = vmax.f32 %v1570, %v1600
  %v1631 = vmax.f32 %v1571, %v1601
  %v1632 = vmax.f32 %v1572, %v1602
  %v1633 = vmax.f32 %v1573, %v1603
  %v1634 = vmax.f32 %v1574, %v1604
  %v1635 = vmax.f32 %v1575, %v1605
  %v1636 = vmax.f32 %v1576, %v1606
  %v1637 = vmax.f32 %v1577, %v1607
  %v1638 = vmax.f32 %v1578, %v1608
  %v1639 = vmax.f32 %v1579, %v1609
  %v1640 = vmax.f32 %v1580, %v1610
  %v1641 = vmax.f32 %v1581, %v1611
  %v1642 = vmax.f32 %v1582, %v1612
  %v1643 = vmax.f32 %v1583, %v1613
  %v1644 = vmax.f32 %v1584, %v1614
  %v1645 = vmax.f32 %v1585, %v1615
  %v1646 = vmax.f32 %v1586, %v1616
  %v1647 = vmax.f32 %v1587, %v1617
  %v1648 = vmax.f32 %v1588, %v1618
  %v1649 = vmax.f32 %v1589, %v1619
  %v1650 = vmax.f32 %v1590, %v1620
  %v1651 = vmax.f32 %v1591, %v1621
  %v1652 = vmax.f32 %v1592, %v1622
  %v1653 = vadd.f32 %v1623, %v861
  %v1654 = vadd.f32 %v1624, %v861
  %v1655 = vadd.f32 %v1625, %v866
  %v1656 = vadd.f32 %v1626, %v866
  %v1657 = vadd.f32 %v1627, %v871
  %v1658 = vadd.f32 %v1628, %v871
  %v1659 = vadd.f32 %v1629, %v876
  %v1660 = vadd.f32 %v1630, %v876
  %v1661 = vadd.f32 %v1631, %v881
  %v1662 = vadd.f32 %v1632, %v881
  %v1663 = vadd.f32 %v1633, %v886
  %v1664 = vadd.f32 %v1634, %v886
  %v1665 = vadd.f32 %v1635, %v891
  %v1666 = vadd.f32 %v1636, %v891
  %v1667 = vadd.f32 %v1637, %v896
  %v1668 = vadd.f32 %v1638, %v896
  %v1669 = vadd.f32 %v1639, %v901
  %v1670 = vadd.f32 %v1640, %v901
  %v1671 = vadd.f32 %v1641, %v906
  %v1672 = vadd.f32 %v1642, %v906
  %v1673 = vadd.f32 %v1643, %v911
  %v1674 = vadd.f32 %v1644, %v911
  %v1675 = vadd.f32 %v1645, %v916
  %v1676 = vadd.f32 %v1646, %v916
  %v1677 = vadd.f32 %v1647, %v921
  %v1678 = vadd.f32 %v1648, %v921
  %v1679 = vadd.f32 %v1649, %v926
  %v1680 = vadd.f32 %v1650, %v926
  %v1681 = vadd.f32 %v1651, %v931
  %v1682 = vadd.f32 %v1652, %v931
  %v1683 = vmax.f32 %v1653, 0.0
  %v1684 = vmax.f32 %v1654, 0.0
  %v1685 = vmax.f32 %v1655, 0.0
  %v1686 = vmax.f32 %v1656, 0.0
  %v1687 = vmax.f32 %v1657, 0.0
  %v1688 = vmax.f32 %v1658, 0.0
  %v1689 = vmax.f32 %v1659, 0.0
  %v1690 = vmax.f32 %v1660, 0.0
  %v1691 = vmax.f32 %v1661, 0.0
  %v1692 = vmax.f32 %v1662, 0.0
  %v1693 = vmax.f32 %v1663, 0.0
  %v1694 = vmax.f32 %v1664, 0.0
  %v1695 = vmax.f32 %v1665, 0.0
  %v1696 = vmax.f32 %v1666, 0.0
  %v1697 = vmax.f32 %v1667, 0.0
  %v1698 = vmax.f32 %v1668, 0.0
  %v1699 = vmax.f32 %v1669, 0.0
  %v1700 = vmax.f32 %v1670, 0.0
  %v1701 = vmax.f32 %v1671, 0.0
  %v1702 = vmax.f32 %v1672, 0.0
  %v1703 = vmax.f32 %v1673, 0.0
  %v1704 = vmax.f32 %v1674, 0.0
  %v1705 = vmax.f32 %v1675, 0.0
  %v1706 = vmax.f32 %v1676, 0.0
  %v1707 = vmax.f32 %v1677, 0.0
  %v1708 = vmax.f32 %v1678, 0.0
  %v1709 = vmax.f32 %v1679, 0.0
  %v1710 = vmax.f32 %v1680, 0.0
  %v1711 = vmax.f32 %v1681, 0.0
  %v1712 = vmax.f32 %v1682, 0.0
  %v1713 = vld [vmem:[%s3] sm:$0xff]
  %v1714 = vld [vmem:[%s3 + $0x8] sm:$0xff]
  %v1715 = vld [vmem:[%s3 + $0x10] sm:$0xff]
  %v1716 = vld [vmem:[%s3 + $0x18] sm:$0xff]
  %v1717 = vld [vmem:[%s3 + $0x20] sm:$0xff]
  %v1718 = vld [vmem:[%s3 + $0x28] sm:$0xff]
  %v1719 = vld [vmem:[%s3 + $0x30] sm:$0xff]
  %v1720 = vld [vmem:[%s3 + $0x38] sm:$0xff]
  %v1721 = vld [vmem:[%s3 + $0x40] sm:$0xff]
  %v1722 = vld [vmem:[%s3 + $0x48] sm:$0xff]
  %v1723 = vld [vmem:[%s3 + $0x50] sm:$0xff]
  %v1724 = vld [vmem:[%s3 + $0x58] sm:$0xff]
  %v1725 = vld [vmem:[%s3 + $0x60] sm:$0xff]
  %v1726 = vld [vmem:[%s3 + $0x68] sm:$0xff]
  %v1727 = vld [vmem:[%s3 + $0x70] sm:$0xff]
  %v1728 = vld [vmem:[%s3 + $0x78] sm:$0xff]
  %v1729 = vld [vmem:[%s3 + $0x80] sm:$0xff]
  %v1730 = vld [vmem:[%s3 + $0x88] sm:$0xff]
  %v1731 = vld [vmem:[%s3 + $0x90] sm:$0xff]
  %v1732 = vld [vmem:[%s3 + $0x98] sm:$0xff]
  %s1733 = scalar_lea.vmem %s3, 160
  %v1734 = vld [vmem:[%s1733] sm:$0xff]
  %v1735 = vld [vmem:[%s1733 + $0x8] sm:$0xff]
  %v1736 = vld [vmem:[%s1733 + $0x10] sm:$0xff]
  %v1737 = vld [vmem:[%s1733 + $0x18] sm:$0xff]
  %v1738 = vld [vmem:[%s1733 + $0x20] sm:$0xff]
  %v1739 = vld [vmem:[%s1733 + $0x28] sm:$0xff]
  %v1740 = vld [vmem:[%s1733 + $0x30] sm:$0xff]
  %v1741 = vld [vmem:[%s1733 + $0x38] sm:$0xff]
  %v1742 = vld [vmem:[%s1733 + $0x40] sm:$0xff]
  %v1743 = vld [vmem:[%s1733 + $0x48] sm:$0xff]
  %v1744 = vld [vmem:[%s1733 + $0x50] sm:$0xff]
  %v1745 = vld [vmem:[%s1733 + $0x58] sm:$0xff]
  %v1746 = vld [vmem:[%s1733 + $0x60] sm:$0xff]
  %v1747 = vld [vmem:[%s1733 + $0x68] sm:$0xff]
  %v1748 = vld [vmem:[%s1733 + $0x70] sm:$0xff]
  %v1749 = vld [vmem:[%s1733 + $0x78] sm:$0xff]
  %v1750 = vld [vmem:[%s1733 + $0x80] sm:$0xff]
  %v1751 = vld [vmem:[%s1733 + $0x88] sm:$0xff]
  %v1752 = vld [vmem:[%s1733 + $0x90] sm:$0xff]
  %v1753 = vld [vmem:[%s1733 + $0x98] sm:$0xff]
  %vm1754 = vcmask 982016
  %v1756 = vsel %vm1754, %v1734, 0
  %v1759 = vsel %vm1754, %v1735, 0
  %v1762 = vsel %vm1754, %v1736, 0
  %v1765 = vsel %vm1754, %v1737, 0
  %v1768 = vsel %vm1754, %v1738, 0
  %v1771 = vsel %vm1754, %v1739, 0
  %v1774 = vsel %vm1754, %v1740, 0
  %v1777 = vsel %vm1754, %v1741, 0
  %v1780 = vsel %vm1754, %v1742, 0
  %v1783 = vsel %vm1754, %v1743, 0
  %v1786 = vsel %vm1754, %v1744, 0
  %v1789 = vsel %vm1754, %v1745, 0
  %v1792 = vsel %vm1754, %v1746, 0
  %v1795 = vsel %vm1754, %v1747, 0
  %v1798 = vsel %vm1754, %v1748, 0
  %v1801 = vsel %vm1754, %v1749, 0
  %v1804 = vsel %vm1754, %v1750, 0
  %v1807 = vsel %vm1754, %v1751, 0
  %v1810 = vsel %vm1754, %v1752, 0
  %v1813 = vsel %vm1754, %v1753, 0
  %1815 = vmatprep.subr.mxu0 0.0
  %1816 = vmatpush1.msra.mxu0 %v1683
  %1817 = vmatprep.subr.mxu0 0.0
  %1818 = vmatpush1.msra.mxu0 %v1685
  %1819 = vmatprep.subr.mxu0 0.0
  %1820 = vmatpush1.msra.mxu0 %v1687
  %1821 = vmatprep.subr.mxu0 0.0
  %1822 = vmatpush1.msra.mxu0 %v1689
  %1823 = vmatprep.subr.mxu0 0.0
  %1824 = vmatpush1.msra.mxu0 %v1691
  %1825 = vmatprep.subr.mxu0 0.0
  %1826 = vmatpush1.msra.mxu0 %v1693
  %1827 = vmatprep.subr.mxu0 0.0
  %1828 = vmatpush1.msra.mxu0 %v1695
  %1829 = vmatprep.subr.mxu0 0.0
  %1830 = vmatpush1.msra.mxu0 %v1697
  %1831 = vmatprep.subr.mxu0 0.0
  %1832 = vmatpush1.msra.mxu0 %v1699
  %1833 = vmatprep.subr.mxu0 0.0
  %1834 = vmatpush1.msra.mxu0 %v1701
  %1835 = vmatprep.subr.mxu0 0.0
  %1836 = vmatpush1.msra.mxu0 %v1703
  %1837 = vmatprep.subr.mxu0 0.0
  %1838 = vmatpush1.msra.mxu0 %v1705
  %1839 = vmatprep.subr.mxu0 0.0
  %1840 = vmatpush1.msra.mxu0 %v1707
  %1841 = vmatprep.subr.mxu0 0.0
  %1842 = vmatpush1.msra.mxu0 %v1709
  %1843 = vmatprep.subr.mxu0 0.0
  %1844 = vmatpush1.msra.mxu0 %v1711
  %1845 = vmatprep.subr.mxu0 0.0
  %1846 = vmatpush1.msra.mxu0 0.0
  %1847 = vmatprep.subr.mxu0 0.0
  %1848 = vmatpush1.msra.mxu0 0.0
  %1849 = vmatprep.subr.mxu0 0.0
  %1850 = vmatpush1.msra.mxu0 0.0
  %1851 = vmatprep.subr.mxu0 0.0
  %1852 = vmatpush1.msra.mxu0 0.0
  %1853 = vmatprep.subr.mxu0 0.0
  %1854 = vmatpush1.msra.mxu0 0.0
  %1855 = vmatprep.subr.mxu0 0.0
  %1856 = vmatpush1.msra.mxu0 0.0
  %1857 = vmatprep.subr.mxu0 0.0
  %1858 = vmatpush1.msra.mxu0 0.0
  %1859 = vmatprep.subr.mxu0 0.0
  %1860 = vmatpush1.msra.mxu0 0.0
  %1861 = vmatprep.subr.mxu0 0.0
  %1862 = vmatpush1.msra.mxu0 0.0
  %1863 = vmatprep.subr.mxu0 0.0
  %1864 = vmatpush1.msra.mxu0 0.0
  %1865 = vmatprep.subr.mxu0 0.0
  %1866 = vmatpush1.msra.mxu0 0.0
  %1867 = vmatprep.subr.mxu0 0.0
  %1868 = vmatpush1.msra.mxu0 0.0
  %1869 = vmatprep.subr.mxu0 0.0
  %1870 = vmatpush1.msra.mxu0 0.0
  %1871 = vmatprep.subr.mxu0 0.0
  %1872 = vmatpush1.msra.mxu0 0.0
  %1873 = vmatprep.subr.mxu0 0.0
  %1874 = vmatpush1.msra.mxu0 0.0
  %1875 = vmatprep.subr.mxu0 0.0
  %1876 = vmatpush1.msra.mxu0 0.0
  %1877 = vmatprep.subr.mxu0 0.0
  %1878 = vmatpush1.msra.mxu0 0.0
  %1879 = vmatprep.mubr.f32.mxu0 0.0
  %1880 = vmatmul.mubr.f32.gmra.mrb[0].mxu0 %v1756
  %v1881 = vpop.f32.mrb[0].mxu0
  %v1882 = vadd.f32 0.0, %v1881
  %v1883 = vpop.f32.mrb[0].mxu0
  %1884 = vmatprep.mubr.f32.mxu0 0.0
  %1885 = vmatmul.mubr.f32.gmra.mrb[0].mxu0 %v1759
  %v1886 = vpop.f32.mrb[0].mxu0
  %v1887 = vadd.f32 0.0, %v1886
  %v1888 = vpop.f32.mrb[0].mxu0
  %1889 = vmatprep.mubr.f32.mxu0 0.0
  %1890 = vmatmul.mubr.f32.gmra.mrb[0].mxu0 %v1762
  %v1891 = vpop.f32.mrb[0].mxu0
  %v1892 = vadd.f32 0.0, %v1891
  %v1893 = vpop.f32.mrb[0].mxu0
  %1894 = vmatprep.mubr.f32.mxu0 0.0
  %1895 = vmatmul.mubr.f32.gmra.mrb[0].mxu0 %v1765
  %v1896 = vpop.f32.mrb[0].mxu0
  %v1897 = vadd.f32 0.0, %v1896
  %v1898 = vpop.f32.mrb[0].mxu0
  %1899 = vmatprep.mubr.f32.mxu0 0.0
  %1900 = vmatmul.mubr.f32.gmra.mrb[0].mxu0 %v1768
  %v1901 = vpop.f32.mrb[0].mxu0
  %v1902 = vadd.f32 0.0, %v1901
  %v1903 = vpop.f32.mrb[0].mxu0
  %1904 = vmatprep.mubr.f32.mxu0 0.0
  %1905 = vmatmul.mubr.f32.gmra.mrb[0].mxu0 %v1771
  %v1906 = vpop.f32.mrb[0].mxu0
  %v1907 = vadd.f32 0.0, %v1906
  %v1908 = vpop.f32.mrb[0].mxu0
  %1909 = vmatprep.mubr.f32.mxu0 0.0
  %1910 = vmatmul.mubr.f32.gmra.mrb[0].mxu0 %v1774
  %v1911 = vpop.f32.mrb[0].mxu0
  %v1912 = vadd.f32 0.0, %v1911
  %v1913 = vpop.f32.mrb[0].mxu0
  %1914 = vmatprep.mubr.f32.mxu0 0.0
  %1915 = vmatmul.mubr.f32.gmra.mrb[0].mxu0 %v1777
  %v1916 = vpop.f32.mrb[0].mxu0
  %v1917 = vadd.f32 0.0, %v1916
  %v1918 = vpop.f32.mrb[0].mxu0
  %1919 = vmatprep.mubr.f32.mxu0 0.0
  %1920 = vmatmul.mubr.f32.gmra.mrb[0].mxu0 %v1780
  %v1921 = vpop.f32.mrb[0].mxu0
  %v1922 = vadd.f32 0.0, %v1921
  %v1923 = vpop.f32.mrb[0].mxu0
  %1924 = vmatprep.mubr.f32.mxu0 0.0
  %1925 = vmatmul.mubr.f32.gmra.mrb[0].mxu0 %v1783
  %v1926 = vpop.f32.mrb[0].mxu0
  %v1927 = vadd.f32 0.0, %v1926
  %v1928 = vpop.f32.mrb[0].mxu0
  %1929 = vmatprep.mubr.f32.mxu0 0.0
  %1930 = vmatmul.mubr.f32.gmra.mrb[0].mxu0 %v1786
  %v1931 = vpop.f32.mrb[0].mxu0
  %v1932 = vadd.f32 0.0, %v1931
  %v1933 = vpop.f32.mrb[0].mxu0
  %1934 = vmatprep.mubr.f32.mxu0 0.0
  %1935 = vmatmul.mubr.f32.gmra.mrb[0].mxu0 %v1789
  %v1936 = vpop.f32.mrb[0].mxu0
  %v1937 = vadd.f32 0.0, %v1936
  %v1938 = vpop.f32.mrb[0].mxu0
  %1939 = vmatprep.mubr.f32.mxu0 0.0
  %1940 = vmatmul.mubr.f32.gmra.mrb[0].mxu0 %v1792
  %v1941 = vpop.f32.mrb[0].mxu0
  %v1942 = vadd.f32 0.0, %v1941
  %v1943 = vpop.f32.mrb[0].mxu0
  %1944 = vmatprep.mubr.f32.mxu0 0.0
  %1945 = vmatmul.mubr.f32.gmra.mrb[0].mxu0 %v1795
  %v1946 = vpop.f32.mrb[0].mxu0
  %v1947 = vadd.f32 0.0, %v1946
  %v1948 = vpop.f32.mrb[0].mxu0
  %1949 = vmatprep.mubr.f32.mxu0 0.0
  %1950 = vmatmul.mubr.f32.gmra.mrb[0].mxu0 %v1798
  %v1951 = vpop.f32.mrb[0].mxu0
  %v1952 = vadd.f32 0.0, %v1951
  %v1953 = vpop.f32.mrb[0].mxu0
  %1954 = vmatprep.mubr.f32.mxu0 0.0
  %1955 = vmatmul.mubr.f32.gmra.mrb[0].mxu0 %v1801
  %v1956 = vpop.f32.mrb[0].mxu0
  %v1957 = vadd.f32 0.0, %v1956
  %v1958 = vpop.f32.mrb[0].mxu0
  %1959 = vmatprep.mubr.f32.mxu0 0.0
  %1960 = vmatmul.mubr.f32.gmra.mrb[0].mxu0 %v1804
  %v1961 = vpop.f32.mrb[0].mxu0
  %v1962 = vadd.f32 0.0, %v1961
  %v1963 = vpop.f32.mrb[0].mxu0
  %1964 = vmatprep.mubr.f32.mxu0 0.0
  %1965 = vmatmul.mubr.f32.gmra.mrb[0].mxu0 %v1807
  %v1966 = vpop.f32.mrb[0].mxu0
  %v1967 = vadd.f32 0.0, %v1966
  %v1968 = vpop.f32.mrb[0].mxu0
  %1969 = vmatprep.mubr.f32.mxu0 0.0
  %1970 = vmatmul.mubr.f32.gmra.mrb[0].mxu0 %v1810
  %v1971 = vpop.f32.mrb[0].mxu0
  %v1972 = vadd.f32 0.0, %v1971
  %v1973 = vpop.f32.mrb[0].mxu0
  %1974 = vmatprep.mubr.f32.mxu0 0.0
  %1975 = vmatmul.mubr.f32.gmra.mrb[0].mxu0 %v1813
  %v1976 = vpop.f32.mrb[0].mxu0
  %v1977 = vadd.f32 0.0, %v1976
  %v1978 = vpop.f32.mrb[0].mxu0
  %1979 = vdwg.mxu0
  %v1981 = vsel %vm1754, %v1713, 0
  %v1984 = vsel %vm1754, %v1714, 0
  %v1987 = vsel %vm1754, %v1715, 0
  %v1990 = vsel %vm1754, %v1716, 0
  %v1993 = vsel %vm1754, %v1717, 0
  %v1996 = vsel %vm1754, %v1718, 0
  %v1999 = vsel %vm1754, %v1719, 0
  %v2002 = vsel %vm1754, %v1720, 0
  %v2005 = vsel %vm1754, %v1721, 0
  %v2008 = vsel %vm1754, %v1722, 0
  %v2011 = vsel %vm1754, %v1723, 0
  %v2014 = vsel %vm1754, %v1724, 0
  %v2017 = vsel %vm1754, %v1725, 0
  %v2020 = vsel %vm1754, %v1726, 0
  %v2023 = vsel %vm1754, %v1727, 0
  %v2026 = vsel %vm1754, %v1728, 0
  %v2029 = vsel %vm1754, %v1729, 0
  %v2032 = vsel %vm1754, %v1730, 0
  %v2035 = vsel %vm1754, %v1731, 0
  %v2038 = vsel %vm1754, %v1732, 0
  %2040 = vmatprep.subr.mxu0 0.0
  %2041 = vmatpush1.msra.mxu0 %v963
  %2042 = vmatprep.subr.mxu0 0.0
  %2043 = vmatpush1.msra.mxu0 %v965
  %2044 = vmatprep.subr.mxu0 0.0
  %2045 = vmatpush1.msra.mxu0 %v967
  %2046 = vmatprep.subr.mxu0 0.0
  %2047 = vmatpush1.msra.mxu0 %v969
  %2048 = vmatprep.subr.mxu0 0.0
  %2049 = vmatpush1.msra.mxu0 %v971
  %2050 = vmatprep.subr.mxu0 0.0
  %2051 = vmatpush1.msra.mxu0 %v973
  %2052 = vmatprep.subr.mxu0 0.0
  %2053 = vmatpush1.msra.mxu0 %v975
  %2054 = vmatprep.subr.mxu0 0.0
  %2055 = vmatpush1.msra.mxu0 %v977
  %2056 = vmatprep.subr.mxu0 0.0
  %2057 = vmatpush1.msra.mxu0 %v979
  %2058 = vmatprep.subr.mxu0 0.0
  %2059 = vmatpush1.msra.mxu0 %v981
  %2060 = vmatprep.subr.mxu0 0.0
  %2061 = vmatpush1.msra.mxu0 %v983
  %2062 = vmatprep.subr.mxu0 0.0
  %2063 = vmatpush1.msra.mxu0 %v985
  %2064 = vmatprep.subr.mxu0 0.0
  %2065 = vmatpush1.msra.mxu0 %v987
  %2066 = vmatprep.subr.mxu0 0.0
  %2067 = vmatpush1.msra.mxu0 %v989
  %2068 = vmatprep.subr.mxu0 0.0
  %2069 = vmatpush1.msra.mxu0 %v991
  %2070 = vmatprep.subr.mxu0 0.0
  %2071 = vmatpush1.msra.mxu0 0.0
  %2072 = vmatprep.subr.mxu0 0.0
  %2073 = vmatpush1.msra.mxu0 0.0
  %2074 = vmatprep.subr.mxu0 0.0
  %2075 = vmatpush1.msra.mxu0 0.0
  %2076 = vmatprep.subr.mxu0 0.0
  %2077 = vmatpush1.msra.mxu0 0.0
  %2078 = vmatprep.subr.mxu0 0.0
  %2079 = vmatpush1.msra.mxu0 0.0
  %2080 = vmatprep.subr.mxu0 0.0
  %2081 = vmatpush1.msra.mxu0 0.0
  %2082 = vmatprep.subr.mxu0 0.0
  %2083 = vmatpush1.msra.mxu0 0.0
  %2084 = vmatprep.subr.mxu0 0.0
  %2085 = vmatpush1.msra.mxu0 0.0
  %2086 = vmatprep.subr.mxu0 0.0
  %2087 = vmatpush1.msra.mxu0 0.0
  %2088 = vmatprep.subr.mxu0 0.0
  %2089 = vmatpush1.msra.mxu0 0.0
  %2090 = vmatprep.subr.mxu0 0.0
  %2091 = vmatpush1.msra.mxu0 0.0
  %2092 = vmatprep.subr.mxu0 0.0
  %2093 = vmatpush1.msra.mxu0 0.0
  %2094 = vmatprep.subr.mxu0 0.0
  %2095 = vmatpush1.msra.mxu0 0.0
  %2096 = vmatprep.subr.mxu0 0.0
  %2097 = vmatpush1.msra.mxu0 0.0
  %2098 = vmatprep.subr.mxu0 0.0
  %2099 = vmatpush1.msra.mxu0 0.0
  %2100 = vmatprep.subr.mxu0 0.0
  %2101 = vmatpush1.msra.mxu0 0.0
  %2102 = vmatprep.subr.mxu0 0.0
  %2103 = vmatpush1.msra.mxu0 0.0
  %2104 = vmatprep.mubr.f32.mxu0 0.0
  %2105 = vmatmul.mubr.f32.gmra.mrb[0].mxu0 %v1981
  %v2106 = vpop.f32.mrb[0].mxu0
  %v2107 = vadd.f32 %v1882, %v2106
  %v2108 = vpop.f32.mrb[0].mxu0
  %2109 = vmatprep.mubr.f32.mxu0 0.0
  %2110 = vmatmul.mubr.f32.gmra.mrb[0].mxu0 %v1984
  %v2111 = vpop.f32.mrb[0].mxu0
  %v2112 = vadd.f32 %v1887, %v2111
  %v2113 = vpop.f32.mrb[0].mxu0
  %2114 = vmatprep.mubr.f32.mxu0 0.0
  %2115 = vmatmul.mubr.f32.gmra.mrb[0].mxu0 %v1987
  %v2116 = vpop.f32.mrb[0].mxu0
  %v2117 = vadd.f32 %v1892, %v2116
  %v2118 = vpop.f32.mrb[0].mxu0
  %2119 = vmatprep.mubr.f32.mxu0 0.0
  %2120 = vmatmul.mubr.f32.gmra.mrb[0].mxu0 %v1990
  %v2121 = vpop.f32.mrb[0].mxu0
  %v2122 = vadd.f32 %v1897, %v2121
  %v2123 = vpop.f32.mrb[0].mxu0
  %2124 = vmatprep.mubr.f32.mxu0 0.0
  %2125 = vmatmul.mubr.f32.gmra.mrb[0].mxu0 %v1993
  %v2126 = vpop.f32.mrb[0].mxu0
  %v2127 = vadd.f32 %v1902, %v2126
  %v2128 = vpop.f32.mrb[0].mxu0
  %2129 = vmatprep.mubr.f32.mxu0 0.0
  %2130 = vmatmul.mubr.f32.gmra.mrb[0].mxu0 %v1996
  %v2131 = vpop.f32.mrb[0].mxu0
  %v2132 = vadd.f32 %v1907, %v2131
  %v2133 = vpop.f32.mrb[0].mxu0
  %2134 = vmatprep.mubr.f32.mxu0 0.0
  %2135 = vmatmul.mubr.f32.gmra.mrb[0].mxu0 %v1999
  %v2136 = vpop.f32.mrb[0].mxu0
  %v2137 = vadd.f32 %v1912, %v2136
  %v2138 = vpop.f32.mrb[0].mxu0
  %2139 = vmatprep.mubr.f32.mxu0 0.0
  %2140 = vmatmul.mubr.f32.gmra.mrb[0].mxu0 %v2002
  %v2141 = vpop.f32.mrb[0].mxu0
  %v2142 = vadd.f32 %v1917, %v2141
  %v2143 = vpop.f32.mrb[0].mxu0
  %2144 = vmatprep.mubr.f32.mxu0 0.0
  %2145 = vmatmul.mubr.f32.gmra.mrb[0].mxu0 %v2005
  %v2146 = vpop.f32.mrb[0].mxu0
  %v2147 = vadd.f32 %v1922, %v2146
  %v2148 = vpop.f32.mrb[0].mxu0
  %2149 = vmatprep.mubr.f32.mxu0 0.0
  %2150 = vmatmul.mubr.f32.gmra.mrb[0].mxu0 %v2008
  %v2151 = vpop.f32.mrb[0].mxu0
  %v2152 = vadd.f32 %v1927, %v2151
  %v2153 = vpop.f32.mrb[0].mxu0
  %2154 = vmatprep.mubr.f32.mxu0 0.0
  %2155 = vmatmul.mubr.f32.gmra.mrb[0].mxu0 %v2011
  %v2156 = vpop.f32.mrb[0].mxu0
  %v2157 = vadd.f32 %v1932, %v2156
  %v2158 = vpop.f32.mrb[0].mxu0
  %2159 = vmatprep.mubr.f32.mxu0 0.0
  %2160 = vmatmul.mubr.f32.gmra.mrb[0].mxu0 %v2014
  %v2161 = vpop.f32.mrb[0].mxu0
  %v2162 = vadd.f32 %v1937, %v2161
  %v2163 = vpop.f32.mrb[0].mxu0
  %2164 = vmatprep.mubr.f32.mxu0 0.0
  %2165 = vmatmul.mubr.f32.gmra.mrb[0].mxu0 %v2017
  %v2166 = vpop.f32.mrb[0].mxu0
  %v2167 = vadd.f32 %v1942, %v2166
  %v2168 = vpop.f32.mrb[0].mxu0
  %2169 = vmatprep.mubr.f32.mxu0 0.0
  %2170 = vmatmul.mubr.f32.gmra.mrb[0].mxu0 %v2020
  %v2171 = vpop.f32.mrb[0].mxu0
  %v2172 = vadd.f32 %v1947, %v2171
  %v2173 = vpop.f32.mrb[0].mxu0
  %2174 = vmatprep.mubr.f32.mxu0 0.0
  %2175 = vmatmul.mubr.f32.gmra.mrb[0].mxu0 %v2023
  %v2176 = vpop.f32.mrb[0].mxu0
  %v2177 = vadd.f32 %v1952, %v2176
  %v2178 = vpop.f32.mrb[0].mxu0
  %2179 = vmatprep.mubr.f32.mxu0 0.0
  %2180 = vmatmul.mubr.f32.gmra.mrb[0].mxu0 %v2026
  %v2181 = vpop.f32.mrb[0].mxu0
  %v2182 = vadd.f32 %v1957, %v2181
  %v2183 = vpop.f32.mrb[0].mxu0
  %2184 = vmatprep.mubr.f32.mxu0 0.0
  %2185 = vmatmul.mubr.f32.gmra.mrb[0].mxu0 %v2029
  %v2186 = vpop.f32.mrb[0].mxu0
  %v2187 = vadd.f32 %v1962, %v2186
  %v2188 = vpop.f32.mrb[0].mxu0
  %2189 = vmatprep.mubr.f32.mxu0 0.0
  %2190 = vmatmul.mubr.f32.gmra.mrb[0].mxu0 %v2032
  %v2191 = vpop.f32.mrb[0].mxu0
  %v2192 = vadd.f32 %v1967, %v2191
  %v2193 = vpop.f32.mrb[0].mxu0
  %2194 = vmatprep.mubr.f32.mxu0 0.0
  %2195 = vmatmul.mubr.f32.gmra.mrb[0].mxu0 %v2035
  %v2196 = vpop.f32.mrb[0].mxu0
  %v2197 = vadd.f32 %v1972, %v2196
  %v2198 = vpop.f32.mrb[0].mxu0
  %2199 = vmatprep.mubr.f32.mxu0 0.0
  %2200 = vmatmul.mubr.f32.gmra.mrb[0].mxu0 %v2038
  %v2201 = vpop.f32.mrb[0].mxu0
  %v2202 = vadd.f32 %v1977, %v2201
  %v2203 = vpop.f32.mrb[0].mxu0
  %2204 = vdwg.mxu0
  %s2205 = scalar_lea.vmem %s3, 320
  %v2206 = vld [vmem:[%s2205] sm:$0xff]
  %v2207 = vld [vmem:[%s2205 + $0x8] sm:$0xff]
  %v2208 = vld [vmem:[%s2205 + $0x10] sm:$0xff]
  %v2209 = vld [vmem:[%s2205 + $0x18] sm:$0xff]
  %v2210 = vld [vmem:[%s2205 + $0x20] sm:$0xff]
  %v2211 = vld [vmem:[%s2205 + $0x28] sm:$0xff]
  %v2212 = vld [vmem:[%s2205 + $0x30] sm:$0xff]
  %v2213 = vld [vmem:[%s2205 + $0x38] sm:$0xff]
  %v2214 = vld [vmem:[%s2205 + $0x40] sm:$0xff]
  %v2215 = vld [vmem:[%s2205 + $0x48] sm:$0xff]
  %v2216 = vld [vmem:[%s2205 + $0x50] sm:$0xff]
  %v2217 = vld [vmem:[%s2205 + $0x58] sm:$0xff]
  %v2218 = vld [vmem:[%s2205 + $0x60] sm:$0xff]
  %v2219 = vld [vmem:[%s2205 + $0x68] sm:$0xff]
  %v2220 = vld [vmem:[%s2205 + $0x70] sm:$0xff]
  %v2221 = vld [vmem:[%s2205 + $0x78] sm:$0xff]
  %v2222 = vld [vmem:[%s2205 + $0x80] sm:$0xff]
  %v2223 = vld [vmem:[%s2205 + $0x88] sm:$0xff]
  %v2224 = vld [vmem:[%s2205 + $0x90] sm:$0xff]
  %v2225 = vld [vmem:[%s2205 + $0x98] sm:$0xff]
  %2256 = vrot.lane.b32.xlu0 %v963, 96
  %v2257 = vpop.permute.xlu0 %2256
  %2258 = vrot.lane.b32.xlu0 %v964, 96
  %v2259 = vpop.permute.xlu0 %2258
  %2260 = vrot.lane.b32.xlu0 %v965, 96
  %v2261 = vpop.permute.xlu0 %2260
  %2262 = vrot.lane.b32.xlu0 %v966, 96
  %v2263 = vpop.permute.xlu0 %2262
  %2264 = vrot.lane.b32.xlu0 %v967, 96
  %v2265 = vpop.permute.xlu0 %2264
  %2266 = vrot.lane.b32.xlu0 %v968, 96
  %v2267 = vpop.permute.xlu0 %2266
  %2268 = vrot.lane.b32.xlu0 %v969, 96
  %v2269 = vpop.permute.xlu0 %2268
  %2270 = vrot.lane.b32.xlu0 %v970, 96
  %v2271 = vpop.permute.xlu0 %2270
  %2272 = vrot.lane.b32.xlu0 %v971, 96
  %v2273 = vpop.permute.xlu0 %2272
  %2274 = vrot.lane.b32.xlu0 %v972, 96
  %v2275 = vpop.permute.xlu0 %2274
  %2276 = vrot.lane.b32.xlu0 %v973, 96
  %v2277 = vpop.permute.xlu0 %2276
  %2278 = vrot.lane.b32.xlu0 %v974, 96
  %v2279 = vpop.permute.xlu0 %2278
  %2280 = vrot.lane.b32.xlu0 %v975, 96
  %v2281 = vpop.permute.xlu0 %2280
  %2282 = vrot.lane.b32.xlu0 %v976, 96
  %v2283 = vpop.permute.xlu0 %2282
  %2284 = vrot.lane.b32.xlu0 %v977, 96
  %v2285 = vpop.permute.xlu0 %2284
  %2286 = vrot.lane.b32.xlu0 %v978, 96
  %v2287 = vpop.permute.xlu0 %2286
  %2288 = vrot.lane.b32.xlu0 %v979, 96
  %v2289 = vpop.permute.xlu0 %2288
  %2290 = vrot.lane.b32.xlu0 %v980, 96
  %v2291 = vpop.permute.xlu0 %2290
  %2292 = vrot.lane.b32.xlu0 %v981, 96
  %v2293 = vpop.permute.xlu0 %2292
  %2294 = vrot.lane.b32.xlu0 %v982, 96
  %v2295 = vpop.permute.xlu0 %2294
  %2296 = vrot.lane.b32.xlu0 %v983, 96
  %v2297 = vpop.permute.xlu0 %2296
  %2298 = vrot.lane.b32.xlu0 %v984, 96
  %v2299 = vpop.permute.xlu0 %2298
  %2300 = vrot.lane.b32.xlu0 %v985, 96
  %v2301 = vpop.permute.xlu0 %2300
  %2302 = vrot.lane.b32.xlu0 %v986, 96
  %v2303 = vpop.permute.xlu0 %2302
  %2304 = vrot.lane.b32.xlu0 %v987, 96
  %v2305 = vpop.permute.xlu0 %2304
  %2306 = vrot.lane.b32.xlu0 %v988, 96
  %v2307 = vpop.permute.xlu0 %2306
  %2308 = vrot.lane.b32.xlu0 %v989, 96
  %v2309 = vpop.permute.xlu0 %2308
  %2310 = vrot.lane.b32.xlu0 %v990, 96
  %v2311 = vpop.permute.xlu0 %2310
  %2312 = vrot.lane.b32.xlu0 %v991, 96
  %v2313 = vpop.permute.xlu0 %2312
  %2314 = vrot.lane.b32.xlu0 %v992, 96
  %v2315 = vpop.permute.xlu0 %2314
  %vm2316 = vcmask 785408
  %v2317 = vsel %vm2316, %v2257, %v2259
  %v2318 = vsel %vm2316, %v2261, %v2263
  %v2319 = vsel %vm2316, %v2265, %v2267
  %v2320 = vsel %vm2316, %v2269, %v2271
  %v2321 = vsel %vm2316, %v2273, %v2275
  %v2322 = vsel %vm2316, %v2277, %v2279
  %v2323 = vsel %vm2316, %v2281, %v2283
  %v2324 = vsel %vm2316, %v2285, %v2287
  %v2325 = vsel %vm2316, %v2289, %v2291
  %v2326 = vsel %vm2316, %v2293, %v2295
  %v2327 = vsel %vm2316, %v2297, %v2299
  %v2328 = vsel %vm2316, %v2301, %v2303
  %v2329 = vsel %vm2316, %v2305, %v2307
  %v2330 = vsel %vm2316, %v2309, %v2311
  %v2331 = vsel %vm2316, %v2313, %v2315
  %v2348 = vsel %vm1754, %v2206, 0
  %v2351 = vsel %vm1754, %v2207, 0
  %v2354 = vsel %vm1754, %v2208, 0
  %v2357 = vsel %vm1754, %v2209, 0
  %v2360 = vsel %vm1754, %v2210, 0
  %v2363 = vsel %vm1754, %v2211, 0
  %v2366 = vsel %vm1754, %v2212, 0
  %v2369 = vsel %vm1754, %v2213, 0
  %v2372 = vsel %vm1754, %v2214, 0
  %v2375 = vsel %vm1754, %v2215, 0
  %v2378 = vsel %vm1754, %v2216, 0
  %v2381 = vsel %vm1754, %v2217, 0
  %v2384 = vsel %vm1754, %v2218, 0
  %v2387 = vsel %vm1754, %v2219, 0
  %v2390 = vsel %vm1754, %v2220, 0
  %v2393 = vsel %vm1754, %v2221, 0
  %v2396 = vsel %vm1754, %v2222, 0
  %v2399 = vsel %vm1754, %v2223, 0
  %v2402 = vsel %vm1754, %v2224, 0
  %v2405 = vsel %vm1754, %v2225, 0
  %2407 = vmatprep.subr.mxu0 0.0
  %2408 = vmatpush1.msra.mxu0 %v2317
  %2409 = vmatprep.subr.mxu0 0.0
  %2410 = vmatpush1.msra.mxu0 %v2318
  %2411 = vmatprep.subr.mxu0 0.0
  %2412 = vmatpush1.msra.mxu0 %v2319
  %2413 = vmatprep.subr.mxu0 0.0
  %2414 = vmatpush1.msra.mxu0 %v2320
  %2415 = vmatprep.subr.mxu0 0.0
  %2416 = vmatpush1.msra.mxu0 %v2321
  %2417 = vmatprep.subr.mxu0 0.0
  %2418 = vmatpush1.msra.mxu0 %v2322
  %2419 = vmatprep.subr.mxu0 0.0
  %2420 = vmatpush1.msra.mxu0 %v2323
  %2421 = vmatprep.subr.mxu0 0.0
  %2422 = vmatpush1.msra.mxu0 %v2324
  %2423 = vmatprep.subr.mxu0 0.0
  %2424 = vmatpush1.msra.mxu0 %v2325
  %2425 = vmatprep.subr.mxu0 0.0
  %2426 = vmatpush1.msra.mxu0 %v2326
  %2427 = vmatprep.subr.mxu0 0.0
  %2428 = vmatpush1.msra.mxu0 %v2327
  %2429 = vmatprep.subr.mxu0 0.0
  %2430 = vmatpush1.msra.mxu0 %v2328
  %2431 = vmatprep.subr.mxu0 0.0
  %2432 = vmatpush1.msra.mxu0 %v2329
  %2433 = vmatprep.subr.mxu0 0.0
  %2434 = vmatpush1.msra.mxu0 %v2330
  %2435 = vmatprep.subr.mxu0 0.0
  %2436 = vmatpush1.msra.mxu0 %v2331
  %2437 = vmatprep.subr.mxu0 0.0
  %2438 = vmatpush1.msra.mxu0 0.0
  %2439 = vmatprep.subr.mxu0 0.0
  %2440 = vmatpush1.msra.mxu0 0.0
  %2441 = vmatprep.subr.mxu0 0.0
  %2442 = vmatpush1.msra.mxu0 0.0
  %2443 = vmatprep.subr.mxu0 0.0
  %2444 = vmatpush1.msra.mxu0 0.0
  %2445 = vmatprep.subr.mxu0 0.0
  %2446 = vmatpush1.msra.mxu0 0.0
  %2447 = vmatprep.subr.mxu0 0.0
  %2448 = vmatpush1.msra.mxu0 0.0
  %2449 = vmatprep.subr.mxu0 0.0
  %2450 = vmatpush1.msra.mxu0 0.0
  %2451 = vmatprep.subr.mxu0 0.0
  %2452 = vmatpush1.msra.mxu0 0.0
  %2453 = vmatprep.subr.mxu0 0.0
  %2454 = vmatpush1.msra.mxu0 0.0
  %2455 = vmatprep.subr.mxu0 0.0
  %2456 = vmatpush1.msra.mxu0 0.0
  %2457 = vmatprep.subr.mxu0 0.0
  %2458 = vmatpush1.msra.mxu0 0.0
  %2459 = vmatprep.subr.mxu0 0.0
  %2460 = vmatpush1.msra.mxu0 0.0
  %2461 = vmatprep.subr.mxu0 0.0
  %2462 = vmatpush1.msra.mxu0 0.0
  %2463 = vmatprep.subr.mxu0 0.0
  %2464 = vmatpush1.msra.mxu0 0.0
  %2465 = vmatprep.subr.mxu0 0.0
  %2466 = vmatpush1.msra.mxu0 0.0
  %2467 = vmatprep.subr.mxu0 0.0
  %2468 = vmatpush1.msra.mxu0 0.0
  %2469 = vmatprep.subr.mxu0 0.0
  %2470 = vmatpush1.msra.mxu0 0.0
  %2471 = vmatprep.mubr.f32.mxu0 0.0
  %2472 = vmatmul.mubr.f32.gmra.mrb[0].mxu0 %v2348
  %v2473 = vpop.f32.mrb[0].mxu0
  %v2474 = vadd.f32 0.0, %v2473
  %v2475 = vpop.f32.mrb[0].mxu0
  %2476 = vmatprep.mubr.f32.mxu0 0.0
  %2477 = vmatmul.mubr.f32.gmra.mrb[0].mxu0 %v2351
  %v2478 = vpop.f32.mrb[0].mxu0
  %v2479 = vadd.f32 0.0, %v2478
  %v2480 = vpop.f32.mrb[0].mxu0
  %2481 = vmatprep.mubr.f32.mxu0 0.0
  %2482 = vmatmul.mubr.f32.gmra.mrb[0].mxu0 %v2354
  %v2483 = vpop.f32.mrb[0].mxu0
  %v2484 = vadd.f32 0.0, %v2483
  %v2485 = vpop.f32.mrb[0].mxu0
  %2486 = vmatprep.mubr.f32.mxu0 0.0
  %2487 = vmatmul.mubr.f32.gmra.mrb[0].mxu0 %v2357
  %v2488 = vpop.f32.mrb[0].mxu0
  %v2489 = vadd.f32 0.0, %v2488
  %v2490 = vpop.f32.mrb[0].mxu0
  %2491 = vmatprep.mubr.f32.mxu0 0.0
  %2492 = vmatmul.mubr.f32.gmra.mrb[0].mxu0 %v2360
  %v2493 = vpop.f32.mrb[0].mxu0
  %v2494 = vadd.f32 0.0, %v2493
  %v2495 = vpop.f32.mrb[0].mxu0
  %2496 = vmatprep.mubr.f32.mxu0 0.0
  %2497 = vmatmul.mubr.f32.gmra.mrb[0].mxu0 %v2363
  %v2498 = vpop.f32.mrb[0].mxu0
  %v2499 = vadd.f32 0.0, %v2498
  %v2500 = vpop.f32.mrb[0].mxu0
  %2501 = vmatprep.mubr.f32.mxu0 0.0
  %2502 = vmatmul.mubr.f32.gmra.mrb[0].mxu0 %v2366
  %v2503 = vpop.f32.mrb[0].mxu0
  %v2504 = vadd.f32 0.0, %v2503
  %v2505 = vpop.f32.mrb[0].mxu0
  %2506 = vmatprep.mubr.f32.mxu0 0.0
  %2507 = vmatmul.mubr.f32.gmra.mrb[0].mxu0 %v2369
  %v2508 = vpop.f32.mrb[0].mxu0
  %v2509 = vadd.f32 0.0, %v2508
  %v2510 = vpop.f32.mrb[0].mxu0
  %2511 = vmatprep.mubr.f32.mxu0 0.0
  %2512 = vmatmul.mubr.f32.gmra.mrb[0].mxu0 %v2372
  %v2513 = vpop.f32.mrb[0].mxu0
  %v2514 = vadd.f32 0.0, %v2513
  %v2515 = vpop.f32.mrb[0].mxu0
  %2516 = vmatprep.mubr.f32.mxu0 0.0
  %2517 = vmatmul.mubr.f32.gmra.mrb[0].mxu0 %v2375
  %v2518 = vpop.f32.mrb[0].mxu0
  %v2519 = vadd.f32 0.0, %v2518
  %v2520 = vpop.f32.mrb[0].mxu0
  %2521 = vmatprep.mubr.f32.mxu0 0.0
  %2522 = vmatmul.mubr.f32.gmra.mrb[0].mxu0 %v2378
  %v2523 = vpop.f32.mrb[0].mxu0
  %v2524 = vadd.f32 0.0, %v2523
  %v2525 = vpop.f32.mrb[0].mxu0
  %2526 = vmatprep.mubr.f32.mxu0 0.0
  %2527 = vmatmul.mubr.f32.gmra.mrb[0].mxu0 %v2381
  %v2528 = vpop.f32.mrb[0].mxu0
  %v2529 = vadd.f32 0.0, %v2528
  %v2530 = vpop.f32.mrb[0].mxu0
  %2531 = vmatprep.mubr.f32.mxu0 0.0
  %2532 = vmatmul.mubr.f32.gmra.mrb[0].mxu0 %v2384
  %v2533 = vpop.f32.mrb[0].mxu0
  %v2534 = vadd.f32 0.0, %v2533
  %v2535 = vpop.f32.mrb[0].mxu0
  %2536 = vmatprep.mubr.f32.mxu0 0.0
  %2537 = vmatmul.mubr.f32.gmra.mrb[0].mxu0 %v2387
  %v2538 = vpop.f32.mrb[0].mxu0
  %v2539 = vadd.f32 0.0, %v2538
  %v2540 = vpop.f32.mrb[0].mxu0
  %2541 = vmatprep.mubr.f32.mxu0 0.0
  %2542 = vmatmul.mubr.f32.gmra.mrb[0].mxu0 %v2390
  %v2543 = vpop.f32.mrb[0].mxu0
  %v2544 = vadd.f32 0.0, %v2543
  %v2545 = vpop.f32.mrb[0].mxu0
  %2546 = vmatprep.mubr.f32.mxu0 0.0
  %2547 = vmatmul.mubr.f32.gmra.mrb[0].mxu0 %v2393
  %v2548 = vpop.f32.mrb[0].mxu0
  %v2549 = vadd.f32 0.0, %v2548
  %v2550 = vpop.f32.mrb[0].mxu0
  %2551 = vmatprep.mubr.f32.mxu0 0.0
  %2552 = vmatmul.mubr.f32.gmra.mrb[0].mxu0 %v2396
  %v2553 = vpop.f32.mrb[0].mxu0
  %v2554 = vadd.f32 0.0, %v2553
  %v2555 = vpop.f32.mrb[0].mxu0
  %2556 = vmatprep.mubr.f32.mxu0 0.0
  %2557 = vmatmul.mubr.f32.gmra.mrb[0].mxu0 %v2399
  %v2558 = vpop.f32.mrb[0].mxu0
  %v2559 = vadd.f32 0.0, %v2558
  %v2560 = vpop.f32.mrb[0].mxu0
  %2561 = vmatprep.mubr.f32.mxu0 0.0
  %2562 = vmatmul.mubr.f32.gmra.mrb[0].mxu0 %v2402
  %v2563 = vpop.f32.mrb[0].mxu0
  %v2564 = vadd.f32 0.0, %v2563
  %v2565 = vpop.f32.mrb[0].mxu0
  %2566 = vmatprep.mubr.f32.mxu0 0.0
  %2567 = vmatmul.mubr.f32.gmra.mrb[0].mxu0 %v2405
  %v2568 = vpop.f32.mrb[0].mxu0
  %v2569 = vadd.f32 0.0, %v2568
  %v2570 = vpop.f32.mrb[0].mxu0
  %2571 = vdwg.mxu0
  %v2572 = vadd.f32 %v2107, %v2474
  %v2573 = vadd.f32 %v2112, %v2479
  %v2574 = vadd.f32 %v2117, %v2484
  %v2575 = vadd.f32 %v2122, %v2489
  %v2576 = vadd.f32 %v2127, %v2494
  %v2577 = vadd.f32 %v2132, %v2499
  %v2578 = vadd.f32 %v2137, %v2504
  %v2579 = vadd.f32 %v2142, %v2509
  %v2580 = vadd.f32 %v2147, %v2514
  %v2581 = vadd.f32 %v2152, %v2519
  %v2582 = vadd.f32 %v2157, %v2524
  %v2583 = vadd.f32 %v2162, %v2529
  %v2584 = vadd.f32 %v2167, %v2534
  %v2585 = vadd.f32 %v2172, %v2539
  %v2586 = vadd.f32 %v2177, %v2544
  %v2587 = vadd.f32 %v2182, %v2549
  %v2588 = vadd.f32 %v2187, %v2554
  %v2589 = vadd.f32 %v2192, %v2559
  %v2590 = vadd.f32 %v2197, %v2564
  %v2591 = vadd.f32 %v2202, %v2569
  %s2592 = scalar_lea.vmem %s3, 480
  %v2593 = vld [vmem:[%s2592] sm:$0xff]
  %v2594 = vld [vmem:[%s2592 + $0x8] sm:$0xff]
  %v2595 = vld [vmem:[%s2592 + $0x10] sm:$0xff]
  %v2596 = vld [vmem:[%s2592 + $0x18] sm:$0xff]
  %v2597 = vld [vmem:[%s2592 + $0x20] sm:$0xff]
  %v2598 = vld [vmem:[%s2592 + $0x28] sm:$0xff]
  %v2599 = vld [vmem:[%s2592 + $0x30] sm:$0xff]
  %v2600 = vld [vmem:[%s2592 + $0x38] sm:$0xff]
  %v2601 = vld [vmem:[%s2592 + $0x40] sm:$0xff]
  %v2602 = vld [vmem:[%s2592 + $0x48] sm:$0xff]
  %v2603 = vld [vmem:[%s2592 + $0x50] sm:$0xff]
  %v2604 = vld [vmem:[%s2592 + $0x58] sm:$0xff]
  %v2605 = vld [vmem:[%s2592 + $0x60] sm:$0xff]
  %v2606 = vld [vmem:[%s2592 + $0x68] sm:$0xff]
  %v2607 = vld [vmem:[%s2592 + $0x70] sm:$0xff]
  %v2608 = vld [vmem:[%s2592 + $0x78] sm:$0xff]
  %v2609 = vld [vmem:[%s2592 + $0x80] sm:$0xff]
  %v2610 = vld [vmem:[%s2592 + $0x88] sm:$0xff]
  %v2611 = vld [vmem:[%s2592 + $0x90] sm:$0xff]
  %v2612 = vld [vmem:[%s2592 + $0x98] sm:$0xff]
  %2643 = vrot.lane.b32.xlu0 %v1683, 96
  %v2644 = vpop.permute.xlu0 %2643
  %2645 = vrot.lane.b32.xlu0 %v1684, 96
  %v2646 = vpop.permute.xlu0 %2645
  %2647 = vrot.lane.b32.xlu0 %v1685, 96
  %v2648 = vpop.permute.xlu0 %2647
  %2649 = vrot.lane.b32.xlu0 %v1686, 96
  %v2650 = vpop.permute.xlu0 %2649
  %2651 = vrot.lane.b32.xlu0 %v1687, 96
  %v2652 = vpop.permute.xlu0 %2651
  %2653 = vrot.lane.b32.xlu0 %v1688, 96
  %v2654 = vpop.permute.xlu0 %2653
  %2655 = vrot.lane.b32.xlu0 %v1689, 96
  %v2656 = vpop.permute.xlu0 %2655
  %2657 = vrot.lane.b32.xlu0 %v1690, 96
  %v2658 = vpop.permute.xlu0 %2657
  %2659 = vrot.lane.b32.xlu0 %v1691, 96
  %v2660 = vpop.permute.xlu0 %2659
  %2661 = vrot.lane.b32.xlu0 %v1692, 96
  %v2662 = vpop.permute.xlu0 %2661
  %2663 = vrot.lane.b32.xlu0 %v1693, 96
  %v2664 = vpop.permute.xlu0 %2663
  %2665 = vrot.lane.b32.xlu0 %v1694, 96
  %v2666 = vpop.permute.xlu0 %2665
  %2667 = vrot.lane.b32.xlu0 %v1695, 96
  %v2668 = vpop.permute.xlu0 %2667
  %2669 = vrot.lane.b32.xlu0 %v1696, 96
  %v2670 = vpop.permute.xlu0 %2669
  %2671 = vrot.lane.b32.xlu0 %v1697, 96
  %v2672 = vpop.permute.xlu0 %2671
  %2673 = vrot.lane.b32.xlu0 %v1698, 96
  %v2674 = vpop.permute.xlu0 %2673
  %2675 = vrot.lane.b32.xlu0 %v1699, 96
  %v2676 = vpop.permute.xlu0 %2675
  %2677 = vrot.lane.b32.xlu0 %v1700, 96
  %v2678 = vpop.permute.xlu0 %2677
  %2679 = vrot.lane.b32.xlu0 %v1701, 96
  %v2680 = vpop.permute.xlu0 %2679
  %2681 = vrot.lane.b32.xlu0 %v1702, 96
  %v2682 = vpop.permute.xlu0 %2681
  %2683 = vrot.lane.b32.xlu0 %v1703, 96
  %v2684 = vpop.permute.xlu0 %2683
  %2685 = vrot.lane.b32.xlu0 %v1704, 96
  %v2686 = vpop.permute.xlu0 %2685
  %2687 = vrot.lane.b32.xlu0 %v1705, 96
  %v2688 = vpop.permute.xlu0 %2687
  %2689 = vrot.lane.b32.xlu0 %v1706, 96
  %v2690 = vpop.permute.xlu0 %2689
  %2691 = vrot.lane.b32.xlu0 %v1707, 96
  %v2692 = vpop.permute.xlu0 %2691
  %2693 = vrot.lane.b32.xlu0 %v1708, 96
  %v2694 = vpop.permute.xlu0 %2693
  %2695 = vrot.lane.b32.xlu0 %v1709, 96
  %v2696 = vpop.permute.xlu0 %2695
  %2697 = vrot.lane.b32.xlu0 %v1710, 96
  %v2698 = vpop.permute.xlu0 %2697
  %2699 = vrot.lane.b32.xlu0 %v1711, 96
  %v2700 = vpop.permute.xlu0 %2699
  %2701 = vrot.lane.b32.xlu0 %v1712, 96
  %v2702 = vpop.permute.xlu0 %2701
  %v2703 = vsel %vm2316, %v2644, %v2646
  %v2704 = vsel %vm2316, %v2648, %v2650
  %v2705 = vsel %vm2316, %v2652, %v2654
  %v2706 = vsel %vm2316, %v2656, %v2658
  %v2707 = vsel %vm2316, %v2660, %v2662
  %v2708 = vsel %vm2316, %v2664, %v2666
  %v2709 = vsel %vm2316, %v2668, %v2670
  %v2710 = vsel %vm2316, %v2672, %v2674
  %v2711 = vsel %vm2316, %v2676, %v2678
  %v2712 = vsel %vm2316, %v2680, %v2682
  %v2713 = vsel %vm2316, %v2684, %v2686
  %v2714 = vsel %vm2316, %v2688, %v2690
  %v2715 = vsel %vm2316, %v2692, %v2694
  %v2716 = vsel %vm2316, %v2696, %v2698
  %v2717 = vsel %vm2316, %v2700, %v2702
  %v2734 = vsel %vm1754, %v2593, 0
  %v2737 = vsel %vm1754, %v2594, 0
  %v2740 = vsel %vm1754, %v2595, 0
  %v2743 = vsel %vm1754, %v2596, 0
  %v2746 = vsel %vm1754, %v2597, 0
  %v2749 = vsel %vm1754, %v2598, 0
  %v2752 = vsel %vm1754, %v2599, 0
  %v2755 = vsel %vm1754, %v2600, 0
  %v2758 = vsel %vm1754, %v2601, 0
  %v2761 = vsel %vm1754, %v2602, 0
  %v2764 = vsel %vm1754, %v2603, 0
  %v2767 = vsel %vm1754, %v2604, 0
  %v2770 = vsel %vm1754, %v2605, 0
  %v2773 = vsel %vm1754, %v2606, 0
  %v2776 = vsel %vm1754, %v2607, 0
  %v2779 = vsel %vm1754, %v2608, 0
  %v2782 = vsel %vm1754, %v2609, 0
  %v2785 = vsel %vm1754, %v2610, 0
  %v2788 = vsel %vm1754, %v2611, 0
  %v2791 = vsel %vm1754, %v2612, 0
  %2793 = vmatprep.subr.mxu0 0.0
  %2794 = vmatpush1.msra.mxu0 %v2703
  %2795 = vmatprep.subr.mxu0 0.0
  %2796 = vmatpush1.msra.mxu0 %v2704
  %2797 = vmatprep.subr.mxu0 0.0
  %2798 = vmatpush1.msra.mxu0 %v2705
  %2799 = vmatprep.subr.mxu0 0.0
  %2800 = vmatpush1.msra.mxu0 %v2706
  %2801 = vmatprep.subr.mxu0 0.0
  %2802 = vmatpush1.msra.mxu0 %v2707
  %2803 = vmatprep.subr.mxu0 0.0
  %2804 = vmatpush1.msra.mxu0 %v2708
  %2805 = vmatprep.subr.mxu0 0.0
  %2806 = vmatpush1.msra.mxu0 %v2709
  %2807 = vmatprep.subr.mxu0 0.0
  %2808 = vmatpush1.msra.mxu0 %v2710
  %2809 = vmatprep.subr.mxu0 0.0
  %2810 = vmatpush1.msra.mxu0 %v2711
  %2811 = vmatprep.subr.mxu0 0.0
  %2812 = vmatpush1.msra.mxu0 %v2712
  %2813 = vmatprep.subr.mxu0 0.0
  %2814 = vmatpush1.msra.mxu0 %v2713
  %2815 = vmatprep.subr.mxu0 0.0
  %2816 = vmatpush1.msra.mxu0 %v2714
  %2817 = vmatprep.subr.mxu0 0.0
  %2818 = vmatpush1.msra.mxu0 %v2715
  %2819 = vmatprep.subr.mxu0 0.0
  %2820 = vmatpush1.msra.mxu0 %v2716
  %2821 = vmatprep.subr.mxu0 0.0
  %2822 = vmatpush1.msra.mxu0 %v2717
  %2823 = vmatprep.subr.mxu0 0.0
  %2824 = vmatpush1.msra.mxu0 0.0
  %2825 = vmatprep.subr.mxu0 0.0
  %2826 = vmatpush1.msra.mxu0 0.0
  %2827 = vmatprep.subr.mxu0 0.0
  %2828 = vmatpush1.msra.mxu0 0.0
  %2829 = vmatprep.subr.mxu0 0.0
  %2830 = vmatpush1.msra.mxu0 0.0
  %2831 = vmatprep.subr.mxu0 0.0
  %2832 = vmatpush1.msra.mxu0 0.0
  %2833 = vmatprep.subr.mxu0 0.0
  %2834 = vmatpush1.msra.mxu0 0.0
  %2835 = vmatprep.subr.mxu0 0.0
  %2836 = vmatpush1.msra.mxu0 0.0
  %2837 = vmatprep.subr.mxu0 0.0
  %2838 = vmatpush1.msra.mxu0 0.0
  %2839 = vmatprep.subr.mxu0 0.0
  %2840 = vmatpush1.msra.mxu0 0.0
  %2841 = vmatprep.subr.mxu0 0.0
  %2842 = vmatpush1.msra.mxu0 0.0
  %2843 = vmatprep.subr.mxu0 0.0
  %2844 = vmatpush1.msra.mxu0 0.0
  %2845 = vmatprep.subr.mxu0 0.0
  %2846 = vmatpush1.msra.mxu0 0.0
  %2847 = vmatprep.subr.mxu0 0.0
  %2848 = vmatpush1.msra.mxu0 0.0
  %2849 = vmatprep.subr.mxu0 0.0
  %2850 = vmatpush1.msra.mxu0 0.0
  %2851 = vmatprep.subr.mxu0 0.0
  %2852 = vmatpush1.msra.mxu0 0.0
  %2853 = vmatprep.subr.mxu0 0.0
  %2854 = vmatpush1.msra.mxu0 0.0
  %2855 = vmatprep.subr.mxu0 0.0
  %2856 = vmatpush1.msra.mxu0 0.0
  %2857 = vmatprep.mubr.f32.mxu0 0.0
  %2858 = vmatmul.mubr.f32.gmra.mrb[0].mxu0 %v2734
  %v2859 = vpop.f32.mrb[0].mxu0
  %v2860 = vadd.f32 0.0, %v2859
  %v2861 = vpop.f32.mrb[0].mxu0
  %2862 = vmatprep.mubr.f32.mxu0 0.0
  %2863 = vmatmul.mubr.f32.gmra.mrb[0].mxu0 %v2737
  %v2864 = vpop.f32.mrb[0].mxu0
  %v2865 = vadd.f32 0.0, %v2864
  %v2866 = vpop.f32.mrb[0].mxu0
  %2867 = vmatprep.mubr.f32.mxu0 0.0
  %2868 = vmatmul.mubr.f32.gmra.mrb[0].mxu0 %v2740
  %v2869 = vpop.f32.mrb[0].mxu0
  %v2870 = vadd.f32 0.0, %v2869
  %v2871 = vpop.f32.mrb[0].mxu0
  %2872 = vmatprep.mubr.f32.mxu0 0.0
  %2873 = vmatmul.mubr.f32.gmra.mrb[0].mxu0 %v2743
  %v2874 = vpop.f32.mrb[0].mxu0
  %v2875 = vadd.f32 0.0, %v2874
  %v2876 = vpop.f32.mrb[0].mxu0
  %2877 = vmatprep.mubr.f32.mxu0 0.0
  %2878 = vmatmul.mubr.f32.gmra.mrb[0].mxu0 %v2746
  %v2879 = vpop.f32.mrb[0].mxu0
  %v2880 = vadd.f32 0.0, %v2879
  %v2881 = vpop.f32.mrb[0].mxu0
  %2882 = vmatprep.mubr.f32.mxu0 0.0
  %2883 = vmatmul.mubr.f32.gmra.mrb[0].mxu0 %v2749
  %v2884 = vpop.f32.mrb[0].mxu0
  %v2885 = vadd.f32 0.0, %v2884
  %v2886 = vpop.f32.mrb[0].mxu0
  %2887 = vmatprep.mubr.f32.mxu0 0.0
  %2888 = vmatmul.mubr.f32.gmra.mrb[0].mxu0 %v2752
  %v2889 = vpop.f32.mrb[0].mxu0
  %v2890 = vadd.f32 0.0, %v2889
  %v2891 = vpop.f32.mrb[0].mxu0
  %2892 = vmatprep.mubr.f32.mxu0 0.0
  %2893 = vmatmul.mubr.f32.gmra.mrb[0].mxu0 %v2755
  %v2894 = vpop.f32.mrb[0].mxu0
  %v2895 = vadd.f32 0.0, %v2894
  %v2896 = vpop.f32.mrb[0].mxu0
  %2897 = vmatprep.mubr.f32.mxu0 0.0
  %2898 = vmatmul.mubr.f32.gmra.mrb[0].mxu0 %v2758
  %v2899 = vpop.f32.mrb[0].mxu0
  %v2900 = vadd.f32 0.0, %v2899
  %v2901 = vpop.f32.mrb[0].mxu0
  %2902 = vmatprep.mubr.f32.mxu0 0.0
  %2903 = vmatmul.mubr.f32.gmra.mrb[0].mxu0 %v2761
  %v2904 = vpop.f32.mrb[0].mxu0
  %v2905 = vadd.f32 0.0, %v2904
  %v2906 = vpop.f32.mrb[0].mxu0
  %2907 = vmatprep.mubr.f32.mxu0 0.0
  %2908 = vmatmul.mubr.f32.gmra.mrb[0].mxu0 %v2764
  %v2909 = vpop.f32.mrb[0].mxu0
  %v2910 = vadd.f32 0.0, %v2909
  %v2911 = vpop.f32.mrb[0].mxu0
  %2912 = vmatprep.mubr.f32.mxu0 0.0
  %2913 = vmatmul.mubr.f32.gmra.mrb[0].mxu0 %v2767
  %v2914 = vpop.f32.mrb[0].mxu0
  %v2915 = vadd.f32 0.0, %v2914
  %v2916 = vpop.f32.mrb[0].mxu0
  %2917 = vmatprep.mubr.f32.mxu0 0.0
  %2918 = vmatmul.mubr.f32.gmra.mrb[0].mxu0 %v2770
  %v2919 = vpop.f32.mrb[0].mxu0
  %v2920 = vadd.f32 0.0, %v2919
  %v2921 = vpop.f32.mrb[0].mxu0
  %2922 = vmatprep.mubr.f32.mxu0 0.0
  %2923 = vmatmul.mubr.f32.gmra.mrb[0].mxu0 %v2773
  %v2924 = vpop.f32.mrb[0].mxu0
  %v2925 = vadd.f32 0.0, %v2924
  %v2926 = vpop.f32.mrb[0].mxu0
  %2927 = vmatprep.mubr.f32.mxu0 0.0
  %2928 = vmatmul.mubr.f32.gmra.mrb[0].mxu0 %v2776
  %v2929 = vpop.f32.mrb[0].mxu0
  %v2930 = vadd.f32 0.0, %v2929
  %v2931 = vpop.f32.mrb[0].mxu0
  %2932 = vmatprep.mubr.f32.mxu0 0.0
  %2933 = vmatmul.mubr.f32.gmra.mrb[0].mxu0 %v2779
  %v2934 = vpop.f32.mrb[0].mxu0
  %v2935 = vadd.f32 0.0, %v2934
  %v2936 = vpop.f32.mrb[0].mxu0
  %2937 = vmatprep.mubr.f32.mxu0 0.0
  %2938 = vmatmul.mubr.f32.gmra.mrb[0].mxu0 %v2782
  %v2939 = vpop.f32.mrb[0].mxu0
  %v2940 = vadd.f32 0.0, %v2939
  %v2941 = vpop.f32.mrb[0].mxu0
  %2942 = vmatprep.mubr.f32.mxu0 0.0
  %2943 = vmatmul.mubr.f32.gmra.mrb[0].mxu0 %v2785
  %v2944 = vpop.f32.mrb[0].mxu0
  %v2945 = vadd.f32 0.0, %v2944
  %v2946 = vpop.f32.mrb[0].mxu0
  %2947 = vmatprep.mubr.f32.mxu0 0.0
  %2948 = vmatmul.mubr.f32.gmra.mrb[0].mxu0 %v2788
  %v2949 = vpop.f32.mrb[0].mxu0
  %v2950 = vadd.f32 0.0, %v2949
  %v2951 = vpop.f32.mrb[0].mxu0
  %2952 = vmatprep.mubr.f32.mxu0 0.0
  %2953 = vmatmul.mubr.f32.gmra.mrb[0].mxu0 %v2791
  %v2954 = vpop.f32.mrb[0].mxu0
  %v2955 = vadd.f32 0.0, %v2954
  %v2956 = vpop.f32.mrb[0].mxu0
  %2957 = vdwg.mxu0
  %v2958 = vadd.f32 %v2572, %v2860
  %v2959 = vadd.f32 %v2573, %v2865
  %v2960 = vadd.f32 %v2574, %v2870
  %v2961 = vadd.f32 %v2575, %v2875
  %v2962 = vadd.f32 %v2576, %v2880
  %v2963 = vadd.f32 %v2577, %v2885
  %v2964 = vadd.f32 %v2578, %v2890
  %v2965 = vadd.f32 %v2579, %v2895
  %v2966 = vadd.f32 %v2580, %v2900
  %v2967 = vadd.f32 %v2581, %v2905
  %v2968 = vadd.f32 %v2582, %v2910
  %v2969 = vadd.f32 %v2583, %v2915
  %v2970 = vadd.f32 %v2584, %v2920
  %v2971 = vadd.f32 %v2585, %v2925
  %v2972 = vadd.f32 %v2586, %v2930
  %v2973 = vadd.f32 %v2587, %v2935
  %v2974 = vadd.f32 %v2588, %v2940
  %v2975 = vadd.f32 %v2589, %v2945
  %v2976 = vadd.f32 %v2590, %v2950
  %v2977 = vadd.f32 %v2591, %v2955
  %s2978 = scalar_lea.vmem %s3, 640
  %v2979 = vld [vmem:[%s2978] sm:$0xff]
  %v2980 = vld [vmem:[%s2978 + $0x8] sm:$0xff]
  %v2981 = vld [vmem:[%s2978 + $0x10] sm:$0xff]
  %v2982 = vld [vmem:[%s2978 + $0x18] sm:$0xff]
  %v2983 = vld [vmem:[%s2978 + $0x20] sm:$0xff]
  %v2984 = vld [vmem:[%s2978 + $0x28] sm:$0xff]
  %v2985 = vld [vmem:[%s2978 + $0x30] sm:$0xff]
  %v2986 = vld [vmem:[%s2978 + $0x38] sm:$0xff]
  %v2987 = vld [vmem:[%s2978 + $0x40] sm:$0xff]
  %v2988 = vld [vmem:[%s2978 + $0x48] sm:$0xff]
  %v2989 = vld [vmem:[%s2978 + $0x50] sm:$0xff]
  %v2990 = vld [vmem:[%s2978 + $0x58] sm:$0xff]
  %v2991 = vld [vmem:[%s2978 + $0x60] sm:$0xff]
  %v2992 = vld [vmem:[%s2978 + $0x68] sm:$0xff]
  %v2993 = vld [vmem:[%s2978 + $0x70] sm:$0xff]
  %v2994 = vld [vmem:[%s2978 + $0x78] sm:$0xff]
  %v2995 = vld [vmem:[%s2978 + $0x80] sm:$0xff]
  %v2996 = vld [vmem:[%s2978 + $0x88] sm:$0xff]
  %v2997 = vld [vmem:[%s2978 + $0x90] sm:$0xff]
  %v2998 = vld [vmem:[%s2978 + $0x98] sm:$0xff]
  %2999 = vrot.lane.b32.xlu0 %v963, 64
  %v3000 = vpop.permute.xlu0 %2999
  %3001 = vrot.lane.b32.xlu0 %v964, 64
  %v3002 = vpop.permute.xlu0 %3001
  %3003 = vrot.lane.b32.xlu0 %v965, 64
  %v3004 = vpop.permute.xlu0 %3003
  %3005 = vrot.lane.b32.xlu0 %v966, 64
  %v3006 = vpop.permute.xlu0 %3005
  %3007 = vrot.lane.b32.xlu0 %v967, 64
  %v3008 = vpop.permute.xlu0 %3007
  %3009 = vrot.lane.b32.xlu0 %v968, 64
  %v3010 = vpop.permute.xlu0 %3009
  %3011 = vrot.lane.b32.xlu0 %v969, 64
  %v3012 = vpop.permute.xlu0 %3011
  %3013 = vrot.lane.b32.xlu0 %v970, 64
  %v3014 = vpop.permute.xlu0 %3013
  %3015 = vrot.lane.b32.xlu0 %v971, 64
  %v3016 = vpop.permute.xlu0 %3015
  %3017 = vrot.lane.b32.xlu0 %v972, 64
  %v3018 = vpop.permute.xlu0 %3017
  %3019 = vrot.lane.b32.xlu0 %v973, 64
  %v3020 = vpop.permute.xlu0 %3019
  %3021 = vrot.lane.b32.xlu0 %v974, 64
  %v3022 = vpop.permute.xlu0 %3021
  %3023 = vrot.lane.b32.xlu0 %v975, 64
  %v3024 = vpop.permute.xlu0 %3023
  %3025 = vrot.lane.b32.xlu0 %v976, 64
  %v3026 = vpop.permute.xlu0 %3025
  %3027 = vrot.lane.b32.xlu0 %v977, 64
  %v3028 = vpop.permute.xlu0 %3027
  %3029 = vrot.lane.b32.xlu0 %v978, 64
  %v3030 = vpop.permute.xlu0 %3029
  %3031 = vrot.lane.b32.xlu0 %v979, 64
  %v3032 = vpop.permute.xlu0 %3031
  %3033 = vrot.lane.b32.xlu0 %v980, 64
  %v3034 = vpop.permute.xlu0 %3033
  %3035 = vrot.lane.b32.xlu0 %v981, 64
  %v3036 = vpop.permute.xlu0 %3035
  %3037 = vrot.lane.b32.xlu0 %v982, 64
  %v3038 = vpop.permute.xlu0 %3037
  %3039 = vrot.lane.b32.xlu0 %v983, 64
  %v3040 = vpop.permute.xlu0 %3039
  %3041 = vrot.lane.b32.xlu0 %v984, 64
  %v3042 = vpop.permute.xlu0 %3041
  %3043 = vrot.lane.b32.xlu0 %v985, 64
  %v3044 = vpop.permute.xlu0 %3043
  %3045 = vrot.lane.b32.xlu0 %v986, 64
  %v3046 = vpop.permute.xlu0 %3045
  %3047 = vrot.lane.b32.xlu0 %v987, 64
  %v3048 = vpop.permute.xlu0 %3047
  %3049 = vrot.lane.b32.xlu0 %v988, 64
  %v3050 = vpop.permute.xlu0 %3049
  %3051 = vrot.lane.b32.xlu0 %v989, 64
  %v3052 = vpop.permute.xlu0 %3051
  %3053 = vrot.lane.b32.xlu0 %v990, 64
  %v3054 = vpop.permute.xlu0 %3053
  %3055 = vrot.lane.b32.xlu0 %v991, 64
  %v3056 = vpop.permute.xlu0 %3055
  %3057 = vrot.lane.b32.xlu0 %v992, 64
  %v3058 = vpop.permute.xlu0 %3057
  %vm3059 = vcmask 523264
  %v3060 = vsel %vm3059, %v3000, %v3002
  %v3061 = vsel %vm3059, %v3004, %v3006
  %v3062 = vsel %vm3059, %v3008, %v3010
  %v3063 = vsel %vm3059, %v3012, %v3014
  %v3064 = vsel %vm3059, %v3016, %v3018
  %v3065 = vsel %vm3059, %v3020, %v3022
  %v3066 = vsel %vm3059, %v3024, %v3026
  %v3067 = vsel %vm3059, %v3028, %v3030
  %v3068 = vsel %vm3059, %v3032, %v3034
  %v3069 = vsel %vm3059, %v3036, %v3038
  %v3070 = vsel %vm3059, %v3040, %v3042
  %v3071 = vsel %vm3059, %v3044, %v3046
  %v3072 = vsel %vm3059, %v3048, %v3050
  %v3073 = vsel %vm3059, %v3052, %v3054
  %v3074 = vsel %vm3059, %v3056, %v3058
  %v3091 = vsel %vm1754, %v2979, 0
  %v3094 = vsel %vm1754, %v2980, 0
  %v3097 = vsel %vm1754, %v2981, 0
  %v3100 = vsel %vm1754, %v2982, 0
  %v3103 = vsel %vm1754, %v2983, 0
  %v3106 = vsel %vm1754, %v2984, 0
  %v3109 = vsel %vm1754, %v2985, 0
  %v3112 = vsel %vm1754, %v2986, 0
  %v3115 = vsel %vm1754, %v2987, 0
  %v3118 = vsel %vm1754, %v2988, 0
  %v3121 = vsel %vm1754, %v2989, 0
  %v3124 = vsel %vm1754, %v2990, 0
  %v3127 = vsel %vm1754, %v2991, 0
  %v3130 = vsel %vm1754, %v2992, 0
  %v3133 = vsel %vm1754, %v2993, 0
  %v3136 = vsel %vm1754, %v2994, 0
  %v3139 = vsel %vm1754, %v2995, 0
  %v3142 = vsel %vm1754, %v2996, 0
  %v3145 = vsel %vm1754, %v2997, 0
  %v3148 = vsel %vm1754, %v2998, 0
  %3150 = vmatprep.subr.mxu0 0.0
  %3151 = vmatpush1.msra.mxu0 %v3060
  %3152 = vmatprep.subr.mxu0 0.0
  %3153 = vmatpush1.msra.mxu0 %v3061
  %3154 = vmatprep.subr.mxu0 0.0
  %3155 = vmatpush1.msra.mxu0 %v3062
  %3156 = vmatprep.subr.mxu0 0.0
  %3157 = vmatpush1.msra.mxu0 %v3063
  %3158 = vmatprep.subr.mxu0 0.0
  %3159 = vmatpush1.msra.mxu0 %v3064
  %3160 = vmatprep.subr.mxu0 0.0
  %3161 = vmatpush1.msra.mxu0 %v3065
  %3162 = vmatprep.subr.mxu0 0.0
  %3163 = vmatpush1.msra.mxu0 %v3066
  %3164 = vmatprep.subr.mxu0 0.0
  %3165 = vmatpush1.msra.mxu0 %v3067
  %3166 = vmatprep.subr.mxu0 0.0
  %3167 = vmatpush1.msra.mxu0 %v3068
  %3168 = vmatprep.subr.mxu0 0.0
  %3169 = vmatpush1.msra.mxu0 %v3069
  %3170 = vmatprep.subr.mxu0 0.0
  %3171 = vmatpush1.msra.mxu0 %v3070
  %3172 = vmatprep.subr.mxu0 0.0
  %3173 = vmatpush1.msra.mxu0 %v3071
  %3174 = vmatprep.subr.mxu0 0.0
  %3175 = vmatpush1.msra.mxu0 %v3072
  %3176 = vmatprep.subr.mxu0 0.0
  %3177 = vmatpush1.msra.mxu0 %v3073
  %3178 = vmatprep.subr.mxu0 0.0
  %3179 = vmatpush1.msra.mxu0 %v3074
  %3180 = vmatprep.subr.mxu0 0.0
  %3181 = vmatpush1.msra.mxu0 0.0
  %3182 = vmatprep.subr.mxu0 0.0
  %3183 = vmatpush1.msra.mxu0 0.0
  %3184 = vmatprep.subr.mxu0 0.0
  %3185 = vmatpush1.msra.mxu0 0.0
  %3186 = vmatprep.subr.mxu0 0.0
  %3187 = vmatpush1.msra.mxu0 0.0
  %3188 = vmatprep.subr.mxu0 0.0
  %3189 = vmatpush1.msra.mxu0 0.0
  %3190 = vmatprep.subr.mxu0 0.0
  %3191 = vmatpush1.msra.mxu0 0.0
  %3192 = vmatprep.subr.mxu0 0.0
  %3193 = vmatpush1.msra.mxu0 0.0
  %3194 = vmatprep.subr.mxu0 0.0
  %3195 = vmatpush1.msra.mxu0 0.0
  %3196 = vmatprep.subr.mxu0 0.0
  %3197 = vmatpush1.msra.mxu0 0.0
  %3198 = vmatprep.subr.mxu0 0.0
  %3199 = vmatpush1.msra.mxu0 0.0
  %3200 = vmatprep.subr.mxu0 0.0
  %3201 = vmatpush1.msra.mxu0 0.0
  %3202 = vmatprep.subr.mxu0 0.0
  %3203 = vmatpush1.msra.mxu0 0.0
  %3204 = vmatprep.subr.mxu0 0.0
  %3205 = vmatpush1.msra.mxu0 0.0
  %3206 = vmatprep.subr.mxu0 0.0
  %3207 = vmatpush1.msra.mxu0 0.0
  %3208 = vmatprep.subr.mxu0 0.0
  %3209 = vmatpush1.msra.mxu0 0.0
  %3210 = vmatprep.subr.mxu0 0.0
  %3211 = vmatpush1.msra.mxu0 0.0
  %3212 = vmatprep.subr.mxu0 0.0
  %3213 = vmatpush1.msra.mxu0 0.0
  %3214 = vmatprep.mubr.f32.mxu0 0.0
  %3215 = vmatmul.mubr.f32.gmra.mrb[0].mxu0 %v3091
  %v3216 = vpop.f32.mrb[0].mxu0
  %v3217 = vadd.f32 0.0, %v3216
  %v3218 = vpop.f32.mrb[0].mxu0
  %3219 = vmatprep.mubr.f32.mxu0 0.0
  %3220 = vmatmul.mubr.f32.gmra.mrb[0].mxu0 %v3094
  %v3221 = vpop.f32.mrb[0].mxu0
  %v3222 = vadd.f32 0.0, %v3221
  %v3223 = vpop.f32.mrb[0].mxu0
  %3224 = vmatprep.mubr.f32.mxu0 0.0
  %3225 = vmatmul.mubr.f32.gmra.mrb[0].mxu0 %v3097
  %v3226 = vpop.f32.mrb[0].mxu0
  %v3227 = vadd.f32 0.0, %v3226
  %v3228 = vpop.f32.mrb[0].mxu0
  %3229 = vmatprep.mubr.f32.mxu0 0.0
  %3230 = vmatmul.mubr.f32.gmra.mrb[0].mxu0 %v3100
  %v3231 = vpop.f32.mrb[0].mxu0
  %v3232 = vadd.f32 0.0, %v3231
  %v3233 = vpop.f32.mrb[0].mxu0
  %3234 = vmatprep.mubr.f32.mxu0 0.0
  %3235 = vmatmul.mubr.f32.gmra.mrb[0].mxu0 %v3103
  %v3236 = vpop.f32.mrb[0].mxu0
  %v3237 = vadd.f32 0.0, %v3236
  %v3238 = vpop.f32.mrb[0].mxu0
  %3239 = vmatprep.mubr.f32.mxu0 0.0
  %3240 = vmatmul.mubr.f32.gmra.mrb[0].mxu0 %v3106
  %v3241 = vpop.f32.mrb[0].mxu0
  %v3242 = vadd.f32 0.0, %v3241
  %v3243 = vpop.f32.mrb[0].mxu0
  %3244 = vmatprep.mubr.f32.mxu0 0.0
  %3245 = vmatmul.mubr.f32.gmra.mrb[0].mxu0 %v3109
  %v3246 = vpop.f32.mrb[0].mxu0
  %v3247 = vadd.f32 0.0, %v3246
  %v3248 = vpop.f32.mrb[0].mxu0
  %3249 = vmatprep.mubr.f32.mxu0 0.0
  %3250 = vmatmul.mubr.f32.gmra.mrb[0].mxu0 %v3112
  %v3251 = vpop.f32.mrb[0].mxu0
  %v3252 = vadd.f32 0.0, %v3251
  %v3253 = vpop.f32.mrb[0].mxu0
  %3254 = vmatprep.mubr.f32.mxu0 0.0
  %3255 = vmatmul.mubr.f32.gmra.mrb[0].mxu0 %v3115
  %v3256 = vpop.f32.mrb[0].mxu0
  %v3257 = vadd.f32 0.0, %v3256
  %v3258 = vpop.f32.mrb[0].mxu0
  %3259 = vmatprep.mubr.f32.mxu0 0.0
  %3260 = vmatmul.mubr.f32.gmra.mrb[0].mxu0 %v3118
  %v3261 = vpop.f32.mrb[0].mxu0
  %v3262 = vadd.f32 0.0, %v3261
  %v3263 = vpop.f32.mrb[0].mxu0
  %3264 = vmatprep.mubr.f32.mxu0 0.0
  %3265 = vmatmul.mubr.f32.gmra.mrb[0].mxu0 %v3121
  %v3266 = vpop.f32.mrb[0].mxu0
  %v3267 = vadd.f32 0.0, %v3266
  %v3268 = vpop.f32.mrb[0].mxu0
  %3269 = vmatprep.mubr.f32.mxu0 0.0
  %3270 = vmatmul.mubr.f32.gmra.mrb[0].mxu0 %v3124
  %v3271 = vpop.f32.mrb[0].mxu0
  %v3272 = vadd.f32 0.0, %v3271
  %v3273 = vpop.f32.mrb[0].mxu0
  %3274 = vmatprep.mubr.f32.mxu0 0.0
  %3275 = vmatmul.mubr.f32.gmra.mrb[0].mxu0 %v3127
  %v3276 = vpop.f32.mrb[0].mxu0
  %v3277 = vadd.f32 0.0, %v3276
  %v3278 = vpop.f32.mrb[0].mxu0
  %3279 = vmatprep.mubr.f32.mxu0 0.0
  %3280 = vmatmul.mubr.f32.gmra.mrb[0].mxu0 %v3130
  %v3281 = vpop.f32.mrb[0].mxu0
  %v3282 = vadd.f32 0.0, %v3281
  %v3283 = vpop.f32.mrb[0].mxu0
  %3284 = vmatprep.mubr.f32.mxu0 0.0
  %3285 = vmatmul.mubr.f32.gmra.mrb[0].mxu0 %v3133
  %v3286 = vpop.f32.mrb[0].mxu0
  %v3287 = vadd.f32 0.0, %v3286
  %v3288 = vpop.f32.mrb[0].mxu0
  %3289 = vmatprep.mubr.f32.mxu0 0.0
  %3290 = vmatmul.mubr.f32.gmra.mrb[0].mxu0 %v3136
  %v3291 = vpop.f32.mrb[0].mxu0
  %v3292 = vadd.f32 0.0, %v3291
  %v3293 = vpop.f32.mrb[0].mxu0
  %3294 = vmatprep.mubr.f32.mxu0 0.0
  %3295 = vmatmul.mubr.f32.gmra.mrb[0].mxu0 %v3139
  %v3296 = vpop.f32.mrb[0].mxu0
  %v3297 = vadd.f32 0.0, %v3296
  %v3298 = vpop.f32.mrb[0].mxu0
  %3299 = vmatprep.mubr.f32.mxu0 0.0
  %3300 = vmatmul.mubr.f32.gmra.mrb[0].mxu0 %v3142
  %v3301 = vpop.f32.mrb[0].mxu0
  %v3302 = vadd.f32 0.0, %v3301
  %v3303 = vpop.f32.mrb[0].mxu0
  %3304 = vmatprep.mubr.f32.mxu0 0.0
  %3305 = vmatmul.mubr.f32.gmra.mrb[0].mxu0 %v3145
  %v3306 = vpop.f32.mrb[0].mxu0
  %v3307 = vadd.f32 0.0, %v3306
  %v3308 = vpop.f32.mrb[0].mxu0
  %3309 = vmatprep.mubr.f32.mxu0 0.0
  %3310 = vmatmul.mubr.f32.gmra.mrb[0].mxu0 %v3148
  %v3311 = vpop.f32.mrb[0].mxu0
  %v3312 = vadd.f32 0.0, %v3311
  %v3313 = vpop.f32.mrb[0].mxu0
  %3314 = vdwg.mxu0
  %v3315 = vadd.f32 %v2958, %v3217
  %v3316 = vadd.f32 %v2959, %v3222
  %v3317 = vadd.f32 %v2960, %v3227
  %v3318 = vadd.f32 %v2961, %v3232
  %v3319 = vadd.f32 %v2962, %v3237
  %v3320 = vadd.f32 %v2963, %v3242
  %v3321 = vadd.f32 %v2964, %v3247
  %v3322 = vadd.f32 %v2965, %v3252
  %v3323 = vadd.f32 %v2966, %v3257
  %v3324 = vadd.f32 %v2967, %v3262
  %v3325 = vadd.f32 %v2968, %v3267
  %v3326 = vadd.f32 %v2969, %v3272
  %v3327 = vadd.f32 %v2970, %v3277
  %v3328 = vadd.f32 %v2971, %v3282
  %v3329 = vadd.f32 %v2972, %v3287
  %v3330 = vadd.f32 %v2973, %v3292
  %v3331 = vadd.f32 %v2974, %v3297
  %v3332 = vadd.f32 %v2975, %v3302
  %v3333 = vadd.f32 %v2976, %v3307
  %v3334 = vadd.f32 %v2977, %v3312
  %3335 = vmatprep.subr.mxu0 0.0
  %3336 = vmatpush1.msra.mxu0 %v2317
  %3337 = vmatprep.subr.mxu0 0.0
  %3338 = vmatpush1.msra.mxu0 %v2318
  %3339 = vmatprep.subr.mxu0 0.0
  %3340 = vmatpush1.msra.mxu0 %v2319
  %3341 = vmatprep.subr.mxu0 0.0
  %3342 = vmatpush1.msra.mxu0 %v2320
  %3343 = vmatprep.subr.mxu0 0.0
  %3344 = vmatpush1.msra.mxu0 %v2321
  %3345 = vmatprep.subr.mxu0 0.0
  %3346 = vmatpush1.msra.mxu0 %v2322
  %3347 = vmatprep.subr.mxu0 0.0
  %3348 = vmatpush1.msra.mxu0 %v2323
  %3349 = vmatprep.subr.mxu0 0.0
  %3350 = vmatpush1.msra.mxu0 %v2324
  %3351 = vmatprep.subr.mxu0 0.0
  %3352 = vmatpush1.msra.mxu0 %v2325
  %3353 = vmatprep.subr.mxu0 0.0
  %3354 = vmatpush1.msra.mxu0 %v2326
  %3355 = vmatprep.subr.mxu0 0.0
  %3356 = vmatpush1.msra.mxu0 %v2327
  %3357 = vmatprep.subr.mxu0 0.0
  %3358 = vmatpush1.msra.mxu0 %v2328
  %3359 = vmatprep.subr.mxu0 0.0
  %3360 = vmatpush1.msra.mxu0 %v2329
  %3361 = vmatprep.subr.mxu0 0.0
  %3362 = vmatpush1.msra.mxu0 %v2330
  %3363 = vmatprep.subr.mxu0 0.0
  %3364 = vmatpush1.msra.mxu0 %v2331
  %3365 = vmatprep.subr.mxu0 0.0
  %3366 = vmatpush1.msra.mxu0 0.0
  %3367 = vmatprep.subr.mxu0 0.0
  %3368 = vmatpush1.msra.mxu0 0.0
  %3369 = vmatprep.subr.mxu0 0.0
  %3370 = vmatpush1.msra.mxu0 0.0
  %3371 = vmatprep.subr.mxu0 0.0
  %3372 = vmatpush1.msra.mxu0 0.0
  %3373 = vmatprep.subr.mxu0 0.0
  %3374 = vmatpush1.msra.mxu0 0.0
  %3375 = vmatprep.subr.mxu0 0.0
  %3376 = vmatpush1.msra.mxu0 0.0
  %3377 = vmatprep.subr.mxu0 0.0
  %3378 = vmatpush1.msra.mxu0 0.0
  %3379 = vmatprep.subr.mxu0 0.0
  %3380 = vmatpush1.msra.mxu0 0.0
  %3381 = vmatprep.subr.mxu0 0.0
  %3382 = vmatpush1.msra.mxu0 0.0
  %3383 = vmatprep.subr.mxu0 0.0
  %3384 = vmatpush1.msra.mxu0 0.0
  %3385 = vmatprep.subr.mxu0 0.0
  %3386 = vmatpush1.msra.mxu0 0.0
  %3387 = vmatprep.subr.mxu0 0.0
  %3388 = vmatpush1.msra.mxu0 0.0
  %3389 = vmatprep.subr.mxu0 0.0
  %3390 = vmatpush1.msra.mxu0 0.0
  %3391 = vmatprep.subr.mxu0 0.0
  %3392 = vmatpush1.msra.mxu0 0.0
  %3393 = vmatprep.subr.mxu0 0.0
  %3394 = vmatpush1.msra.mxu0 0.0
  %3395 = vmatprep.subr.mxu0 0.0
  %3396 = vmatpush1.msra.mxu0 0.0
  %3397 = vmatprep.subr.mxu0 0.0
  %3398 = vmatpush1.msra.mxu0 0.0
  %3399 = vmatprep.mubr.f32.mxu0 0.0
  %3400 = vmatmul.mubr.f32.gmra.mrb[0].mxu0 %v1756
  %v3401 = vpop.f32.mrb[0].mxu0
  %v3402 = vadd.f32 0.0, %v3401
  %v3403 = vpop.f32.mrb[0].mxu0
  %3404 = vmatprep.mubr.f32.mxu0 0.0
  %3405 = vmatmul.mubr.f32.gmra.mrb[0].mxu0 %v1759
  %v3406 = vpop.f32.mrb[0].mxu0
  %v3407 = vadd.f32 0.0, %v3406
  %v3408 = vpop.f32.mrb[0].mxu0
  %3409 = vmatprep.mubr.f32.mxu0 0.0
  %3410 = vmatmul.mubr.f32.gmra.mrb[0].mxu0 %v1762
  %v3411 = vpop.f32.mrb[0].mxu0
  %v3412 = vadd.f32 0.0, %v3411
  %v3413 = vpop.f32.mrb[0].mxu0
  %3414 = vmatprep.mubr.f32.mxu0 0.0
  %3415 = vmatmul.mubr.f32.gmra.mrb[0].mxu0 %v1765
  %v3416 = vpop.f32.mrb[0].mxu0
  %v3417 = vadd.f32 0.0, %v3416
  %v3418 = vpop.f32.mrb[0].mxu0
  %3419 = vmatprep.mubr.f32.mxu0 0.0
  %3420 = vmatmul.mubr.f32.gmra.mrb[0].mxu0 %v1768
  %v3421 = vpop.f32.mrb[0].mxu0
  %v3422 = vadd.f32 0.0, %v3421
  %v3423 = vpop.f32.mrb[0].mxu0
  %3424 = vmatprep.mubr.f32.mxu0 0.0
  %3425 = vmatmul.mubr.f32.gmra.mrb[0].mxu0 %v1771
  %v3426 = vpop.f32.mrb[0].mxu0
  %v3427 = vadd.f32 0.0, %v3426
  %v3428 = vpop.f32.mrb[0].mxu0
  %3429 = vmatprep.mubr.f32.mxu0 0.0
  %3430 = vmatmul.mubr.f32.gmra.mrb[0].mxu0 %v1774
  %v3431 = vpop.f32.mrb[0].mxu0
  %v3432 = vadd.f32 0.0, %v3431
  %v3433 = vpop.f32.mrb[0].mxu0
  %3434 = vmatprep.mubr.f32.mxu0 0.0
  %3435 = vmatmul.mubr.f32.gmra.mrb[0].mxu0 %v1777
  %v3436 = vpop.f32.mrb[0].mxu0
  %v3437 = vadd.f32 0.0, %v3436
  %v3438 = vpop.f32.mrb[0].mxu0
  %3439 = vmatprep.mubr.f32.mxu0 0.0
  %3440 = vmatmul.mubr.f32.gmra.mrb[0].mxu0 %v1780
  %v3441 = vpop.f32.mrb[0].mxu0
  %v3442 = vadd.f32 0.0, %v3441
  %v3443 = vpop.f32.mrb[0].mxu0
  %3444 = vmatprep.mubr.f32.mxu0 0.0
  %3445 = vmatmul.mubr.f32.gmra.mrb[0].mxu0 %v1783
  %v3446 = vpop.f32.mrb[0].mxu0
  %v3447 = vadd.f32 0.0, %v3446
  %v3448 = vpop.f32.mrb[0].mxu0
  %3449 = vmatprep.mubr.f32.mxu0 0.0
  %3450 = vmatmul.mubr.f32.gmra.mrb[0].mxu0 %v1786
  %v3451 = vpop.f32.mrb[0].mxu0
  %v3452 = vadd.f32 0.0, %v3451
  %v3453 = vpop.f32.mrb[0].mxu0
  %3454 = vmatprep.mubr.f32.mxu0 0.0
  %3455 = vmatmul.mubr.f32.gmra.mrb[0].mxu0 %v1789
  %v3456 = vpop.f32.mrb[0].mxu0
  %v3457 = vadd.f32 0.0, %v3456
  %v3458 = vpop.f32.mrb[0].mxu0
  %3459 = vmatprep.mubr.f32.mxu0 0.0
  %3460 = vmatmul.mubr.f32.gmra.mrb[0].mxu0 %v1792
  %v3461 = vpop.f32.mrb[0].mxu0
  %v3462 = vadd.f32 0.0, %v3461
  %v3463 = vpop.f32.mrb[0].mxu0
  %3464 = vmatprep.mubr.f32.mxu0 0.0
  %3465 = vmatmul.mubr.f32.gmra.mrb[0].mxu0 %v1795
  %v3466 = vpop.f32.mrb[0].mxu0
  %v3467 = vadd.f32 0.0, %v3466
  %v3468 = vpop.f32.mrb[0].mxu0
  %3469 = vmatprep.mubr.f32.mxu0 0.0
  %3470 = vmatmul.mubr.f32.gmra.mrb[0].mxu0 %v1798
  %v3471 = vpop.f32.mrb[0].mxu0
  %v3472 = vadd.f32 0.0, %v3471
  %v3473 = vpop.f32.mrb[0].mxu0
  %3474 = vmatprep.mubr.f32.mxu0 0.0
  %3475 = vmatmul.mubr.f32.gmra.mrb[0].mxu0 %v1801
  %v3476 = vpop.f32.mrb[0].mxu0
  %v3477 = vadd.f32 0.0, %v3476
  %v3478 = vpop.f32.mrb[0].mxu0
  %3479 = vmatprep.mubr.f32.mxu0 0.0
  %3480 = vmatmul.mubr.f32.gmra.mrb[0].mxu0 %v1804
  %v3481 = vpop.f32.mrb[0].mxu0
  %v3482 = vadd.f32 0.0, %v3481
  %v3483 = vpop.f32.mrb[0].mxu0
  %3484 = vmatprep.mubr.f32.mxu0 0.0
  %3485 = vmatmul.mubr.f32.gmra.mrb[0].mxu0 %v1807
  %v3486 = vpop.f32.mrb[0].mxu0
  %v3487 = vadd.f32 0.0, %v3486
  %v3488 = vpop.f32.mrb[0].mxu0
  %3489 = vmatprep.mubr.f32.mxu0 0.0
  %3490 = vmatmul.mubr.f32.gmra.mrb[0].mxu0 %v1810
  %v3491 = vpop.f32.mrb[0].mxu0
  %v3492 = vadd.f32 0.0, %v3491
  %v3493 = vpop.f32.mrb[0].mxu0
  %3494 = vmatprep.mubr.f32.mxu0 0.0
  %3495 = vmatmul.mubr.f32.gmra.mrb[0].mxu0 %v1813
  %v3496 = vpop.f32.mrb[0].mxu0
  %v3497 = vadd.f32 0.0, %v3496
  %v3498 = vpop.f32.mrb[0].mxu0
  %3499 = vdwg.mxu0
  %3500 = vmatprep.subr.mxu0 0.0
  %3501 = vmatpush1.msra.mxu0 %v1683
  %3502 = vmatprep.subr.mxu0 0.0
  %3503 = vmatpush1.msra.mxu0 %v1685
  %3504 = vmatprep.subr.mxu0 0.0
  %3505 = vmatpush1.msra.mxu0 %v1687
  %3506 = vmatprep.subr.mxu0 0.0
  %3507 = vmatpush1.msra.mxu0 %v1689
  %3508 = vmatprep.subr.mxu0 0.0
  %3509 = vmatpush1.msra.mxu0 %v1691
  %3510 = vmatprep.subr.mxu0 0.0
  %3511 = vmatpush1.msra.mxu0 %v1693
  %3512 = vmatprep.subr.mxu0 0.0
  %3513 = vmatpush1.msra.mxu0 %v1695
  %3514 = vmatprep.subr.mxu0 0.0
  %3515 = vmatpush1.msra.mxu0 %v1697
  %3516 = vmatprep.subr.mxu0 0.0
  %3517 = vmatpush1.msra.mxu0 %v1699
  %3518 = vmatprep.subr.mxu0 0.0
  %3519 = vmatpush1.msra.mxu0 %v1701
  %3520 = vmatprep.subr.mxu0 0.0
  %3521 = vmatpush1.msra.mxu0 %v1703
  %3522 = vmatprep.subr.mxu0 0.0
  %3523 = vmatpush1.msra.mxu0 %v1705
  %3524 = vmatprep.subr.mxu0 0.0
  %3525 = vmatpush1.msra.mxu0 %v1707
  %3526 = vmatprep.subr.mxu0 0.0
  %3527 = vmatpush1.msra.mxu0 %v1709
  %3528 = vmatprep.subr.mxu0 0.0
  %3529 = vmatpush1.msra.mxu0 %v1711
  %3530 = vmatprep.subr.mxu0 0.0
  %3531 = vmatpush1.msra.mxu0 0.0
  %3532 = vmatprep.subr.mxu0 0.0
  %3533 = vmatpush1.msra.mxu0 0.0
  %3534 = vmatprep.subr.mxu0 0.0
  %3535 = vmatpush1.msra.mxu0 0.0
  %3536 = vmatprep.subr.mxu0 0.0
  %3537 = vmatpush1.msra.mxu0 0.0
  %3538 = vmatprep.subr.mxu0 0.0
  %3539 = vmatpush1.msra.mxu0 0.0
  %3540 = vmatprep.subr.mxu0 0.0
  %3541 = vmatpush1.msra.mxu0 0.0
  %3542 = vmatprep.subr.mxu0 0.0
  %3543 = vmatpush1.msra.mxu0 0.0
  %3544 = vmatprep.subr.mxu0 0.0
  %3545 = vmatpush1.msra.mxu0 0.0
  %3546 = vmatprep.subr.mxu0 0.0
  %3547 = vmatpush1.msra.mxu0 0.0
  %3548 = vmatprep.subr.mxu0 0.0
  %3549 = vmatpush1.msra.mxu0 0.0
  %3550 = vmatprep.subr.mxu0 0.0
  %3551 = vmatpush1.msra.mxu0 0.0
  %3552 = vmatprep.subr.mxu0 0.0
  %3553 = vmatpush1.msra.mxu0 0.0
  %3554 = vmatprep.subr.mxu0 0.0
  %3555 = vmatpush1.msra.mxu0 0.0
  %3556 = vmatprep.subr.mxu0 0.0
  %3557 = vmatpush1.msra.mxu0 0.0
  %3558 = vmatprep.subr.mxu0 0.0
  %3559 = vmatpush1.msra.mxu0 0.0
  %3560 = vmatprep.subr.mxu0 0.0
  %3561 = vmatpush1.msra.mxu0 0.0
  %3562 = vmatprep.subr.mxu0 0.0
  %3563 = vmatpush1.msra.mxu0 0.0
  %3564 = vmatprep.mubr.f32.mxu0 0.0
  %3565 = vmatmul.mubr.f32.gmra.mrb[0].mxu0 %v1981
  %v3566 = vpop.f32.mrb[0].mxu0
  %v3567 = vadd.f32 %v3402, %v3566
  %v3568 = vpop.f32.mrb[0].mxu0
  %3569 = vmatprep.mubr.f32.mxu0 0.0
  %3570 = vmatmul.mubr.f32.gmra.mrb[0].mxu0 %v1984
  %v3571 = vpop.f32.mrb[0].mxu0
  %v3572 = vadd.f32 %v3407, %v3571
  %v3573 = vpop.f32.mrb[0].mxu0
  %3574 = vmatprep.mubr.f32.mxu0 0.0
  %3575 = vmatmul.mubr.f32.gmra.mrb[0].mxu0 %v1987
  %v3576 = vpop.f32.mrb[0].mxu0
  %v3577 = vadd.f32 %v3412, %v3576
  %v3578 = vpop.f32.mrb[0].mxu0
  %3579 = vmatprep.mubr.f32.mxu0 0.0
  %3580 = vmatmul.mubr.f32.gmra.mrb[0].mxu0 %v1990
  %v3581 = vpop.f32.mrb[0].mxu0
  %v3582 = vadd.f32 %v3417, %v3581
  %v3583 = vpop.f32.mrb[0].mxu0
  %3584 = vmatprep.mubr.f32.mxu0 0.0
  %3585 = vmatmul.mubr.f32.gmra.mrb[0].mxu0 %v1993
  %v3586 = vpop.f32.mrb[0].mxu0
  %v3587 = vadd.f32 %v3422, %v3586
  %v3588 = vpop.f32.mrb[0].mxu0
  %3589 = vmatprep.mubr.f32.mxu0 0.0
  %3590 = vmatmul.mubr.f32.gmra.mrb[0].mxu0 %v1996
  %v3591 = vpop.f32.mrb[0].mxu0
  %v3592 = vadd.f32 %v3427, %v3591
  %v3593 = vpop.f32.mrb[0].mxu0
  %3594 = vmatprep.mubr.f32.mxu0 0.0
  %3595 = vmatmul.mubr.f32.gmra.mrb[0].mxu0 %v1999
  %v3596 = vpop.f32.mrb[0].mxu0
  %v3597 = vadd.f32 %v3432, %v3596
  %v3598 = vpop.f32.mrb[0].mxu0
  %3599 = vmatprep.mubr.f32.mxu0 0.0
  %3600 = vmatmul.mubr.f32.gmra.mrb[0].mxu0 %v2002
  %v3601 = vpop.f32.mrb[0].mxu0
  %v3602 = vadd.f32 %v3437, %v3601
  %v3603 = vpop.f32.mrb[0].mxu0
  %3604 = vmatprep.mubr.f32.mxu0 0.0
  %3605 = vmatmul.mubr.f32.gmra.mrb[0].mxu0 %v2005
  %v3606 = vpop.f32.mrb[0].mxu0
  %v3607 = vadd.f32 %v3442, %v3606
  %v3608 = vpop.f32.mrb[0].mxu0
  %3609 = vmatprep.mubr.f32.mxu0 0.0
  %3610 = vmatmul.mubr.f32.gmra.mrb[0].mxu0 %v2008
  %v3611 = vpop.f32.mrb[0].mxu0
  %v3612 = vadd.f32 %v3447, %v3611
  %v3613 = vpop.f32.mrb[0].mxu0
  %3614 = vmatprep.mubr.f32.mxu0 0.0
  %3615 = vmatmul.mubr.f32.gmra.mrb[0].mxu0 %v2011
  %v3616 = vpop.f32.mrb[0].mxu0
  %v3617 = vadd.f32 %v3452, %v3616
  %v3618 = vpop.f32.mrb[0].mxu0
  %3619 = vmatprep.mubr.f32.mxu0 0.0
  %3620 = vmatmul.mubr.f32.gmra.mrb[0].mxu0 %v2014
  %v3621 = vpop.f32.mrb[0].mxu0
  %v3622 = vadd.f32 %v3457, %v3621
  %v3623 = vpop.f32.mrb[0].mxu0
  %3624 = vmatprep.mubr.f32.mxu0 0.0
  %3625 = vmatmul.mubr.f32.gmra.mrb[0].mxu0 %v2017
  %v3626 = vpop.f32.mrb[0].mxu0
  %v3627 = vadd.f32 %v3462, %v3626
  %v3628 = vpop.f32.mrb[0].mxu0
  %3629 = vmatprep.mubr.f32.mxu0 0.0
  %3630 = vmatmul.mubr.f32.gmra.mrb[0].mxu0 %v2020
  %v3631 = vpop.f32.mrb[0].mxu0
  %v3632 = vadd.f32 %v3467, %v3631
  %v3633 = vpop.f32.mrb[0].mxu0
  %3634 = vmatprep.mubr.f32.mxu0 0.0
  %3635 = vmatmul.mubr.f32.gmra.mrb[0].mxu0 %v2023
  %v3636 = vpop.f32.mrb[0].mxu0
  %v3637 = vadd.f32 %v3472, %v3636
  %v3638 = vpop.f32.mrb[0].mxu0
  %3639 = vmatprep.mubr.f32.mxu0 0.0
  %3640 = vmatmul.mubr.f32.gmra.mrb[0].mxu0 %v2026
  %v3641 = vpop.f32.mrb[0].mxu0
  %v3642 = vadd.f32 %v3477, %v3641
  %v3643 = vpop.f32.mrb[0].mxu0
  %3644 = vmatprep.mubr.f32.mxu0 0.0
  %3645 = vmatmul.mubr.f32.gmra.mrb[0].mxu0 %v2029
  %v3646 = vpop.f32.mrb[0].mxu0
  %v3647 = vadd.f32 %v3482, %v3646
  %v3648 = vpop.f32.mrb[0].mxu0
  %3649 = vmatprep.mubr.f32.mxu0 0.0
  %3650 = vmatmul.mubr.f32.gmra.mrb[0].mxu0 %v2032
  %v3651 = vpop.f32.mrb[0].mxu0
  %v3652 = vadd.f32 %v3487, %v3651
  %v3653 = vpop.f32.mrb[0].mxu0
  %3654 = vmatprep.mubr.f32.mxu0 0.0
  %3655 = vmatmul.mubr.f32.gmra.mrb[0].mxu0 %v2035
  %v3656 = vpop.f32.mrb[0].mxu0
  %v3657 = vadd.f32 %v3492, %v3656
  %v3658 = vpop.f32.mrb[0].mxu0
  %3659 = vmatprep.mubr.f32.mxu0 0.0
  %3660 = vmatmul.mubr.f32.gmra.mrb[0].mxu0 %v2038
  %v3661 = vpop.f32.mrb[0].mxu0
  %v3662 = vadd.f32 %v3497, %v3661
  %v3663 = vpop.f32.mrb[0].mxu0
  %3664 = vdwg.mxu0
  %3665 = vmatprep.subr.mxu0 0.0
  %3666 = vmatpush1.msra.mxu0 %v2703
  %3667 = vmatprep.subr.mxu0 0.0
  %3668 = vmatpush1.msra.mxu0 %v2704
  %3669 = vmatprep.subr.mxu0 0.0
  %3670 = vmatpush1.msra.mxu0 %v2705
  %3671 = vmatprep.subr.mxu0 0.0
  %3672 = vmatpush1.msra.mxu0 %v2706
  %3673 = vmatprep.subr.mxu0 0.0
  %3674 = vmatpush1.msra.mxu0 %v2707
  %3675 = vmatprep.subr.mxu0 0.0
  %3676 = vmatpush1.msra.mxu0 %v2708
  %3677 = vmatprep.subr.mxu0 0.0
  %3678 = vmatpush1.msra.mxu0 %v2709
  %3679 = vmatprep.subr.mxu0 0.0
  %3680 = vmatpush1.msra.mxu0 %v2710
  %3681 = vmatprep.subr.mxu0 0.0
  %3682 = vmatpush1.msra.mxu0 %v2711
  %3683 = vmatprep.subr.mxu0 0.0
  %3684 = vmatpush1.msra.mxu0 %v2712
  %3685 = vmatprep.subr.mxu0 0.0
  %3686 = vmatpush1.msra.mxu0 %v2713
  %3687 = vmatprep.subr.mxu0 0.0
  %3688 = vmatpush1.msra.mxu0 %v2714
  %3689 = vmatprep.subr.mxu0 0.0
  %3690 = vmatpush1.msra.mxu0 %v2715
  %3691 = vmatprep.subr.mxu0 0.0
  %3692 = vmatpush1.msra.mxu0 %v2716
  %3693 = vmatprep.subr.mxu0 0.0
  %3694 = vmatpush1.msra.mxu0 %v2717
  %3695 = vmatprep.subr.mxu0 0.0
  %3696 = vmatpush1.msra.mxu0 0.0
  %3697 = vmatprep.subr.mxu0 0.0
  %3698 = vmatpush1.msra.mxu0 0.0
  %3699 = vmatprep.subr.mxu0 0.0
  %3700 = vmatpush1.msra.mxu0 0.0
  %3701 = vmatprep.subr.mxu0 0.0
  %3702 = vmatpush1.msra.mxu0 0.0
  %3703 = vmatprep.subr.mxu0 0.0
  %3704 = vmatpush1.msra.mxu0 0.0
  %3705 = vmatprep.subr.mxu0 0.0
  %3706 = vmatpush1.msra.mxu0 0.0
  %3707 = vmatprep.subr.mxu0 0.0
  %3708 = vmatpush1.msra.mxu0 0.0
  %3709 = vmatprep.subr.mxu0 0.0
  %3710 = vmatpush1.msra.mxu0 0.0
  %3711 = vmatprep.subr.mxu0 0.0
  %3712 = vmatpush1.msra.mxu0 0.0
  %3713 = vmatprep.subr.mxu0 0.0
  %3714 = vmatpush1.msra.mxu0 0.0
  %3715 = vmatprep.subr.mxu0 0.0
  %3716 = vmatpush1.msra.mxu0 0.0
  %3717 = vmatprep.subr.mxu0 0.0
  %3718 = vmatpush1.msra.mxu0 0.0
  %3719 = vmatprep.subr.mxu0 0.0
  %3720 = vmatpush1.msra.mxu0 0.0
  %3721 = vmatprep.subr.mxu0 0.0
  %3722 = vmatpush1.msra.mxu0 0.0
  %3723 = vmatprep.subr.mxu0 0.0
  %3724 = vmatpush1.msra.mxu0 0.0
  %3725 = vmatprep.subr.mxu0 0.0
  %3726 = vmatpush1.msra.mxu0 0.0
  %3727 = vmatprep.subr.mxu0 0.0
  %3728 = vmatpush1.msra.mxu0 0.0
  %3729 = vmatprep.mubr.f32.mxu0 0.0
  %3730 = vmatmul.mubr.f32.gmra.mrb[0].mxu0 %v2348
  %v3731 = vpop.f32.mrb[0].mxu0
  %v3732 = vadd.f32 0.0, %v3731
  %v3733 = vpop.f32.mrb[0].mxu0
  %3734 = vmatprep.mubr.f32.mxu0 0.0
  %3735 = vmatmul.mubr.f32.gmra.mrb[0].mxu0 %v2351
  %v3736 = vpop.f32.mrb[0].mxu0
  %v3737 = vadd.f32 0.0, %v3736
  %v3738 = vpop.f32.mrb[0].mxu0
  %3739 = vmatprep.mubr.f32.mxu0 0.0
  %3740 = vmatmul.mubr.f32.gmra.mrb[0].mxu0 %v2354
  %v3741 = vpop.f32.mrb[0].mxu0
  %v3742 = vadd.f32 0.0, %v3741
  %v3743 = vpop.f32.mrb[0].mxu0
  %3744 = vmatprep.mubr.f32.mxu0 0.0
  %3745 = vmatmul.mubr.f32.gmra.mrb[0].mxu0 %v2357
  %v3746 = vpop.f32.mrb[0].mxu0
  %v3747 = vadd.f32 0.0, %v3746
  %v3748 = vpop.f32.mrb[0].mxu0
  %3749 = vmatprep.mubr.f32.mxu0 0.0
  %3750 = vmatmul.mubr.f32.gmra.mrb[0].mxu0 %v2360
  %v3751 = vpop.f32.mrb[0].mxu0
  %v3752 = vadd.f32 0.0, %v3751
  %v3753 = vpop.f32.mrb[0].mxu0
  %3754 = vmatprep.mubr.f32.mxu0 0.0
  %3755 = vmatmul.mubr.f32.gmra.mrb[0].mxu0 %v2363
  %v3756 = vpop.f32.mrb[0].mxu0
  %v3757 = vadd.f32 0.0, %v3756
  %v3758 = vpop.f32.mrb[0].mxu0
  %3759 = vmatprep.mubr.f32.mxu0 0.0
  %3760 = vmatmul.mubr.f32.gmra.mrb[0].mxu0 %v2366
  %v3761 = vpop.f32.mrb[0].mxu0
  %v3762 = vadd.f32 0.0, %v3761
  %v3763 = vpop.f32.mrb[0].mxu0
  %3764 = vmatprep.mubr.f32.mxu0 0.0
  %3765 = vmatmul.mubr.f32.gmra.mrb[0].mxu0 %v2369
  %v3766 = vpop.f32.mrb[0].mxu0
  %v3767 = vadd.f32 0.0, %v3766
  %v3768 = vpop.f32.mrb[0].mxu0
  %3769 = vmatprep.mubr.f32.mxu0 0.0
  %3770 = vmatmul.mubr.f32.gmra.mrb[0].mxu0 %v2372
  %v3771 = vpop.f32.mrb[0].mxu0
  %v3772 = vadd.f32 0.0, %v3771
  %v3773 = vpop.f32.mrb[0].mxu0
  %3774 = vmatprep.mubr.f32.mxu0 0.0
  %3775 = vmatmul.mubr.f32.gmra.mrb[0].mxu0 %v2375
  %v3776 = vpop.f32.mrb[0].mxu0
  %v3777 = vadd.f32 0.0, %v3776
  %v3778 = vpop.f32.mrb[0].mxu0
  %3779 = vmatprep.mubr.f32.mxu0 0.0
  %3780 = vmatmul.mubr.f32.gmra.mrb[0].mxu0 %v2378
  %v3781 = vpop.f32.mrb[0].mxu0
  %v3782 = vadd.f32 0.0, %v3781
  %v3783 = vpop.f32.mrb[0].mxu0
  %3784 = vmatprep.mubr.f32.mxu0 0.0
  %3785 = vmatmul.mubr.f32.gmra.mrb[0].mxu0 %v2381
  %v3786 = vpop.f32.mrb[0].mxu0
  %v3787 = vadd.f32 0.0, %v3786
  %v3788 = vpop.f32.mrb[0].mxu0
  %3789 = vmatprep.mubr.f32.mxu0 0.0
  %3790 = vmatmul.mubr.f32.gmra.mrb[0].mxu0 %v2384
  %v3791 = vpop.f32.mrb[0].mxu0
  %v3792 = vadd.f32 0.0, %v3791
  %v3793 = vpop.f32.mrb[0].mxu0
  %3794 = vmatprep.mubr.f32.mxu0 0.0
  %3795 = vmatmul.mubr.f32.gmra.mrb[0].mxu0 %v2387
  %v3796 = vpop.f32.mrb[0].mxu0
  %v3797 = vadd.f32 0.0, %v3796
  %v3798 = vpop.f32.mrb[0].mxu0
  %3799 = vmatprep.mubr.f32.mxu0 0.0
  %3800 = vmatmul.mubr.f32.gmra.mrb[0].mxu0 %v2390
  %v3801 = vpop.f32.mrb[0].mxu0
  %v3802 = vadd.f32 0.0, %v3801
  %v3803 = vpop.f32.mrb[0].mxu0
  %3804 = vmatprep.mubr.f32.mxu0 0.0
  %3805 = vmatmul.mubr.f32.gmra.mrb[0].mxu0 %v2393
  %v3806 = vpop.f32.mrb[0].mxu0
  %v3807 = vadd.f32 0.0, %v3806
  %v3808 = vpop.f32.mrb[0].mxu0
  %3809 = vmatprep.mubr.f32.mxu0 0.0
  %3810 = vmatmul.mubr.f32.gmra.mrb[0].mxu0 %v2396
  %v3811 = vpop.f32.mrb[0].mxu0
  %v3812 = vadd.f32 0.0, %v3811
  %v3813 = vpop.f32.mrb[0].mxu0
  %3814 = vmatprep.mubr.f32.mxu0 0.0
  %3815 = vmatmul.mubr.f32.gmra.mrb[0].mxu0 %v2399
  %v3816 = vpop.f32.mrb[0].mxu0
  %v3817 = vadd.f32 0.0, %v3816
  %v3818 = vpop.f32.mrb[0].mxu0
  %3819 = vmatprep.mubr.f32.mxu0 0.0
  %3820 = vmatmul.mubr.f32.gmra.mrb[0].mxu0 %v2402
  %v3821 = vpop.f32.mrb[0].mxu0
  %v3822 = vadd.f32 0.0, %v3821
  %v3823 = vpop.f32.mrb[0].mxu0
  %3824 = vmatprep.mubr.f32.mxu0 0.0
  %3825 = vmatmul.mubr.f32.gmra.mrb[0].mxu0 %v2405
  %v3826 = vpop.f32.mrb[0].mxu0
  %v3827 = vadd.f32 0.0, %v3826
  %v3828 = vpop.f32.mrb[0].mxu0
  %3829 = vdwg.mxu0
  %v3830 = vadd.f32 %v3567, %v3732
  %v3831 = vadd.f32 %v3572, %v3737
  %v3832 = vadd.f32 %v3577, %v3742
  %v3833 = vadd.f32 %v3582, %v3747
  %v3834 = vadd.f32 %v3587, %v3752
  %v3835 = vadd.f32 %v3592, %v3757
  %v3836 = vadd.f32 %v3597, %v3762
  %v3837 = vadd.f32 %v3602, %v3767
  %v3838 = vadd.f32 %v3607, %v3772
  %v3839 = vadd.f32 %v3612, %v3777
  %v3840 = vadd.f32 %v3617, %v3782
  %v3841 = vadd.f32 %v3622, %v3787
  %v3842 = vadd.f32 %v3627, %v3792
  %v3843 = vadd.f32 %v3632, %v3797
  %v3844 = vadd.f32 %v3637, %v3802
  %v3845 = vadd.f32 %v3642, %v3807
  %v3846 = vadd.f32 %v3647, %v3812
  %v3847 = vadd.f32 %v3652, %v3817
  %v3848 = vadd.f32 %v3657, %v3822
  %v3849 = vadd.f32 %v3662, %v3827
  %3850 = vmatprep.subr.mxu0 0.0
  %3851 = vmatpush1.msra.mxu0 %v3060
  %3852 = vmatprep.subr.mxu0 0.0
  %3853 = vmatpush1.msra.mxu0 %v3061
  %3854 = vmatprep.subr.mxu0 0.0
  %3855 = vmatpush1.msra.mxu0 %v3062
  %3856 = vmatprep.subr.mxu0 0.0
  %3857 = vmatpush1.msra.mxu0 %v3063
  %3858 = vmatprep.subr.mxu0 0.0
  %3859 = vmatpush1.msra.mxu0 %v3064
  %3860 = vmatprep.subr.mxu0 0.0
  %3861 = vmatpush1.msra.mxu0 %v3065
  %3862 = vmatprep.subr.mxu0 0.0
  %3863 = vmatpush1.msra.mxu0 %v3066
  %3864 = vmatprep.subr.mxu0 0.0
  %3865 = vmatpush1.msra.mxu0 %v3067
  %3866 = vmatprep.subr.mxu0 0.0
  %3867 = vmatpush1.msra.mxu0 %v3068
  %3868 = vmatprep.subr.mxu0 0.0
  %3869 = vmatpush1.msra.mxu0 %v3069
  %3870 = vmatprep.subr.mxu0 0.0
  %3871 = vmatpush1.msra.mxu0 %v3070
  %3872 = vmatprep.subr.mxu0 0.0
  %3873 = vmatpush1.msra.mxu0 %v3071
  %3874 = vmatprep.subr.mxu0 0.0
  %3875 = vmatpush1.msra.mxu0 %v3072
  %3876 = vmatprep.subr.mxu0 0.0
  %3877 = vmatpush1.msra.mxu0 %v3073
  %3878 = vmatprep.subr.mxu0 0.0
  %3879 = vmatpush1.msra.mxu0 %v3074
  %3880 = vmatprep.subr.mxu0 0.0
  %3881 = vmatpush1.msra.mxu0 0.0
  %3882 = vmatprep.subr.mxu0 0.0
  %3883 = vmatpush1.msra.mxu0 0.0
  %3884 = vmatprep.subr.mxu0 0.0
  %3885 = vmatpush1.msra.mxu0 0.0
  %3886 = vmatprep.subr.mxu0 0.0
  %3887 = vmatpush1.msra.mxu0 0.0
  %3888 = vmatprep.subr.mxu0 0.0
  %3889 = vmatpush1.msra.mxu0 0.0
  %3890 = vmatprep.subr.mxu0 0.0
  %3891 = vmatpush1.msra.mxu0 0.0
  %3892 = vmatprep.subr.mxu0 0.0
  %3893 = vmatpush1.msra.mxu0 0.0
  %3894 = vmatprep.subr.mxu0 0.0
  %3895 = vmatpush1.msra.mxu0 0.0
  %3896 = vmatprep.subr.mxu0 0.0
  %3897 = vmatpush1.msra.mxu0 0.0
  %3898 = vmatprep.subr.mxu0 0.0
  %3899 = vmatpush1.msra.mxu0 0.0
  %3900 = vmatprep.subr.mxu0 0.0
  %3901 = vmatpush1.msra.mxu0 0.0
  %3902 = vmatprep.subr.mxu0 0.0
  %3903 = vmatpush1.msra.mxu0 0.0
  %3904 = vmatprep.subr.mxu0 0.0
  %3905 = vmatpush1.msra.mxu0 0.0
  %3906 = vmatprep.subr.mxu0 0.0
  %3907 = vmatpush1.msra.mxu0 0.0
  %3908 = vmatprep.subr.mxu0 0.0
  %3909 = vmatpush1.msra.mxu0 0.0
  %3910 = vmatprep.subr.mxu0 0.0
  %3911 = vmatpush1.msra.mxu0 0.0
  %3912 = vmatprep.subr.mxu0 0.0
  %3913 = vmatpush1.msra.mxu0 0.0
  %3914 = vmatprep.mubr.f32.mxu0 0.0
  %3915 = vmatmul.mubr.f32.gmra.mrb[0].mxu0 %v2734
  %v3916 = vpop.f32.mrb[0].mxu0
  %v3917 = vadd.f32 0.0, %v3916
  %v3918 = vpop.f32.mrb[0].mxu0
  %3919 = vmatprep.mubr.f32.mxu0 0.0
  %3920 = vmatmul.mubr.f32.gmra.mrb[0].mxu0 %v2737
  %v3921 = vpop.f32.mrb[0].mxu0
  %v3922 = vadd.f32 0.0, %v3921
  %v3923 = vpop.f32.mrb[0].mxu0
  %3924 = vmatprep.mubr.f32.mxu0 0.0
  %3925 = vmatmul.mubr.f32.gmra.mrb[0].mxu0 %v2740
  %v3926 = vpop.f32.mrb[0].mxu0
  %v3927 = vadd.f32 0.0, %v3926
  %v3928 = vpop.f32.mrb[0].mxu0
  %3929 = vmatprep.mubr.f32.mxu0 0.0
  %3930 = vmatmul.mubr.f32.gmra.mrb[0].mxu0 %v2743
  %v3931 = vpop.f32.mrb[0].mxu0
  %v3932 = vadd.f32 0.0, %v3931
  %v3933 = vpop.f32.mrb[0].mxu0
  %3934 = vmatprep.mubr.f32.mxu0 0.0
  %3935 = vmatmul.mubr.f32.gmra.mrb[0].mxu0 %v2746
  %v3936 = vpop.f32.mrb[0].mxu0
  %v3937 = vadd.f32 0.0, %v3936
  %v3938 = vpop.f32.mrb[0].mxu0
  %3939 = vmatprep.mubr.f32.mxu0 0.0
  %3940 = vmatmul.mubr.f32.gmra.mrb[0].mxu0 %v2749
  %v3941 = vpop.f32.mrb[0].mxu0
  %v3942 = vadd.f32 0.0, %v3941
  %v3943 = vpop.f32.mrb[0].mxu0
  %3944 = vmatprep.mubr.f32.mxu0 0.0
  %3945 = vmatmul.mubr.f32.gmra.mrb[0].mxu0 %v2752
  %v3946 = vpop.f32.mrb[0].mxu0
  %v3947 = vadd.f32 0.0, %v3946
  %v3948 = vpop.f32.mrb[0].mxu0
  %3949 = vmatprep.mubr.f32.mxu0 0.0
  %3950 = vmatmul.mubr.f32.gmra.mrb[0].mxu0 %v2755
  %v3951 = vpop.f32.mrb[0].mxu0
  %v3952 = vadd.f32 0.0, %v3951
  %v3953 = vpop.f32.mrb[0].mxu0
  %3954 = vmatprep.mubr.f32.mxu0 0.0
  %3955 = vmatmul.mubr.f32.gmra.mrb[0].mxu0 %v2758
  %v3956 = vpop.f32.mrb[0].mxu0
  %v3957 = vadd.f32 0.0, %v3956
  %v3958 = vpop.f32.mrb[0].mxu0
  %3959 = vmatprep.mubr.f32.mxu0 0.0
  %3960 = vmatmul.mubr.f32.gmra.mrb[0].mxu0 %v2761
  %v3961 = vpop.f32.mrb[0].mxu0
  %v3962 = vadd.f32 0.0, %v3961
  %v3963 = vpop.f32.mrb[0].mxu0
  %3964 = vmatprep.mubr.f32.mxu0 0.0
  %3965 = vmatmul.mubr.f32.gmra.mrb[0].mxu0 %v2764
  %v3966 = vpop.f32.mrb[0].mxu0
  %v3967 = vadd.f32 0.0, %v3966
  %v3968 = vpop.f32.mrb[0].mxu0
  %3969 = vmatprep.mubr.f32.mxu0 0.0
  %3970 = vmatmul.mubr.f32.gmra.mrb[0].mxu0 %v2767
  %v3971 = vpop.f32.mrb[0].mxu0
  %v3972 = vadd.f32 0.0, %v3971
  %v3973 = vpop.f32.mrb[0].mxu0
  %3974 = vmatprep.mubr.f32.mxu0 0.0
  %3975 = vmatmul.mubr.f32.gmra.mrb[0].mxu0 %v2770
  %v3976 = vpop.f32.mrb[0].mxu0
  %v3977 = vadd.f32 0.0, %v3976
  %v3978 = vpop.f32.mrb[0].mxu0
  %3979 = vmatprep.mubr.f32.mxu0 0.0
  %3980 = vmatmul.mubr.f32.gmra.mrb[0].mxu0 %v2773
  %v3981 = vpop.f32.mrb[0].mxu0
  %v3982 = vadd.f32 0.0, %v3981
  %v3983 = vpop.f32.mrb[0].mxu0
  %3984 = vmatprep.mubr.f32.mxu0 0.0
  %3985 = vmatmul.mubr.f32.gmra.mrb[0].mxu0 %v2776
  %v3986 = vpop.f32.mrb[0].mxu0
  %v3987 = vadd.f32 0.0, %v3986
  %v3988 = vpop.f32.mrb[0].mxu0
  %3989 = vmatprep.mubr.f32.mxu0 0.0
  %3990 = vmatmul.mubr.f32.gmra.mrb[0].mxu0 %v2779
  %v3991 = vpop.f32.mrb[0].mxu0
  %v3992 = vadd.f32 0.0, %v3991
  %v3993 = vpop.f32.mrb[0].mxu0
  %3994 = vmatprep.mubr.f32.mxu0 0.0
  %3995 = vmatmul.mubr.f32.gmra.mrb[0].mxu0 %v2782
  %v3996 = vpop.f32.mrb[0].mxu0
  %v3997 = vadd.f32 0.0, %v3996
  %v3998 = vpop.f32.mrb[0].mxu0
  %3999 = vmatprep.mubr.f32.mxu0 0.0
  %4000 = vmatmul.mubr.f32.gmra.mrb[0].mxu0 %v2785
  %v4001 = vpop.f32.mrb[0].mxu0
  %v4002 = vadd.f32 0.0, %v4001
  %v4003 = vpop.f32.mrb[0].mxu0
  %4004 = vmatprep.mubr.f32.mxu0 0.0
  %4005 = vmatmul.mubr.f32.gmra.mrb[0].mxu0 %v2788
  %v4006 = vpop.f32.mrb[0].mxu0
  %v4007 = vadd.f32 0.0, %v4006
  %v4008 = vpop.f32.mrb[0].mxu0
  %4009 = vmatprep.mubr.f32.mxu0 0.0
  %4010 = vmatmul.mubr.f32.gmra.mrb[0].mxu0 %v2791
  %v4011 = vpop.f32.mrb[0].mxu0
  %v4012 = vadd.f32 0.0, %v4011
  %v4013 = vpop.f32.mrb[0].mxu0
  %4014 = vdwg.mxu0
  %v4015 = vadd.f32 %v3830, %v3917
  %v4016 = vadd.f32 %v3831, %v3922
  %v4017 = vadd.f32 %v3832, %v3927
  %v4018 = vadd.f32 %v3833, %v3932
  %v4019 = vadd.f32 %v3834, %v3937
  %v4020 = vadd.f32 %v3835, %v3942
  %v4021 = vadd.f32 %v3836, %v3947
  %v4022 = vadd.f32 %v3837, %v3952
  %v4023 = vadd.f32 %v3838, %v3957
  %v4024 = vadd.f32 %v3839, %v3962
  %v4025 = vadd.f32 %v3840, %v3967
  %v4026 = vadd.f32 %v3841, %v3972
  %v4027 = vadd.f32 %v3842, %v3977
  %v4028 = vadd.f32 %v3843, %v3982
  %v4029 = vadd.f32 %v3844, %v3987
  %v4030 = vadd.f32 %v3845, %v3992
  %v4031 = vadd.f32 %v3846, %v3997
  %v4032 = vadd.f32 %v3847, %v4002
  %v4033 = vadd.f32 %v3848, %v4007
  %v4034 = vadd.f32 %v3849, %v4012
  %4035 = vrot.lane.b32.xlu0 %v1683, 64
  %v4036 = vpop.permute.xlu0 %4035
  %4037 = vrot.lane.b32.xlu0 %v1684, 64
  %v4038 = vpop.permute.xlu0 %4037
  %4039 = vrot.lane.b32.xlu0 %v1685, 64
  %v4040 = vpop.permute.xlu0 %4039
  %4041 = vrot.lane.b32.xlu0 %v1686, 64
  %v4042 = vpop.permute.xlu0 %4041
  %4043 = vrot.lane.b32.xlu0 %v1687, 64
  %v4044 = vpop.permute.xlu0 %4043
  %4045 = vrot.lane.b32.xlu0 %v1688, 64
  %v4046 = vpop.permute.xlu0 %4045
  %4047 = vrot.lane.b32.xlu0 %v1689, 64
  %v4048 = vpop.permute.xlu0 %4047
  %4049 = vrot.lane.b32.xlu0 %v1690, 64
  %v4050 = vpop.permute.xlu0 %4049
  %4051 = vrot.lane.b32.xlu0 %v1691, 64
  %v4052 = vpop.permute.xlu0 %4051
  %4053 = vrot.lane.b32.xlu0 %v1692, 64
  %v4054 = vpop.permute.xlu0 %4053
  %4055 = vrot.lane.b32.xlu0 %v1693, 64
  %v4056 = vpop.permute.xlu0 %4055
  %4057 = vrot.lane.b32.xlu0 %v1694, 64
  %v4058 = vpop.permute.xlu0 %4057
  %4059 = vrot.lane.b32.xlu0 %v1695, 64
  %v4060 = vpop.permute.xlu0 %4059
  %4061 = vrot.lane.b32.xlu0 %v1696, 64
  %v4062 = vpop.permute.xlu0 %4061
  %4063 = vrot.lane.b32.xlu0 %v1697, 64
  %v4064 = vpop.permute.xlu0 %4063
  %4065 = vrot.lane.b32.xlu0 %v1698, 64
  %v4066 = vpop.permute.xlu0 %4065
  %4067 = vrot.lane.b32.xlu0 %v1699, 64
  %v4068 = vpop.permute.xlu0 %4067
  %4069 = vrot.lane.b32.xlu0 %v1700, 64
  %v4070 = vpop.permute.xlu0 %4069
  %4071 = vrot.lane.b32.xlu0 %v1701, 64
  %v4072 = vpop.permute.xlu0 %4071
  %4073 = vrot.lane.b32.xlu0 %v1702, 64
  %v4074 = vpop.permute.xlu0 %4073
  %4075 = vrot.lane.b32.xlu0 %v1703, 64
  %v4076 = vpop.permute.xlu0 %4075
  %4077 = vrot.lane.b32.xlu0 %v1704, 64
  %v4078 = vpop.permute.xlu0 %4077
  %4079 = vrot.lane.b32.xlu0 %v1705, 64
  %v4080 = vpop.permute.xlu0 %4079
  %4081 = vrot.lane.b32.xlu0 %v1706, 64
  %v4082 = vpop.permute.xlu0 %4081
  %4083 = vrot.lane.b32.xlu0 %v1707, 64
  %v4084 = vpop.permute.xlu0 %4083
  %4085 = vrot.lane.b32.xlu0 %v1708, 64
  %v4086 = vpop.permute.xlu0 %4085
  %4087 = vrot.lane.b32.xlu0 %v1709, 64
  %v4088 = vpop.permute.xlu0 %4087
  %4089 = vrot.lane.b32.xlu0 %v1710, 64
  %v4090 = vpop.permute.xlu0 %4089
  %4091 = vrot.lane.b32.xlu0 %v1711, 64
  %v4092 = vpop.permute.xlu0 %4091
  %4093 = vrot.lane.b32.xlu0 %v1712, 64
  %v4094 = vpop.permute.xlu0 %4093
  %v4095 = vsel %vm3059, %v4036, %v4038
  %v4096 = vsel %vm3059, %v4040, %v4042
  %v4097 = vsel %vm3059, %v4044, %v4046
  %v4098 = vsel %vm3059, %v4048, %v4050
  %v4099 = vsel %vm3059, %v4052, %v4054
  %v4100 = vsel %vm3059, %v4056, %v4058
  %v4101 = vsel %vm3059, %v4060, %v4062
  %v4102 = vsel %vm3059, %v4064, %v4066
  %v4103 = vsel %vm3059, %v4068, %v4070
  %v4104 = vsel %vm3059, %v4072, %v4074
  %v4105 = vsel %vm3059, %v4076, %v4078
  %v4106 = vsel %vm3059, %v4080, %v4082
  %v4107 = vsel %vm3059, %v4084, %v4086
  %v4108 = vsel %vm3059, %v4088, %v4090
  %v4109 = vsel %vm3059, %v4092, %v4094
  %4125 = vmatprep.subr.mxu0 0.0
  %4126 = vmatpush1.msra.mxu0 %v4095
  %4127 = vmatprep.subr.mxu0 0.0
  %4128 = vmatpush1.msra.mxu0 %v4096
  %4129 = vmatprep.subr.mxu0 0.0
  %4130 = vmatpush1.msra.mxu0 %v4097
  %4131 = vmatprep.subr.mxu0 0.0
  %4132 = vmatpush1.msra.mxu0 %v4098
  %4133 = vmatprep.subr.mxu0 0.0
  %4134 = vmatpush1.msra.mxu0 %v4099
  %4135 = vmatprep.subr.mxu0 0.0
  %4136 = vmatpush1.msra.mxu0 %v4100
  %4137 = vmatprep.subr.mxu0 0.0
  %4138 = vmatpush1.msra.mxu0 %v4101
  %4139 = vmatprep.subr.mxu0 0.0
  %4140 = vmatpush1.msra.mxu0 %v4102
  %4141 = vmatprep.subr.mxu0 0.0
  %4142 = vmatpush1.msra.mxu0 %v4103
  %4143 = vmatprep.subr.mxu0 0.0
  %4144 = vmatpush1.msra.mxu0 %v4104
  %4145 = vmatprep.subr.mxu0 0.0
  %4146 = vmatpush1.msra.mxu0 %v4105
  %4147 = vmatprep.subr.mxu0 0.0
  %4148 = vmatpush1.msra.mxu0 %v4106
  %4149 = vmatprep.subr.mxu0 0.0
  %4150 = vmatpush1.msra.mxu0 %v4107
  %4151 = vmatprep.subr.mxu0 0.0
  %4152 = vmatpush1.msra.mxu0 %v4108
  %4153 = vmatprep.subr.mxu0 0.0
  %4154 = vmatpush1.msra.mxu0 %v4109
  %4155 = vmatprep.subr.mxu0 0.0
  %4156 = vmatpush1.msra.mxu0 0.0
  %4157 = vmatprep.subr.mxu0 0.0
  %4158 = vmatpush1.msra.mxu0 0.0
  %4159 = vmatprep.subr.mxu0 0.0
  %4160 = vmatpush1.msra.mxu0 0.0
  %4161 = vmatprep.subr.mxu0 0.0
  %4162 = vmatpush1.msra.mxu0 0.0
  %4163 = vmatprep.subr.mxu0 0.0
  %4164 = vmatpush1.msra.mxu0 0.0
  %4165 = vmatprep.subr.mxu0 0.0
  %4166 = vmatpush1.msra.mxu0 0.0
  %4167 = vmatprep.subr.mxu0 0.0
  %4168 = vmatpush1.msra.mxu0 0.0
  %4169 = vmatprep.subr.mxu0 0.0
  %4170 = vmatpush1.msra.mxu0 0.0
  %4171 = vmatprep.subr.mxu0 0.0
  %4172 = vmatpush1.msra.mxu0 0.0
  %4173 = vmatprep.subr.mxu0 0.0
  %4174 = vmatpush1.msra.mxu0 0.0
  %4175 = vmatprep.subr.mxu0 0.0
  %4176 = vmatpush1.msra.mxu0 0.0
  %4177 = vmatprep.subr.mxu0 0.0
  %4178 = vmatpush1.msra.mxu0 0.0
  %4179 = vmatprep.subr.mxu0 0.0
  %4180 = vmatpush1.msra.mxu0 0.0
  %4181 = vmatprep.subr.mxu0 0.0
  %4182 = vmatpush1.msra.mxu0 0.0
  %4183 = vmatprep.subr.mxu0 0.0
  %4184 = vmatpush1.msra.mxu0 0.0
  %4185 = vmatprep.subr.mxu0 0.0
  %4186 = vmatpush1.msra.mxu0 0.0
  %4187 = vmatprep.subr.mxu0 0.0
  %4188 = vmatpush1.msra.mxu0 0.0
  %4189 = vmatprep.mubr.f32.mxu0 0.0
  %4190 = vmatmul.mubr.f32.gmra.mrb[0].mxu0 %v3091
  %v4191 = vpop.f32.mrb[0].mxu0
  %v4192 = vadd.f32 0.0, %v4191
  %v4193 = vpop.f32.mrb[0].mxu0
  %4194 = vmatprep.mubr.f32.mxu0 0.0
  %4195 = vmatmul.mubr.f32.gmra.mrb[0].mxu0 %v3094
  %v4196 = vpop.f32.mrb[0].mxu0
  %v4197 = vadd.f32 0.0, %v4196
  %v4198 = vpop.f32.mrb[0].mxu0
  %4199 = vmatprep.mubr.f32.mxu0 0.0
  %4200 = vmatmul.mubr.f32.gmra.mrb[0].mxu0 %v3097
  %v4201 = vpop.f32.mrb[0].mxu0
  %v4202 = vadd.f32 0.0, %v4201
  %v4203 = vpop.f32.mrb[0].mxu0
  %4204 = vmatprep.mubr.f32.mxu0 0.0
  %4205 = vmatmul.mubr.f32.gmra.mrb[0].mxu0 %v3100
  %v4206 = vpop.f32.mrb[0].mxu0
  %v4207 = vadd.f32 0.0, %v4206
  %v4208 = vpop.f32.mrb[0].mxu0
  %4209 = vmatprep.mubr.f32.mxu0 0.0
  %4210 = vmatmul.mubr.f32.gmra.mrb[0].mxu0 %v3103
  %v4211 = vpop.f32.mrb[0].mxu0
  %v4212 = vadd.f32 0.0, %v4211
  %v4213 = vpop.f32.mrb[0].mxu0
  %4214 = vmatprep.mubr.f32.mxu0 0.0
  %4215 = vmatmul.mubr.f32.gmra.mrb[0].mxu0 %v3106
  %v4216 = vpop.f32.mrb[0].mxu0
  %v4217 = vadd.f32 0.0, %v4216
  %v4218 = vpop.f32.mrb[0].mxu0
  %4219 = vmatprep.mubr.f32.mxu0 0.0
  %4220 = vmatmul.mubr.f32.gmra.mrb[0].mxu0 %v3109
  %v4221 = vpop.f32.mrb[0].mxu0
  %v4222 = vadd.f32 0.0, %v4221
  %v4223 = vpop.f32.mrb[0].mxu0
  %4224 = vmatprep.mubr.f32.mxu0 0.0
  %4225 = vmatmul.mubr.f32.gmra.mrb[0].mxu0 %v3112
  %v4226 = vpop.f32.mrb[0].mxu0
  %v4227 = vadd.f32 0.0, %v4226
  %v4228 = vpop.f32.mrb[0].mxu0
  %4229 = vmatprep.mubr.f32.mxu0 0.0
  %4230 = vmatmul.mubr.f32.gmra.mrb[0].mxu0 %v3115
  %v4231 = vpop.f32.mrb[0].mxu0
  %v4232 = vadd.f32 0.0, %v4231
  %v4233 = vpop.f32.mrb[0].mxu0
  %4234 = vmatprep.mubr.f32.mxu0 0.0
  %4235 = vmatmul.mubr.f32.gmra.mrb[0].mxu0 %v3118
  %v4236 = vpop.f32.mrb[0].mxu0
  %v4237 = vadd.f32 0.0, %v4236
  %v4238 = vpop.f32.mrb[0].mxu0
  %4239 = vmatprep.mubr.f32.mxu0 0.0
  %4240 = vmatmul.mubr.f32.gmra.mrb[0].mxu0 %v3121
  %v4241 = vpop.f32.mrb[0].mxu0
  %v4242 = vadd.f32 0.0, %v4241
  %v4243 = vpop.f32.mrb[0].mxu0
  %4244 = vmatprep.mubr.f32.mxu0 0.0
  %4245 = vmatmul.mubr.f32.gmra.mrb[0].mxu0 %v3124
  %v4246 = vpop.f32.mrb[0].mxu0
  %v4247 = vadd.f32 0.0, %v4246
  %v4248 = vpop.f32.mrb[0].mxu0
  %4249 = vmatprep.mubr.f32.mxu0 0.0
  %4250 = vmatmul.mubr.f32.gmra.mrb[0].mxu0 %v3127
  %v4251 = vpop.f32.mrb[0].mxu0
  %v4252 = vadd.f32 0.0, %v4251
  %v4253 = vpop.f32.mrb[0].mxu0
  %4254 = vmatprep.mubr.f32.mxu0 0.0
  %4255 = vmatmul.mubr.f32.gmra.mrb[0].mxu0 %v3130
  %v4256 = vpop.f32.mrb[0].mxu0
  %v4257 = vadd.f32 0.0, %v4256
  %v4258 = vpop.f32.mrb[0].mxu0
  %4259 = vmatprep.mubr.f32.mxu0 0.0
  %4260 = vmatmul.mubr.f32.gmra.mrb[0].mxu0 %v3133
  %v4261 = vpop.f32.mrb[0].mxu0
  %v4262 = vadd.f32 0.0, %v4261
  %v4263 = vpop.f32.mrb[0].mxu0
  %4264 = vmatprep.mubr.f32.mxu0 0.0
  %4265 = vmatmul.mubr.f32.gmra.mrb[0].mxu0 %v3136
  %v4266 = vpop.f32.mrb[0].mxu0
  %v4267 = vadd.f32 0.0, %v4266
  %v4268 = vpop.f32.mrb[0].mxu0
  %4269 = vmatprep.mubr.f32.mxu0 0.0
  %4270 = vmatmul.mubr.f32.gmra.mrb[0].mxu0 %v3139
  %v4271 = vpop.f32.mrb[0].mxu0
  %v4272 = vadd.f32 0.0, %v4271
  %v4273 = vpop.f32.mrb[0].mxu0
  %4274 = vmatprep.mubr.f32.mxu0 0.0
  %4275 = vmatmul.mubr.f32.gmra.mrb[0].mxu0 %v3142
  %v4276 = vpop.f32.mrb[0].mxu0
  %v4277 = vadd.f32 0.0, %v4276
  %v4278 = vpop.f32.mrb[0].mxu0
  %4279 = vmatprep.mubr.f32.mxu0 0.0
  %4280 = vmatmul.mubr.f32.gmra.mrb[0].mxu0 %v3145
  %v4281 = vpop.f32.mrb[0].mxu0
  %v4282 = vadd.f32 0.0, %v4281
  %v4283 = vpop.f32.mrb[0].mxu0
  %4284 = vmatprep.mubr.f32.mxu0 0.0
  %4285 = vmatmul.mubr.f32.gmra.mrb[0].mxu0 %v3148
  %v4286 = vpop.f32.mrb[0].mxu0
  %v4287 = vadd.f32 0.0, %v4286
  %v4288 = vpop.f32.mrb[0].mxu0
  %4289 = vdwg.mxu0
  %v4290 = vadd.f32 %v4015, %v4192
  %v4291 = vadd.f32 %v4016, %v4197
  %v4292 = vadd.f32 %v4017, %v4202
  %v4293 = vadd.f32 %v4018, %v4207
  %v4294 = vadd.f32 %v4019, %v4212
  %v4295 = vadd.f32 %v4020, %v4217
  %v4296 = vadd.f32 %v4021, %v4222
  %v4297 = vadd.f32 %v4022, %v4227
  %v4298 = vadd.f32 %v4023, %v4232
  %v4299 = vadd.f32 %v4024, %v4237
  %v4300 = vadd.f32 %v4025, %v4242
  %v4301 = vadd.f32 %v4026, %v4247
  %v4302 = vadd.f32 %v4027, %v4252
  %v4303 = vadd.f32 %v4028, %v4257
  %v4304 = vadd.f32 %v4029, %v4262
  %v4305 = vadd.f32 %v4030, %v4267
  %v4306 = vadd.f32 %v4031, %v4272
  %v4307 = vadd.f32 %v4032, %v4277
  %v4308 = vadd.f32 %v4033, %v4282
  %v4309 = vadd.f32 %v4034, %v4287
  %v4310 = vmax.f32 %v3315, %v3325
  %v4311 = vmax.f32 %v3316, %v3326
  %v4312 = vmax.f32 %v3317, %v3327
  %v4313 = vmax.f32 %v3318, %v3328
  %v4314 = vmax.f32 %v3319, %v3329
  %v4315 = vmax.f32 %v3320, %v3330
  %v4316 = vmax.f32 %v3321, %v3331
  %v4317 = vmax.f32 %v3322, %v3332
  %v4318 = vmax.f32 %v3323, %v3333
  %v4319 = vmax.f32 %v3324, %v3334
  %v4320 = vmax.f32 %v4290, %v4300
  %v4321 = vmax.f32 %v4291, %v4301
  %v4322 = vmax.f32 %v4292, %v4302
  %v4323 = vmax.f32 %v4293, %v4303
  %v4324 = vmax.f32 %v4294, %v4304
  %v4325 = vmax.f32 %v4295, %v4305
  %v4326 = vmax.f32 %v4296, %v4306
  %v4327 = vmax.f32 %v4297, %v4307
  %v4328 = vmax.f32 %v4298, %v4308
  %v4329 = vmax.f32 %v4299, %v4309
  %v4330 = vmax.f32 %v4310, %v4320
  %v4331 = vmax.f32 %v4311, %v4321
  %v4332 = vmax.f32 %v4312, %v4322
  %v4333 = vmax.f32 %v4313, %v4323
  %v4334 = vmax.f32 %v4314, %v4324
  %v4335 = vmax.f32 %v4315, %v4325
  %v4336 = vmax.f32 %v4316, %v4326
  %v4337 = vmax.f32 %v4317, %v4327
  %v4338 = vmax.f32 %v4318, %v4328
  %v4339 = vmax.f32 %v4319, %v4329
  %v4340 = vld [vmem:[%s4] sm:$0xff]
  %v4341 = vld [vmem:[%s4 + $0x8] sm:$0xff]
  %v4342 = vld [vmem:[%s4 + $0x10] sm:$0xff]
  %v4343 = vld [vmem:[%s4 + $0x18] sm:$0xff]
  %v4344 = vld [vmem:[%s4 + $0x20] sm:$0xff]
  %v4345 = vld [vmem:[%s4 + $0x28] sm:$0xff]
  %v4346 = vld [vmem:[%s4 + $0x30] sm:$0xff]
  %v4347 = vld [vmem:[%s4 + $0x38] sm:$0xff]
  %v4348 = vld [vmem:[%s4 + $0x40] sm:$0xff]
  %v4349 = vld [vmem:[%s4 + $0x48] sm:$0xff]
  %4351 = vset.pattern.permute.xlu0 0
  %4352 = vperm.xlu0 %4351, %v4340
  %v4353 = vpop.permute.xlu0 %4352
  %4356 = vset.pattern.permute.xlu0 0
  %4357 = vperm.xlu0 %4356, %v4341
  %v4358 = vpop.permute.xlu0 %4357
  %4361 = vset.pattern.permute.xlu0 0
  %4362 = vperm.xlu0 %4361, %v4342
  %v4363 = vpop.permute.xlu0 %4362
  %4366 = vset.pattern.permute.xlu0 0
  %4367 = vperm.xlu0 %4366, %v4343
  %v4368 = vpop.permute.xlu0 %4367
  %4371 = vset.pattern.permute.xlu0 0
  %4372 = vperm.xlu0 %4371, %v4344
  %v4373 = vpop.permute.xlu0 %4372
  %4376 = vset.pattern.permute.xlu0 0
  %4377 = vperm.xlu0 %4376, %v4345
  %v4378 = vpop.permute.xlu0 %4377
  %4381 = vset.pattern.permute.xlu0 0
  %4382 = vperm.xlu0 %4381, %v4346
  %v4383 = vpop.permute.xlu0 %4382
  %4386 = vset.pattern.permute.xlu0 0
  %4387 = vperm.xlu0 %4386, %v4347
  %v4388 = vpop.permute.xlu0 %4387
  %4391 = vset.pattern.permute.xlu0 0
  %4392 = vperm.xlu0 %4391, %v4348
  %v4393 = vpop.permute.xlu0 %4392
  %4396 = vset.pattern.permute.xlu0 0
  %4397 = vperm.xlu0 %4396, %v4349
  %v4398 = vpop.permute.xlu0 %4397
  %v4400 = vadd.f32 %v4330, %v4353
  %v4401 = vadd.f32 %v4331, %v4358
  %v4402 = vadd.f32 %v4332, %v4363
  %v4403 = vadd.f32 %v4333, %v4368
  %v4404 = vadd.f32 %v4334, %v4373
  %v4405 = vadd.f32 %v4335, %v4378
  %v4406 = vadd.f32 %v4336, %v4383
  %v4407 = vadd.f32 %v4337, %v4388
  %v4408 = vadd.f32 %v4338, %v4393
  %v4409 = vadd.f32 %v4339, %v4398
  %v4410 = vmax.f32 %v4400, 0.0
  %v4411 = vmax.f32 %v4401, 0.0
  %v4412 = vmax.f32 %v4402, 0.0
  %v4413 = vmax.f32 %v4403, 0.0
  %v4414 = vmax.f32 %v4404, 0.0
  %v4415 = vmax.f32 %v4405, 0.0
  %v4416 = vmax.f32 %v4406, 0.0
  %v4417 = vmax.f32 %v4407, 0.0
  %v4418 = vmax.f32 %v4408, 0.0
  %v4419 = vmax.f32 %v4409, 0.0
  %4420 = vxpose.xlu0.b32.start [1/16] %v4410, 128
  %4421 = vxpose.xlu0.b32.cont [2/16] %v4411, 128
  %4422 = vxpose.xlu0.b32.cont [3/16] %v4412, 128
  %4423 = vxpose.xlu0.b32.cont [4/16] %v4413, 128
  %4424 = vxpose.xlu0.b32.cont [5/16] %v4414, 128
  %4425 = vxpose.xlu0.b32.cont [6/16] %v4415, 128
  %4426 = vxpose.xlu0.b32.cont [7/16] %v4416, 128
  %4427 = vxpose.xlu0.b32.cont [8/16] %v4417, 128
  %4428 = vxpose.xlu0.b32.cont [9/16] %v4418, 128
  %4429 = vxpose.xlu0.b32.cont [10/16] %v4419, 128
  %4430 = vxpose.xlu0.b32.cont [11/16] 0.0, 128
  %4431 = vxpose.xlu0.b32.cont [12/16] 0.0, 128
  %4432 = vxpose.xlu0.b32.cont [13/16] 0.0, 128
  %4433 = vxpose.xlu0.b32.cont [14/16] 0.0, 128
  %4434 = vxpose.xlu0.b32.cont [15/16] 0.0, 128
  %4435 = vxpose.xlu0.b32.end [16/16] 0.0, 128
  %v4436 = vpop.trf.xlu0
  %v4437 = vpop.trf.xlu0
  %v4438 = vpop.trf.xlu0
  %v4439 = vpop.trf.xlu0
  %v4440 = vpop.trf.xlu0
  %v4441 = vpop.trf.xlu0
  %v4442 = vpop.trf.xlu0
  %v4443 = vpop.trf.xlu0
  %v4444 = vpop.trf.xlu0
  %v4445 = vpop.trf.xlu0
  %v4446 = vpop.trf.xlu0
  %v4447 = vpop.trf.xlu0
  %v4448 = vpop.trf.xlu0
  %v4449 = vpop.trf.xlu0
  %v4450 = vpop.trf.xlu0
  %v4451 = vpop.trf.xlu0
  %v4452 = vld [vmem:[%s5] sm:$0xff]
  %v4453 = vld [vmem:[%s5 + $0x8] sm:$0xff]
  %v4454 = vld [vmem:[%s5 + $0x10] sm:$0xff]
  %v4455 = vld [vmem:[%s5 + $0x18] sm:$0xff]
  %v4456 = vld [vmem:[%s5 + $0x20] sm:$0xff]
  %v4457 = vld [vmem:[%s5 + $0x28] sm:$0xff]
  %v4458 = vld [vmem:[%s5 + $0x30] sm:$0xff]
  %v4459 = vld [vmem:[%s5 + $0x38] sm:$0xff]
  %v4460 = vld [vmem:[%s5 + $0x40] sm:$0xff]
  %v4461 = vld [vmem:[%s5 + $0x48] sm:$0xff]
  %s4462 = scalar_lea.vmem %s5, 80
  %v4463 = vld [vmem:[%s4462] sm:$0xff]
  %v4464 = vld [vmem:[%s4462 + $0x8] sm:$0xff]
  %v4465 = vld [vmem:[%s4462 + $0x10] sm:$0xff]
  %v4466 = vld [vmem:[%s4462 + $0x18] sm:$0xff]
  %v4467 = vld [vmem:[%s4462 + $0x20] sm:$0xff]
  %v4468 = vld [vmem:[%s4462 + $0x28] sm:$0xff]
  %v4469 = vld [vmem:[%s4462 + $0x30] sm:$0xff]
  %v4470 = vld [vmem:[%s4462 + $0x38] sm:$0xff]
  %v4471 = vld [vmem:[%s4462 + $0x40] sm:$0xff]
  %v4472 = vld [vmem:[%s4462 + $0x48] sm:$0xff]
  %vm4473 = vcmask 654336
  %v4475 = vsel %vm4473, %v4440, 0
  %v4478 = vsel %vm4473, %v4441, 0
  %v4481 = vsel %vm4473, %v4442, 0
  %v4484 = vsel %vm4473, %v4443, 0
  %4486 = vmatprep.subr.mxu0 0.0
  %4487 = vmatpush1.msra.mxu0 %v4463
  %4488 = vmatprep.subr.mxu0 0.0
  %4489 = vmatpush1.msra.mxu0 %v4464
  %4490 = vmatprep.subr.mxu0 0.0
  %4491 = vmatpush1.msra.mxu0 %v4465
  %4492 = vmatprep.subr.mxu0 0.0
  %4493 = vmatpush1.msra.mxu0 %v4466
  %4494 = vmatprep.subr.mxu0 0.0
  %4495 = vmatpush1.msra.mxu0 %v4467
  %4496 = vmatprep.subr.mxu0 0.0
  %4497 = vmatpush1.msra.mxu0 %v4468
  %4498 = vmatprep.subr.mxu0 0.0
  %4499 = vmatpush1.msra.mxu0 %v4469
  %4500 = vmatprep.subr.mxu0 0.0
  %4501 = vmatpush1.msra.mxu0 %v4470
  %4502 = vmatprep.subr.mxu0 0.0
  %4503 = vmatpush1.msra.mxu0 %v4471
  %4504 = vmatprep.subr.mxu0 0.0
  %4505 = vmatpush1.msra.mxu0 %v4472
  %4506 = vmatprep.subr.mxu0 0.0
  %4507 = vmatpush1.msra.mxu0 0.0
  %4508 = vmatprep.subr.mxu0 0.0
  %4509 = vmatpush1.msra.mxu0 0.0
  %4510 = vmatprep.subr.mxu0 0.0
  %4511 = vmatpush1.msra.mxu0 0.0
  %4512 = vmatprep.subr.mxu0 0.0
  %4513 = vmatpush1.msra.mxu0 0.0
  %4514 = vmatprep.subr.mxu0 0.0
  %4515 = vmatpush1.msra.mxu0 0.0
  %4516 = vmatprep.subr.mxu0 0.0
  %4517 = vmatpush1.msra.mxu0 0.0
  %4518 = vmatprep.subr.mxu0 0.0
  %4519 = vmatpush1.msra.mxu0 0.0
  %4520 = vmatprep.subr.mxu0 0.0
  %4521 = vmatpush1.msra.mxu0 0.0
  %4522 = vmatprep.subr.mxu0 0.0
  %4523 = vmatpush1.msra.mxu0 0.0
  %4524 = vmatprep.subr.mxu0 0.0
  %4525 = vmatpush1.msra.mxu0 0.0
  %4526 = vmatprep.subr.mxu0 0.0
  %4527 = vmatpush1.msra.mxu0 0.0
  %4528 = vmatprep.subr.mxu0 0.0
  %4529 = vmatpush1.msra.mxu0 0.0
  %4530 = vmatprep.subr.mxu0 0.0
  %4531 = vmatpush1.msra.mxu0 0.0
  %4532 = vmatprep.subr.mxu0 0.0
  %4533 = vmatpush1.msra.mxu0 0.0
  %4534 = vmatprep.subr.mxu0 0.0
  %4535 = vmatpush1.msra.mxu0 0.0
  %4536 = vmatprep.subr.mxu0 0.0
  %4537 = vmatpush1.msra.mxu0 0.0
  %4538 = vmatprep.subr.mxu0 0.0
  %4539 = vmatpush1.msra.mxu0 0.0
  %4540 = vmatprep.subr.mxu0 0.0
  %4541 = vmatpush1.msra.mxu0 0.0
  %4542 = vmatprep.subr.mxu0 0.0
  %4543 = vmatpush1.msra.mxu0 0.0
  %4544 = vmatprep.subr.mxu0 0.0
  %4545 = vmatpush1.msra.mxu0 0.0
  %4546 = vmatprep.subr.mxu0 0.0
  %4547 = vmatpush1.msra.mxu0 0.0
  %4548 = vmatprep.subr.mxu0 0.0
  %4549 = vmatpush1.msra.mxu0 0.0
  %4550 = vmatprep.mubr.f32.mxu0 0.0
  %4551 = vmatmul.mubr.f32.gmra.mrb[0].mxu0 %v4475
  %v4552 = vpop.f32.mrb[0].mxu0
  %v4553 = vadd.f32 0.0, %v4552
  %v4554 = vpop.f32.mrb[0].mxu0
  %4555 = vmatprep.mubr.f32.mxu0 0.0
  %4556 = vmatmul.mubr.f32.gmra.mrb[0].mxu0 %v4478
  %v4557 = vpop.f32.mrb[0].mxu0
  %v4558 = vadd.f32 0.0, %v4557
  %v4559 = vpop.f32.mrb[0].mxu0
  %4560 = vmatprep.mubr.f32.mxu0 0.0
  %4561 = vmatmul.mubr.f32.gmra.mrb[0].mxu0 %v4481
  %v4562 = vpop.f32.mrb[0].mxu0
  %v4563 = vadd.f32 0.0, %v4562
  %v4564 = vpop.f32.mrb[0].mxu0
  %4565 = vmatprep.mubr.f32.mxu0 0.0
  %4566 = vmatmul.mubr.f32.gmra.mrb[0].mxu0 %v4484
  %v4567 = vpop.f32.mrb[0].mxu0
  %v4568 = vadd.f32 0.0, %v4567
  %v4569 = vpop.f32.mrb[0].mxu0
  %4570 = vdwg.mxu0
  %v4572 = vsel %vm4473, %v4436, 0
  %v4575 = vsel %vm4473, %v4437, 0
  %v4578 = vsel %vm4473, %v4438, 0
  %v4581 = vsel %vm4473, %v4439, 0
  %4583 = vmatprep.subr.mxu0 0.0
  %4584 = vmatpush1.msra.mxu0 %v4452
  %4585 = vmatprep.subr.mxu0 0.0
  %4586 = vmatpush1.msra.mxu0 %v4453
  %4587 = vmatprep.subr.mxu0 0.0
  %4588 = vmatpush1.msra.mxu0 %v4454
  %4589 = vmatprep.subr.mxu0 0.0
  %4590 = vmatpush1.msra.mxu0 %v4455
  %4591 = vmatprep.subr.mxu0 0.0
  %4592 = vmatpush1.msra.mxu0 %v4456
  %4593 = vmatprep.subr.mxu0 0.0
  %4594 = vmatpush1.msra.mxu0 %v4457
  %4595 = vmatprep.subr.mxu0 0.0
  %4596 = vmatpush1.msra.mxu0 %v4458
  %4597 = vmatprep.subr.mxu0 0.0
  %4598 = vmatpush1.msra.mxu0 %v4459
  %4599 = vmatprep.subr.mxu0 0.0
  %4600 = vmatpush1.msra.mxu0 %v4460
  %4601 = vmatprep.subr.mxu0 0.0
  %4602 = vmatpush1.msra.mxu0 %v4461
  %4603 = vmatprep.subr.mxu0 0.0
  %4604 = vmatpush1.msra.mxu0 0.0
  %4605 = vmatprep.subr.mxu0 0.0
  %4606 = vmatpush1.msra.mxu0 0.0
  %4607 = vmatprep.subr.mxu0 0.0
  %4608 = vmatpush1.msra.mxu0 0.0
  %4609 = vmatprep.subr.mxu0 0.0
  %4610 = vmatpush1.msra.mxu0 0.0
  %4611 = vmatprep.subr.mxu0 0.0
  %4612 = vmatpush1.msra.mxu0 0.0
  %4613 = vmatprep.subr.mxu0 0.0
  %4614 = vmatpush1.msra.mxu0 0.0
  %4615 = vmatprep.subr.mxu0 0.0
  %4616 = vmatpush1.msra.mxu0 0.0
  %4617 = vmatprep.subr.mxu0 0.0
  %4618 = vmatpush1.msra.mxu0 0.0
  %4619 = vmatprep.subr.mxu0 0.0
  %4620 = vmatpush1.msra.mxu0 0.0
  %4621 = vmatprep.subr.mxu0 0.0
  %4622 = vmatpush1.msra.mxu0 0.0
  %4623 = vmatprep.subr.mxu0 0.0
  %4624 = vmatpush1.msra.mxu0 0.0
  %4625 = vmatprep.subr.mxu0 0.0
  %4626 = vmatpush1.msra.mxu0 0.0
  %4627 = vmatprep.subr.mxu0 0.0
  %4628 = vmatpush1.msra.mxu0 0.0
  %4629 = vmatprep.subr.mxu0 0.0
  %4630 = vmatpush1.msra.mxu0 0.0
  %4631 = vmatprep.subr.mxu0 0.0
  %4632 = vmatpush1.msra.mxu0 0.0
  %4633 = vmatprep.subr.mxu0 0.0
  %4634 = vmatpush1.msra.mxu0 0.0
  %4635 = vmatprep.subr.mxu0 0.0
  %4636 = vmatpush1.msra.mxu0 0.0
  %4637 = vmatprep.subr.mxu0 0.0
  %4638 = vmatpush1.msra.mxu0 0.0
  %4639 = vmatprep.subr.mxu0 0.0
  %4640 = vmatpush1.msra.mxu0 0.0
  %4641 = vmatprep.subr.mxu0 0.0
  %4642 = vmatpush1.msra.mxu0 0.0
  %4643 = vmatprep.subr.mxu0 0.0
  %4644 = vmatpush1.msra.mxu0 0.0
  %4645 = vmatprep.subr.mxu0 0.0
  %4646 = vmatpush1.msra.mxu0 0.0
  %4647 = vmatprep.mubr.f32.mxu0 0.0
  %4648 = vmatmul.mubr.f32.gmra.mrb[0].mxu0 %v4572
  %v4649 = vpop.f32.mrb[0].mxu0
  %v4650 = vadd.f32 %v4553, %v4649
  %v4651 = vpop.f32.mrb[0].mxu0
  %4652 = vmatprep.mubr.f32.mxu0 0.0
  %4653 = vmatmul.mubr.f32.gmra.mrb[0].mxu0 %v4575
  %v4654 = vpop.f32.mrb[0].mxu0
  %v4655 = vadd.f32 %v4558, %v4654
  %v4656 = vpop.f32.mrb[0].mxu0
  %4657 = vmatprep.mubr.f32.mxu0 0.0
  %4658 = vmatmul.mubr.f32.gmra.mrb[0].mxu0 %v4578
  %v4659 = vpop.f32.mrb[0].mxu0
  %v4660 = vadd.f32 %v4563, %v4659
  %v4661 = vpop.f32.mrb[0].mxu0
  %4662 = vmatprep.mubr.f32.mxu0 0.0
  %4663 = vmatmul.mubr.f32.gmra.mrb[0].mxu0 %v4581
  %v4664 = vpop.f32.mrb[0].mxu0
  %v4665 = vadd.f32 %v4568, %v4664
  %v4666 = vpop.f32.mrb[0].mxu0
  %4667 = vdwg.mxu0
  %s4668 = scalar_lea.vmem %s5, 160
  %v4669 = vld [vmem:[%s4668] sm:$0xff]
  %v4670 = vld [vmem:[%s4668 + $0x8] sm:$0xff]
  %v4671 = vld [vmem:[%s4668 + $0x10] sm:$0xff]
  %v4672 = vld [vmem:[%s4668 + $0x18] sm:$0xff]
  %v4673 = vld [vmem:[%s4668 + $0x20] sm:$0xff]
  %v4674 = vld [vmem:[%s4668 + $0x28] sm:$0xff]
  %v4675 = vld [vmem:[%s4668 + $0x30] sm:$0xff]
  %v4676 = vld [vmem:[%s4668 + $0x38] sm:$0xff]
  %v4677 = vld [vmem:[%s4668 + $0x40] sm:$0xff]
  %v4678 = vld [vmem:[%s4668 + $0x48] sm:$0xff]
  %v4680 = vsel %vm4473, %v4444, 0
  %v4683 = vsel %vm4473, %v4445, 0
  %v4686 = vsel %vm4473, %v4446, 0
  %v4689 = vsel %vm4473, %v4447, 0
  %4691 = vmatprep.subr.mxu0 0.0
  %4692 = vmatpush1.msra.mxu0 %v4669
  %4693 = vmatprep.subr.mxu0 0.0
  %4694 = vmatpush1.msra.mxu0 %v4670
  %4695 = vmatprep.subr.mxu0 0.0
  %4696 = vmatpush1.msra.mxu0 %v4671
  %4697 = vmatprep.subr.mxu0 0.0
  %4698 = vmatpush1.msra.mxu0 %v4672
  %4699 = vmatprep.subr.mxu0 0.0
  %4700 = vmatpush1.msra.mxu0 %v4673
  %4701 = vmatprep.subr.mxu0 0.0
  %4702 = vmatpush1.msra.mxu0 %v4674
  %4703 = vmatprep.subr.mxu0 0.0
  %4704 = vmatpush1.msra.mxu0 %v4675
  %4705 = vmatprep.subr.mxu0 0.0
  %4706 = vmatpush1.msra.mxu0 %v4676
  %4707 = vmatprep.subr.mxu0 0.0
  %4708 = vmatpush1.msra.mxu0 %v4677
  %4709 = vmatprep.subr.mxu0 0.0
  %4710 = vmatpush1.msra.mxu0 %v4678
  %4711 = vmatprep.subr.mxu0 0.0
  %4712 = vmatpush1.msra.mxu0 0.0
  %4713 = vmatprep.subr.mxu0 0.0
  %4714 = vmatpush1.msra.mxu0 0.0
  %4715 = vmatprep.subr.mxu0 0.0
  %4716 = vmatpush1.msra.mxu0 0.0
  %4717 = vmatprep.subr.mxu0 0.0
  %4718 = vmatpush1.msra.mxu0 0.0
  %4719 = vmatprep.subr.mxu0 0.0
  %4720 = vmatpush1.msra.mxu0 0.0
  %4721 = vmatprep.subr.mxu0 0.0
  %4722 = vmatpush1.msra.mxu0 0.0
  %4723 = vmatprep.subr.mxu0 0.0
  %4724 = vmatpush1.msra.mxu0 0.0
  %4725 = vmatprep.subr.mxu0 0.0
  %4726 = vmatpush1.msra.mxu0 0.0
  %4727 = vmatprep.subr.mxu0 0.0
  %4728 = vmatpush1.msra.mxu0 0.0
  %4729 = vmatprep.subr.mxu0 0.0
  %4730 = vmatpush1.msra.mxu0 0.0
  %4731 = vmatprep.subr.mxu0 0.0
  %4732 = vmatpush1.msra.mxu0 0.0
  %4733 = vmatprep.subr.mxu0 0.0
  %4734 = vmatpush1.msra.mxu0 0.0
  %4735 = vmatprep.subr.mxu0 0.0
  %4736 = vmatpush1.msra.mxu0 0.0
  %4737 = vmatprep.subr.mxu0 0.0
  %4738 = vmatpush1.msra.mxu0 0.0
  %4739 = vmatprep.subr.mxu0 0.0
  %4740 = vmatpush1.msra.mxu0 0.0
  %4741 = vmatprep.subr.mxu0 0.0
  %4742 = vmatpush1.msra.mxu0 0.0
  %4743 = vmatprep.subr.mxu0 0.0
  %4744 = vmatpush1.msra.mxu0 0.0
  %4745 = vmatprep.subr.mxu0 0.0
  %4746 = vmatpush1.msra.mxu0 0.0
  %4747 = vmatprep.subr.mxu0 0.0
  %4748 = vmatpush1.msra.mxu0 0.0
  %4749 = vmatprep.subr.mxu0 0.0
  %4750 = vmatpush1.msra.mxu0 0.0
  %4751 = vmatprep.subr.mxu0 0.0
  %4752 = vmatpush1.msra.mxu0 0.0
  %4753 = vmatprep.subr.mxu0 0.0
  %4754 = vmatpush1.msra.mxu0 0.0
  %4755 = vmatprep.mubr.f32.mxu0 0.0
  %4756 = vmatmul.mubr.f32.gmra.mrb[0].mxu0 %v4680
  %v4757 = vpop.f32.mrb[0].mxu0
  %v4758 = vadd.f32 0.0, %v4757
  %v4759 = vpop.f32.mrb[0].mxu0
  %4760 = vmatprep.mubr.f32.mxu0 0.0
  %4761 = vmatmul.mubr.f32.gmra.mrb[0].mxu0 %v4683
  %v4762 = vpop.f32.mrb[0].mxu0
  %v4763 = vadd.f32 0.0, %v4762
  %v4764 = vpop.f32.mrb[0].mxu0
  %4765 = vmatprep.mubr.f32.mxu0 0.0
  %4766 = vmatmul.mubr.f32.gmra.mrb[0].mxu0 %v4686
  %v4767 = vpop.f32.mrb[0].mxu0
  %v4768 = vadd.f32 0.0, %v4767
  %v4769 = vpop.f32.mrb[0].mxu0
  %4770 = vmatprep.mubr.f32.mxu0 0.0
  %4771 = vmatmul.mubr.f32.gmra.mrb[0].mxu0 %v4689
  %v4772 = vpop.f32.mrb[0].mxu0
  %v4773 = vadd.f32 0.0, %v4772
  %v4774 = vpop.f32.mrb[0].mxu0
  %4775 = vdwg.mxu0
  %v4776 = vadd.f32 %v4650, %v4758
  %v4777 = vadd.f32 %v4655, %v4763
  %v4778 = vadd.f32 %v4660, %v4768
  %v4779 = vadd.f32 %v4665, %v4773
  %s4780 = scalar_lea.vmem %s5, 240
  %v4781 = vld [vmem:[%s4780] sm:$0xff]
  %v4782 = vld [vmem:[%s4780 + $0x8] sm:$0xff]
  %v4783 = vld [vmem:[%s4780 + $0x10] sm:$0xff]
  %v4784 = vld [vmem:[%s4780 + $0x18] sm:$0xff]
  %v4785 = vld [vmem:[%s4780 + $0x20] sm:$0xff]
  %v4786 = vld [vmem:[%s4780 + $0x28] sm:$0xff]
  %v4787 = vld [vmem:[%s4780 + $0x30] sm:$0xff]
  %v4788 = vld [vmem:[%s4780 + $0x38] sm:$0xff]
  %v4789 = vld [vmem:[%s4780 + $0x40] sm:$0xff]
  %v4790 = vld [vmem:[%s4780 + $0x48] sm:$0xff]
  %v4792 = vsel %vm4473, %v4448, 0
  %v4795 = vsel %vm4473, %v4449, 0
  %v4798 = vsel %vm4473, %v4450, 0
  %v4801 = vsel %vm4473, %v4451, 0
  %4803 = vmatprep.subr.mxu0 0.0
  %4804 = vmatpush1.msra.mxu0 %v4781
  %4805 = vmatprep.subr.mxu0 0.0
  %4806 = vmatpush1.msra.mxu0 %v4782
  %4807 = vmatprep.subr.mxu0 0.0
  %4808 = vmatpush1.msra.mxu0 %v4783
  %4809 = vmatprep.subr.mxu0 0.0
  %4810 = vmatpush1.msra.mxu0 %v4784
  %4811 = vmatprep.subr.mxu0 0.0
  %4812 = vmatpush1.msra.mxu0 %v4785
  %4813 = vmatprep.subr.mxu0 0.0
  %4814 = vmatpush1.msra.mxu0 %v4786
  %4815 = vmatprep.subr.mxu0 0.0
  %4816 = vmatpush1.msra.mxu0 %v4787
  %4817 = vmatprep.subr.mxu0 0.0
  %4818 = vmatpush1.msra.mxu0 %v4788
  %4819 = vmatprep.subr.mxu0 0.0
  %4820 = vmatpush1.msra.mxu0 %v4789
  %4821 = vmatprep.subr.mxu0 0.0
  %4822 = vmatpush1.msra.mxu0 %v4790
  %4823 = vmatprep.subr.mxu0 0.0
  %4824 = vmatpush1.msra.mxu0 0.0
  %4825 = vmatprep.subr.mxu0 0.0
  %4826 = vmatpush1.msra.mxu0 0.0
  %4827 = vmatprep.subr.mxu0 0.0
  %4828 = vmatpush1.msra.mxu0 0.0
  %4829 = vmatprep.subr.mxu0 0.0
  %4830 = vmatpush1.msra.mxu0 0.0
  %4831 = vmatprep.subr.mxu0 0.0
  %4832 = vmatpush1.msra.mxu0 0.0
  %4833 = vmatprep.subr.mxu0 0.0
  %4834 = vmatpush1.msra.mxu0 0.0
  %4835 = vmatprep.subr.mxu0 0.0
  %4836 = vmatpush1.msra.mxu0 0.0
  %4837 = vmatprep.subr.mxu0 0.0
  %4838 = vmatpush1.msra.mxu0 0.0
  %4839 = vmatprep.subr.mxu0 0.0
  %4840 = vmatpush1.msra.mxu0 0.0
  %4841 = vmatprep.subr.mxu0 0.0
  %4842 = vmatpush1.msra.mxu0 0.0
  %4843 = vmatprep.subr.mxu0 0.0
  %4844 = vmatpush1.msra.mxu0 0.0
  %4845 = vmatprep.subr.mxu0 0.0
  %4846 = vmatpush1.msra.mxu0 0.0
  %4847 = vmatprep.subr.mxu0 0.0
  %4848 = vmatpush1.msra.mxu0 0.0
  %4849 = vmatprep.subr.mxu0 0.0
  %4850 = vmatpush1.msra.mxu0 0.0
  %4851 = vmatprep.subr.mxu0 0.0
  %4852 = vmatpush1.msra.mxu0 0.0
  %4853 = vmatprep.subr.mxu0 0.0
  %4854 = vmatpush1.msra.mxu0 0.0
  %4855 = vmatprep.subr.mxu0 0.0
  %4856 = vmatpush1.msra.mxu0 0.0
  %4857 = vmatprep.subr.mxu0 0.0
  %4858 = vmatpush1.msra.mxu0 0.0
  %4859 = vmatprep.subr.mxu0 0.0
  %4860 = vmatpush1.msra.mxu0 0.0
  %4861 = vmatprep.subr.mxu0 0.0
  %4862 = vmatpush1.msra.mxu0 0.0
  %4863 = vmatprep.subr.mxu0 0.0
  %4864 = vmatpush1.msra.mxu0 0.0
  %4865 = vmatprep.subr.mxu0 0.0
  %4866 = vmatpush1.msra.mxu0 0.0
  %4867 = vmatprep.mubr.f32.mxu0 0.0
  %4868 = vmatmul.mubr.f32.gmra.mrb[0].mxu0 %v4792
  %v4869 = vpop.f32.mrb[0].mxu0
  %v4870 = vadd.f32 0.0, %v4869
  %v4871 = vpop.f32.mrb[0].mxu0
  %4872 = vmatprep.mubr.f32.mxu0 0.0
  %4873 = vmatmul.mubr.f32.gmra.mrb[0].mxu0 %v4795
  %v4874 = vpop.f32.mrb[0].mxu0
  %v4875 = vadd.f32 0.0, %v4874
  %v4876 = vpop.f32.mrb[0].mxu0
  %4877 = vmatprep.mubr.f32.mxu0 0.0
  %4878 = vmatmul.mubr.f32.gmra.mrb[0].mxu0 %v4798
  %v4879 = vpop.f32.mrb[0].mxu0
  %v4880 = vadd.f32 0.0, %v4879
  %v4881 = vpop.f32.mrb[0].mxu0
  %4882 = vmatprep.mubr.f32.mxu0 0.0
  %4883 = vmatmul.mubr.f32.gmra.mrb[0].mxu0 %v4801
  %v4884 = vpop.f32.mrb[0].mxu0
  %v4885 = vadd.f32 0.0, %v4884
  %v4886 = vpop.f32.mrb[0].mxu0
  %4887 = vdwg.mxu0
  %v4888 = vadd.f32 %v4776, %v4870
  %v4889 = vadd.f32 %v4777, %v4875
  %v4890 = vadd.f32 %v4778, %v4880
  %v4891 = vadd.f32 %v4779, %v4885
  %v4892 = vld [vmem:[%s6] sm:$0x1]
  %v4894 = vlaneseq
  %v4895 = vshrl.u32 %v4894, 7
  %v4896 = vsub.s32 0, %v4895
  %v4897 = vrot.slane %v4892, %v4896
  %v4899 = vadd.f32 %v4888, %v4897
  %v4900 = vadd.f32 %v4889, %v4897
  %v4901 = vadd.f32 %v4890, %v4897
  %v4902 = vadd.f32 %v4891, %v4897
  %v4903 = vmax.f32 %v4899, 0.0
  %v4904 = vmax.f32 %v4900, 0.0
  %v4905 = vmax.f32 %v4901, 0.0
  %v4906 = vmax.f32 %v4902, 0.0
  %v4907 = vld [vmem:[%s7] sm:$0xff]
  %v4908 = vld [vmem:[%s7 + $0x8] sm:$0xff]
  %v4909 = vld [vmem:[%s7 + $0x10] sm:$0xff]
  %v4910 = vld [vmem:[%s7 + $0x18] sm:$0xff]
  %v4911 = vld [vmem:[%s7 + $0x20] sm:$0xff]
  %v4912 = vld [vmem:[%s7 + $0x28] sm:$0xff]
  %v4913 = vld [vmem:[%s7 + $0x30] sm:$0xff]
  %v4914 = vld [vmem:[%s7 + $0x38] sm:$0xff]
  %v4915 = vld [vmem:[%s7 + $0x40] sm:$0xff]
  %v4916 = vld [vmem:[%s7 + $0x48] sm:$0xff]
  %v4917 = vld [vmem:[%s7 + $0x50] sm:$0xff]
  %v4918 = vld [vmem:[%s7 + $0x58] sm:$0xff]
  %v4919 = vld [vmem:[%s7 + $0x60] sm:$0xff]
  %v4920 = vld [vmem:[%s7 + $0x68] sm:$0xff]
  %v4921 = vld [vmem:[%s7 + $0x70] sm:$0xff]
  %v4922 = vld [vmem:[%s7 + $0x78] sm:$0xff]
  %v4923 = vld [vmem:[%s8] sm:$0x1]
  %v4925 = vlaneseq
  %v4926 = vshrl.u32 %v4925, 7
  %v4927 = vsub.s32 0, %v4926
  %v4928 = vrot.slane %v4923, %v4927
  %4930 = vmatprep.subr.mxu0 0.0
  %4931 = vmatpush1.msra.mxu0 %v4907
  %4932 = vmatprep.subr.mxu0 0.0
  %4933 = vmatpush1.msra.mxu0 %v4908
  %4934 = vmatprep.subr.mxu0 0.0
  %4935 = vmatpush1.msra.mxu0 %v4909
  %4936 = vmatprep.subr.mxu0 0.0
  %4937 = vmatpush1.msra.mxu0 %v4910
  %4938 = vmatprep.subr.mxu0 0.0
  %4939 = vmatpush1.msra.mxu0 %v4911
  %4940 = vmatprep.subr.mxu0 0.0
  %4941 = vmatpush1.msra.mxu0 %v4912
  %4942 = vmatprep.subr.mxu0 0.0
  %4943 = vmatpush1.msra.mxu0 %v4913
  %4944 = vmatprep.subr.mxu0 0.0
  %4945 = vmatpush1.msra.mxu0 %v4914
  %4946 = vmatprep.subr.mxu0 0.0
  %4947 = vmatpush1.msra.mxu0 %v4915
  %4948 = vmatprep.subr.mxu0 0.0
  %4949 = vmatpush1.msra.mxu0 %v4916
  %4950 = vmatprep.subr.mxu0 0.0
  %4951 = vmatpush1.msra.mxu0 %v4917
  %4952 = vmatprep.subr.mxu0 0.0
  %4953 = vmatpush1.msra.mxu0 %v4918
  %4954 = vmatprep.subr.mxu0 0.0
  %4955 = vmatpush1.msra.mxu0 %v4919
  %4956 = vmatprep.subr.mxu0 0.0
  %4957 = vmatpush1.msra.mxu0 %v4920
  %4958 = vmatprep.subr.mxu0 0.0
  %4959 = vmatpush1.msra.mxu0 %v4921
  %4960 = vmatprep.subr.mxu0 0.0
  %4961 = vmatpush1.msra.mxu0 %v4922
  %4962 = vmatprep.subr.mxu0 0.0
  %4963 = vmatpush1.msra.mxu0 0.0
  %4964 = vmatprep.subr.mxu0 0.0
  %4965 = vmatpush1.msra.mxu0 0.0
  %4966 = vmatprep.subr.mxu0 0.0
  %4967 = vmatpush1.msra.mxu0 0.0
  %4968 = vmatprep.subr.mxu0 0.0
  %4969 = vmatpush1.msra.mxu0 0.0
  %4970 = vmatprep.subr.mxu0 0.0
  %4971 = vmatpush1.msra.mxu0 0.0
  %4972 = vmatprep.subr.mxu0 0.0
  %4973 = vmatpush1.msra.mxu0 0.0
  %4974 = vmatprep.subr.mxu0 0.0
  %4975 = vmatpush1.msra.mxu0 0.0
  %4976 = vmatprep.subr.mxu0 0.0
  %4977 = vmatpush1.msra.mxu0 0.0
  %4978 = vmatprep.subr.mxu0 0.0
  %4979 = vmatpush1.msra.mxu0 0.0
  %4980 = vmatprep.subr.mxu0 0.0
  %4981 = vmatpush1.msra.mxu0 0.0
  %4982 = vmatprep.subr.mxu0 0.0
  %4983 = vmatpush1.msra.mxu0 0.0
  %4984 = vmatprep.subr.mxu0 0.0
  %4985 = vmatpush1.msra.mxu0 0.0
  %4986 = vmatprep.subr.mxu0 0.0
  %4987 = vmatpush1.msra.mxu0 0.0
  %4988 = vmatprep.subr.mxu0 0.0
  %4989 = vmatpush1.msra.mxu0 0.0
  %4990 = vmatprep.subr.mxu0 0.0
  %4991 = vmatpush1.msra.mxu0 0.0
  %4992 = vmatprep.subr.mxu0 0.0
  %4993 = vmatpush1.msra.mxu0 0.0
  %4994 = vmatprep.mubr.f32.mxu0 0.0
  %4995 = vmatmul.mubr.f32.gmra.mrb[0].mxu0 %v4903
  %v4996 = vpop.f32.mrb[0].mxu0
  %v4997 = vadd.f32 %v4928, %v4996
  %v4998 = vpop.f32.mrb[0].mxu0
  %4999 = vmatprep.mubr.f32.mxu0 0.0
  %5000 = vmatmul.mubr.f32.gmra.mrb[0].mxu0 %v4904
  %v5001 = vpop.f32.mrb[0].mxu0
  %v5002 = vadd.f32 %v4928, %v5001
  %v5003 = vpop.f32.mrb[0].mxu0
  %5004 = vmatprep.mubr.f32.mxu0 0.0
  %5005 = vmatmul.mubr.f32.gmra.mrb[0].mxu0 %v4905
  %v5006 = vpop.f32.mrb[0].mxu0
  %v5007 = vadd.f32 %v4928, %v5006
  %v5008 = vpop.f32.mrb[0].mxu0
  %5009 = vmatprep.mubr.f32.mxu0 0.0
  %5010 = vmatmul.mubr.f32.gmra.mrb[0].mxu0 %v4906
  %v5011 = vpop.f32.mrb[0].mxu0
  %v5012 = vadd.f32 %v4928, %v5011
  %v5013 = vpop.f32.mrb[0].mxu0
  %5014 = vdwg.mxu0
  %v5015 = vlaneseq
  %v5016 = vand.u32 %v5015, 127
  %vm5017 = vcmp.lt.s32.totalorder %v5016, 10
  %v5018 = vsel %vm5017, %v4997, -1e+30
  %v5019 = vsel %vm5017, %v5002, -1e+30
  %v5020 = vsel %vm5017, %v5007, -1e+30
  %v5021 = vsel %vm5017, %v5012, -1e+30
  %5022 = vmax.xlane.f32.xlu0 %v5018
  %v5023 = vpop.xlane.xlu0 %5022
  %5024 = vmax.xlane.f32.xlu0 %v5019
  %v5025 = vpop.xlane.xlu0 %5024
  %5026 = vmax.xlane.f32.xlu0 %v5020
  %v5027 = vpop.xlane.xlu0 %5026
  %5028 = vmax.xlane.f32.xlu0 %v5021
  %v5029 = vpop.xlane.xlu0 %5028
  %v5030 = vsub.f32 %v5018, %v5023
  %v5031 = vsub.f32 %v5019, %v5025
  %v5032 = vsub.f32 %v5020, %v5027
  %v5033 = vsub.f32 %v5021, %v5029
  %v5034 = vmul.f32 %v5030, 1.442695
  %v5035 = vpow.pop %v5034
  %v5036 = vmul.f32 %v5031, 1.442695
  %v5037 = vpow.pop %v5036
  %v5038 = vmul.f32 %v5032, 1.442695
  %v5039 = vpow.pop %v5038
  %v5040 = vmul.f32 %v5033, 1.442695
  %v5041 = vpow.pop %v5040
  %5042 = vadd.xlane.f32.xlu0 %v5035
  %v5043 = vpop.xlane.xlu0 %5042
  %5044 = vadd.xlane.f32.xlu0 %v5037
  %v5045 = vpop.xlane.xlu0 %5044
  %5046 = vadd.xlane.f32.xlu0 %v5039
  %v5047 = vpop.xlane.xlu0 %5046
  %5048 = vadd.xlane.f32.xlu0 %v5041
  %v5049 = vpop.xlane.xlu0 %5048
  %v5050 = vlog2.pop %v5043
  %v5051 = vmul.f32 %v5050, 0.6931472
  %v5052 = vlog2.pop %v5045
  %v5053 = vmul.f32 %v5052, 0.6931472
  %v5054 = vlog2.pop %v5047
  %v5055 = vmul.f32 %v5054, 0.6931472
  %v5056 = vlog2.pop %v5049
  %v5057 = vmul.f32 %v5056, 0.6931472
  %v5058 = vadd.f32 %v5051, %v5023
  %v5059 = vadd.f32 %v5053, %v5025
  %v5060 = vadd.f32 %v5055, %v5027
  %v5061 = vadd.f32 %v5057, %v5029
  %v5062 = vsub.f32 %v5018, %v5058
  %v5063 = vsub.f32 %v5019, %v5059
  %v5064 = vsub.f32 %v5020, %v5060
  %v5065 = vsub.f32 %v5021, %v5061
  %5066 = vst [vmem:[%s9] sm:$0xff] %v5062
  %5067 = vst [vmem:[%s9 + $0x8] sm:$0xff] %v5063
  %5068 = vst [vmem:[%s9 + $0x10] sm:$0xff] %v5064
  %5069 = vst [vmem:[%s9 + $0x18] sm:$0xff] %v5065
  // Predicated region
  $region38: #{net_forward.1} parent=0 // pred_check
    _
  $region39: #{net_forward.1} parent=0 // pred_check_branch
    %5071 = sbr.rel (0) target = $region41
  $region40: #{net_forward.1} parent=0 // pred_region
    _
  $region41: #{net_forward.1} parent=0 // pred_fallthru
    _
  // Predicated region
  $region42: #{net_forward.1} parent=0 // pred_check
    _
  $region43: #{net_forward.1} parent=0 // pred_check_branch
    %5073 = sbr.rel (0) target = $region45
  $region44: #{net_forward.1} parent=0 // pred_region
    _
  $region45: #{net_forward.1} parent=0 // pred_fallthru
    _

</llo_original>
